<compile_context>
chip_gen: v6e
topology: v6e:2x2x1
jax: 0.10.0
libtpu: 0.0.40
codegen_flags: <defaults>
</compile_context>

<pallas_src>
import jax
import jax.numpy as jnp
from jax import lax
from jax.experimental import pallas as pl
from jax.experimental.pallas import tpu as pltpu  # noqa: F401  (not needed at this size)

D_MODEL = 32
NHEAD = 4
HEAD_DIM = D_MODEL // NHEAD
DIM_FF = 64
NUM_LAYERS = 2
LN_EPS = 1e-5

# Column layout of the packed (32, 384) per-layer matrix blob `w_mat[l]`
# (rows = input dim E; FF2 is stored transposed so its rows are also E):
_C_SA_QKV = (0, 3 * D_MODEL)                                 # Wq|Wk|Wv (self)
_C_SA_O = (3 * D_MODEL, 4 * D_MODEL)                         # Wo       (self)
_C_CA_Q = (4 * D_MODEL, 5 * D_MODEL)                         # Wq       (cross)
_C_CA_KV = (5 * D_MODEL, 7 * D_MODEL)                        # Wk|Wv    (cross)
_C_CA_O = (7 * D_MODEL, 8 * D_MODEL)                         # Wo       (cross)
_C_FF1 = (8 * D_MODEL, 8 * D_MODEL + DIM_FF)                 # FF1 (E,F)
_C_FF2T = (8 * D_MODEL + DIM_FF, 8 * D_MODEL + 2 * DIM_FF)   # FF2^T (E,F)
W_COLS = 8 * D_MODEL + 2 * DIM_FF                            # 384

# Row layout of the packed (16, 64) per-layer vector blob `vec[l]`
# (32-wide vectors live in lanes [0:32]; row 8 (FF1 bias) uses all 64 lanes):
(ROW_SA_BQ, ROW_SA_BK, ROW_SA_BV, ROW_SA_BO,
 ROW_CA_BQ, ROW_CA_BK, ROW_CA_BV, ROW_CA_BO,
 ROW_FF1_B, ROW_FF2_B,
 ROW_N1_G, ROW_N1_B, ROW_N2_G, ROW_N2_B, ROW_N3_G, ROW_N3_B) = range(16)
VEC_ROWS, VEC_COLS = 16, 64


# ------------------------------ shared math -----------------------------------
def _layer_norm(x, gamma, beta):
    mu = jnp.mean(x, axis=-1, keepdims=True)
    var = jnp.mean(jnp.square(x - mu), axis=-1, keepdims=True)
    return (x - mu) * lax.rsqrt(var + LN_EPS) * gamma + beta


# --------------------------------- kernel --------------------------------------
def _make_decoder_kernel(n_batch):
    """Fused 2-layer decoder + projection kernel for a static batch size."""

    def kernel(x_ref, mem_ref, w_ref, vec_ref, proj_ref, out_ref):
        E = D_MODEL
        m_q = x_ref.shape[0]        # T * N
        m_k = mem_ref.shape[0]      # S * N
        x = x_ref[...].astype(jnp.float32)      # (T*N, E), rows t*N + n
        mem = mem_ref[...].astype(jnp.float32)  # (S*N, E), rows s*N + n

        # --- static constants, built once (hoisted out of attention) ---
        lane = lax.broadcasted_iota(jnp.int32, (1, E), 1)
        head_masks = [
            ((lane >= h * HEAD_DIM) & (lane < (h + 1) * HEAD_DIM)).astype(jnp.float32)
            for h in range(NHEAD)
        ]
        # Block-diagonal batch masks: a query row and key row belong to the
        # same batch element iff (row % N) matches (rows are interleaved).
        q_batch = lax.broadcasted_iota(jnp.int32, (m_q, 1), 0) % n_batch
        k_batch_self = lax.broadcasted_iota(jnp.int32, (1, m_q), 1) % n_batch
        k_batch_mem = lax.broadcasted_iota(jnp.int32, (1, m_k), 1) % n_batch
        self_bias = jnp.where(q_batch == k_batch_self, 0.0, -1e30).astype(jnp.float32)
        cross_bias = jnp.where(q_batch == k_batch_mem, 0.0, -1e30).astype(jnp.float32)
        scale = HEAD_DIM ** -0.5

        def attend(q, k, v, batch_bias):
            # Head separation via static lane masks; batch separation via the
            # block-diagonal additive bias.  All matmuls keep M = T*N.
            ctx = jnp.zeros_like(q)
            for hm in head_masks:
                s = lax.dot_general(q * hm, k, (((1,), (1,)), ((), ())),
                                    preferred_element_type=jnp.float32)
                s = s * scale + batch_bias
                s = s - jnp.max(s, axis=-1, keepdims=True)
                p = jnp.exp(s)
                p = p * pl.reciprocal(jnp.sum(p, axis=-1, keepdims=True), approx=False)
                ctx = ctx + jnp.dot(p, v * hm, preferred_element_type=jnp.float32)
            return ctx

        for l in range(NUM_LAYERS):              # static unroll over layers
            W = w_ref[l]                         # (32, 384)
            V = vec_ref[l]                       # (16, 64)
            vrow = lambda r: V[r:r + 1, 0:E]     # (1, 32)

            # --- self-attention: one fused QKV matmul (M = T*N) ---
            qkv = jnp.dot(x, W[:, _C_SA_QKV[0]:_C_SA_QKV[1]],
                          preferred_element_type=jnp.float32)
            q = qkv[:, 0:E] + vrow(ROW_SA_BQ)
            k = qkv[:, E:2 * E] + vrow(ROW_SA_BK)
            v = qkv[:, 2 * E:3 * E] + vrow(ROW_SA_BV)
            sa = jnp.dot(attend(q, k, v, self_bias), W[:, _C_SA_O[0]:_C_SA_O[1]],
                         preferred_element_type=jnp.float32) + vrow(ROW_SA_BO)
            x = _layer_norm(x + sa, vrow(ROW_N1_G), vrow(ROW_N1_B))

            # --- cross-attention: fused KV matmul on the memory slab ---
            q = jnp.dot(x, W[:, _C_CA_Q[0]:_C_CA_Q[1]],
                        preferred_element_type=jnp.float32) + vrow(ROW_CA_BQ)
            kv = jnp.dot(mem, W[:, _C_CA_KV[0]:_C_CA_KV[1]],
                         preferred_element_type=jnp.float32)
            k = kv[:, 0:E] + vrow(ROW_CA_BK)
            v = kv[:, E:2 * E] + vrow(ROW_CA_BV)
            ca = jnp.dot(attend(q, k, v, cross_bias), W[:, _C_CA_O[0]:_C_CA_O[1]],
                         preferred_element_type=jnp.float32) + vrow(ROW_CA_BO)
            x = _layer_norm(x + ca, vrow(ROW_N2_G), vrow(ROW_N2_B))

            # --- feed-forward ---
            h1 = jnp.maximum(
                jnp.dot(x, W[:, _C_FF1[0]:_C_FF1[1]],
                        preferred_element_type=jnp.float32)
                + V[ROW_FF1_B:ROW_FF1_B + 1, :], 0.0)
            # FF2 stored transposed (E rows, F lanes) -> contract the F dims.
            ff = lax.dot_general(h1, W[:, _C_FF2T[0]:_C_FF2T[1]],
                                 (((1,), (1,)), ((), ())),
                                 preferred_element_type=jnp.float32) + vrow(ROW_FF2_B)
            x = _layer_norm(x + ff, vrow(ROW_N3_G), vrow(ROW_N3_B))

        # --- fused projection: VPU multiply + lane reduction (no MXU) ---
        out_ref[...] = jnp.sum(x * proj_ref[...], axis=-1,
                               keepdims=True).astype(out_ref.dtype)

    return kernel


# ------------------------------ pallas wrapper ----------------------------------
def decoder_forward(tgt, memory, w_X, params):
    """Pallas equivalent of Decoder.forward (masks=None, norm=None, eval mode).

    tgt: (T, N, E), memory: (S, N, E)  ->  (T, N), matching
    torch.squeeze(self.projection(output), axis=2).
    """
    # TODO(synk): the transMOT decoder_layer source (its use of w_X, the i==0
    # flag and repeat_num=memory.shape[1]) is not provided; a standard
    # post-norm transformer decoder layer is implemented and w_X is unused.
    del w_X
    T, N, E = tgt.shape
    S = memory.shape[0]
    # Contiguous reshapes only (free bitcasts) -- no transposes / squeeze.
    x2 = tgt.reshape(T * N, E)        # rows ordered t*N + n
    m2 = memory.reshape(S * N, E)     # rows ordered s*N + n
    y = pl.pallas_call(
        _make_decoder_kernel(N),
        out_shape=jax.ShapeDtypeStruct((T * N, 1), tgt.dtype),
        # grid=(): the whole (tiny) problem is one invocation; every operand is
        # a single full-array VMEM block (5 input DMAs, 1 output DMA).
        # TODO(synk): for large N on v7x, split the batch over a 2-way
        # "parallel" grid so both TensorCores get work.
    )(x2, m2, params['w_mat'], params['vec'], params['proj_w'])
    return y.reshape(T, N)            # free bitcast: row t*N + n -> [t, n]


# --------------------------- independent JAX reference ---------------------------
def decoder_forward_ref(tgt, memory, params):
    """Plain-JAX reference written independently of the kernel helpers:
    conventional batched multi-head attention (heads via reshape), post-norm."""
    E, H, dh, F = D_MODEL, NHEAD, HEAD_DIM, DIM_FF
    x = jnp.transpose(tgt, (1, 0, 2))        # (N, T, E)
    mem = jnp.transpose(memory, (1, 0, 2))   # (N, S, E)

    def ln(v, g, b):
        mu = v.mean(-1, keepdims=True)
        var = ((v - mu) ** 2).mean(-1, keepdims=True)
        return (v - mu) / jnp.sqrt(var + LN_EPS) * g + b

    def mha(q_in, kv_in, wq, wk, wv, wo, bq, bk, bv, bo):
        q = q_in @ wq + bq
        k = kv_in @ wk + bk
        v = kv_in @ wv + bv

        def heads(a):
            n, L, _ = a.shape
            return a.reshape(n, L, H, dh).transpose(0, 2, 1, 3)

        qh, kh, vh = heads(q), heads(k), heads(v)
        s = jnp.einsum('nhtd,nhsd->nhts', qh, kh) / jnp.sqrt(dh)
        p = jax.nn.softmax(s, axis=-1)
        c = jnp.einsum('nhts,nhsd->nhtd', p, vh)
        c = c.transpose(0, 2, 1, 3).reshape(q_in.shape[0], q_in.shape[1], E)
        return c @ wo + bo

    for l in range(NUM_LAYERS):
        W = params['w_mat'][l]
        V = params['vec'][l]
        w = lambda i: W[:, i * E:(i + 1) * E]
        b = lambda r: V[r, :E]
        sa = mha(x, x, w(0), w(1), w(2), w(3), b(0), b(1), b(2), b(3))
        x = ln(x + sa, b(ROW_N1_G), b(ROW_N1_B))
        ca = mha(x, mem, w(4), w(5), w(6), w(7), b(4), b(5), b(6), b(7))
        x = ln(x + ca, b(ROW_N2_G), b(ROW_N2_B))
        h1 = jax.nn.relu(x @ W[:, 8 * E:8 * E + F] + V[ROW_FF1_B, :])
        ff = h1 @ W[:, 8 * E + F:8 * E + 2 * F].T + b(ROW_FF2_B)
        x = ln(x + ff, b(ROW_N3_G), b(ROW_N3_B))

    y = jnp.einsum('nte,e->nt', x, params['proj_w'][0])   # (N, T)
    return y.T                                             # (T, N)


# --------------------------------- parameters ------------------------------------
def init_decoder_params(key):
    keys = jax.random.split(key, NUM_LAYERS * 8 + 1)
    s_e = D_MODEL ** -0.5
    s_f = DIM_FF ** -0.5

    def pad64(a):  # (R, 32) -> (R, 64)
        return jnp.concatenate([a, jnp.zeros_like(a)], axis=1)

    w_mat, vec = [], []
    for li in range(NUM_LAYERS):
        k = keys[li * 8:(li + 1) * 8]
        attn = s_e * jax.random.normal(k[0], (8, D_MODEL, D_MODEL), jnp.float32)
        attn_flat = jnp.concatenate(list(attn), axis=1)                    # (32, 256)
        ff1 = s_e * jax.random.normal(k[1], (D_MODEL, DIM_FF), jnp.float32)
        ff2 = s_f * jax.random.normal(k[2], (DIM_FF, D_MODEL), jnp.float32)
        w_mat.append(jnp.concatenate([attn_flat, ff1, ff2.T], axis=1))     # (32, 384)

        attn_b = 0.1 * jax.random.normal(k[3], (8, D_MODEL), jnp.float32)  # rows 0..7
        ff1_b = 0.1 * jax.random.normal(k[4], (1, DIM_FF), jnp.float32)    # row 8
        ff2_b = 0.1 * jax.random.normal(k[5], (1, D_MODEL), jnp.float32)   # row 9
        ln_g = 1.0 + 0.1 * jax.random.normal(k[6], (3, D_MODEL), jnp.float32)
        ln_b = 0.1 * jax.random.normal(k[7], (3, D_MODEL), jnp.float32)
        ln_rows = jnp.stack([ln_g, ln_b], axis=1).reshape(6, D_MODEL)      # g1,b1,g2,b2,g3,b3
        vec.append(jnp.concatenate(
            [pad64(attn_b), ff1_b, pad64(ff2_b), pad64(ln_rows)], axis=0))  # (16, 64)

    proj = s_e * jax.random.normal(keys[-1], (1, D_MODEL), jnp.float32)
    return {'w_mat': jnp.stack(w_mat),   # (L, 32, 384)
            'vec': jnp.stack(vec),       # (L, 16, 64)
            'proj_w': proj}              # (1, 32)


if __name__ == "__main__":
    key = jax.random.PRNGKey(0)
    k_tgt, k_mem, k_wx, k_par = jax.random.split(key, 4)
    T, S, N = 8, 8, 2
    tgt = jax.random.normal(k_tgt, (T, N, D_MODEL), dtype=jnp.float32)
    memory = jax.random.normal(k_mem, (S, N, D_MODEL), dtype=jnp.float32)
    w_X = jax.random.normal(k_wx, (N, T, S), dtype=jnp.float32)  # unused, see TODO
    params = init_decoder_params(k_par)

    fwd = jax.jit(decoder_forward)
    out = jax.block_until_ready(fwd(tgt, memory, w_X, params))
    assert out.shape == (T, N), out.shape

    ref = jax.block_until_ready(decoder_forward_ref(tgt, memory, params))
    max_err = float(jnp.max(jnp.abs(out - ref)))
    assert jnp.allclose(out, ref, atol=1e-4, rtol=1e-4), max_err
    print("KERNEL_OK")
</pallas_src>

<mosaic_0001>
module attributes {stable_mosaic.version = 11 : i64} {
  func.func @kernel(%arg0: memref<16x32xf32, #tpu.memory_space<vmem>>, %arg1: memref<16x32xf32, #tpu.memory_space<vmem>>, %arg2: memref<2x32x384xf32, #tpu.memory_space<vmem>>, %arg3: memref<2x16x64xf32, #tpu.memory_space<vmem>>, %arg4: memref<1x32xf32, #tpu.memory_space<vmem>>, %arg5: memref<16x1xf32, #tpu.memory_space<vmem>>) attributes {dimension_semantics = [], scalar_prefetch = 0 : i64, scratch_operands = 0 : i64, tpu.core_type = #tpu.core_type<tc>} {
    %c0 = arith.constant 0 : index
    %c0_0 = arith.constant 0 : index
    %0 = vector.load %arg0[%c0, %c0_0] : memref<16x32xf32, #tpu.memory_space<vmem>>, vector<16x32xf32>
    %c0_1 = arith.constant 0 : index
    %c0_2 = arith.constant 0 : index
    %1 = vector.load %arg1[%c0_1, %c0_2] : memref<16x32xf32, #tpu.memory_space<vmem>>, vector<16x32xf32>
    %2 = tpu.iota {dimensions = array<i32: 1>} : vector<1x32xi32>
    %c0_i32 = arith.constant 0 : i32
    %3 = vector.broadcast %c0_i32 : i32 to vector<1x32xi32>
    %4 = arith.cmpi sge, %2, %3 : vector<1x32xi32>
    %c8_i32 = arith.constant 8 : i32
    %5 = vector.broadcast %c8_i32 : i32 to vector<1x32xi32>
    %6 = arith.cmpi slt, %2, %5 : vector<1x32xi32>
    %7 = arith.andi %4, %6 : vector<1x32xi1>
    %8 = arith.extui %7 : vector<1x32xi1> to vector<1x32xi32>
    %9 = arith.sitofp %8 : vector<1x32xi32> to vector<1x32xf32>
    %c8_i32_3 = arith.constant 8 : i32
    %10 = vector.broadcast %c8_i32_3 : i32 to vector<1x32xi32>
    %11 = arith.cmpi sge, %2, %10 : vector<1x32xi32>
    %c16_i32 = arith.constant 16 : i32
    %12 = vector.broadcast %c16_i32 : i32 to vector<1x32xi32>
    %13 = arith.cmpi slt, %2, %12 : vector<1x32xi32>
    %14 = arith.andi %11, %13 : vector<1x32xi1>
    %15 = arith.extui %14 : vector<1x32xi1> to vector<1x32xi32>
    %16 = arith.sitofp %15 : vector<1x32xi32> to vector<1x32xf32>
    %c16_i32_4 = arith.constant 16 : i32
    %17 = vector.broadcast %c16_i32_4 : i32 to vector<1x32xi32>
    %18 = arith.cmpi sge, %2, %17 : vector<1x32xi32>
    %c24_i32 = arith.constant 24 : i32
    %19 = vector.broadcast %c24_i32 : i32 to vector<1x32xi32>
    %20 = arith.cmpi slt, %2, %19 : vector<1x32xi32>
    %21 = arith.andi %18, %20 : vector<1x32xi1>
    %22 = arith.extui %21 : vector<1x32xi1> to vector<1x32xi32>
    %23 = arith.sitofp %22 : vector<1x32xi32> to vector<1x32xf32>
    %c24_i32_5 = arith.constant 24 : i32
    %24 = vector.broadcast %c24_i32_5 : i32 to vector<1x32xi32>
    %25 = arith.cmpi sge, %2, %24 : vector<1x32xi32>
    %c32_i32 = arith.constant 32 : i32
    %26 = vector.broadcast %c32_i32 : i32 to vector<1x32xi32>
    %27 = arith.cmpi slt, %2, %26 : vector<1x32xi32>
    %28 = arith.andi %25, %27 : vector<1x32xi1>
    %29 = arith.extui %28 : vector<1x32xi1> to vector<1x32xi32>
    %30 = arith.sitofp %29 : vector<1x32xi32> to vector<1x32xf32>
    %31 = tpu.iota {dimensions = array<i32: 0>} : vector<16x1xi32>
    %c2_i32 = arith.constant 2 : i32
    %c0_i32_6 = arith.constant 0 : i32
    %32 = arith.cmpi eq, %c2_i32, %c0_i32_6 : i32
    %c1_i32 = arith.constant 1 : i32
    %33 = arith.select %32, %c1_i32, %c2_i32 : i32
    %34 = vector.broadcast %33 : i32 to vector<16x1xi32>
    %35 = arith.remsi %31, %34 : vector<16x1xi32>
    %c0_i32_7 = arith.constant 0 : i32
    %36 = vector.broadcast %c0_i32_7 : i32 to vector<16x1xi32>
    %37 = arith.cmpi ne, %35, %36 : vector<16x1xi32>
    %c0_i32_8 = arith.constant 0 : i32
    %38 = vector.broadcast %c0_i32_8 : i32 to vector<16x1xi32>
    %39 = arith.cmpi slt, %35, %38 : vector<16x1xi32>
    %c0_i32_9 = arith.constant 0 : i32
    %40 = arith.cmpi slt, %33, %c0_i32_9 : i32
    %41 = vector.broadcast %40 : i1 to vector<16x1xi1>
    %42 = vector.broadcast %41 : vector<16x1xi1> to vector<16x1xi1>
    %43 = arith.xori %39, %42 : vector<16x1xi1>
    %44 = arith.andi %43, %37 : vector<16x1xi1>
    %45 = vector.broadcast %33 : i32 to vector<16x1xi32>
    %46 = arith.addi %35, %45 : vector<16x1xi32>
    %47 = arith.select %44, %46, %35 : vector<16x1xi1>, vector<16x1xi32>
    %48 = tpu.iota {dimensions = array<i32: 1>} : vector<1x16xi32>
    %c2_i32_10 = arith.constant 2 : i32
    %c0_i32_11 = arith.constant 0 : i32
    %49 = arith.cmpi eq, %c2_i32_10, %c0_i32_11 : i32
    %c1_i32_12 = arith.constant 1 : i32
    %50 = arith.select %49, %c1_i32_12, %c2_i32_10 : i32
    %51 = vector.broadcast %50 : i32 to vector<1x16xi32>
    %52 = arith.remsi %48, %51 : vector<1x16xi32>
    %c0_i32_13 = arith.constant 0 : i32
    %53 = vector.broadcast %c0_i32_13 : i32 to vector<1x16xi32>
    %54 = arith.cmpi ne, %52, %53 : vector<1x16xi32>
    %c0_i32_14 = arith.constant 0 : i32
    %55 = vector.broadcast %c0_i32_14 : i32 to vector<1x16xi32>
    %56 = arith.cmpi slt, %52, %55 : vector<1x16xi32>
    %c0_i32_15 = arith.constant 0 : i32
    %57 = arith.cmpi slt, %50, %c0_i32_15 : i32
    %58 = vector.broadcast %57 : i1 to vector<1x16xi1>
    %59 = vector.broadcast %58 : vector<1x16xi1> to vector<1x16xi1>
    %60 = arith.xori %56, %59 : vector<1x16xi1>
    %61 = arith.andi %60, %54 : vector<1x16xi1>
    %62 = vector.broadcast %50 : i32 to vector<1x16xi32>
    %63 = arith.addi %52, %62 : vector<1x16xi32>
    %64 = arith.select %61, %63, %52 : vector<1x16xi1>, vector<1x16xi32>
    %65 = tpu.iota {dimensions = array<i32: 1>} : vector<1x16xi32>
    %c2_i32_16 = arith.constant 2 : i32
    %c0_i32_17 = arith.constant 0 : i32
    %66 = arith.cmpi eq, %c2_i32_16, %c0_i32_17 : i32
    %c1_i32_18 = arith.constant 1 : i32
    %67 = arith.select %66, %c1_i32_18, %c2_i32_16 : i32
    %68 = vector.broadcast %67 : i32 to vector<1x16xi32>
    %69 = arith.remsi %65, %68 : vector<1x16xi32>
    %c0_i32_19 = arith.constant 0 : i32
    %70 = vector.broadcast %c0_i32_19 : i32 to vector<1x16xi32>
    %71 = arith.cmpi ne, %69, %70 : vector<1x16xi32>
    %c0_i32_20 = arith.constant 0 : i32
    %72 = vector.broadcast %c0_i32_20 : i32 to vector<1x16xi32>
    %73 = arith.cmpi slt, %69, %72 : vector<1x16xi32>
    %c0_i32_21 = arith.constant 0 : i32
    %74 = arith.cmpi slt, %67, %c0_i32_21 : i32
    %75 = vector.broadcast %74 : i1 to vector<1x16xi1>
    %76 = vector.broadcast %75 : vector<1x16xi1> to vector<1x16xi1>
    %77 = arith.xori %73, %76 : vector<1x16xi1>
    %78 = arith.andi %77, %71 : vector<1x16xi1>
    %79 = vector.broadcast %67 : i32 to vector<1x16xi32>
    %80 = arith.addi %69, %79 : vector<1x16xi32>
    %81 = arith.select %78, %80, %69 : vector<1x16xi1>, vector<1x16xi32>
    %82 = vector.broadcast %47 : vector<16x1xi32> to vector<16x16xi32>
    %83 = vector.broadcast %64 : vector<1x16xi32> to vector<16x16xi32>
    %84 = arith.cmpi eq, %82, %83 : vector<16x16xi32>
    %cst = arith.constant 0.000000e+00 : f32
    %cst_22 = arith.constant -1.000000e+30 : f32
    %85 = vector.broadcast %cst : f32 to vector<16x16xf32>
    %86 = vector.broadcast %cst_22 : f32 to vector<16x16xf32>
    %87 = arith.select %84, %85, %86 : vector<16x16xi1>, vector<16x16xf32>
    %88 = vector.broadcast %47 : vector<16x1xi32> to vector<16x16xi32>
    %89 = vector.broadcast %81 : vector<1x16xi32> to vector<16x16xi32>
    %90 = arith.cmpi eq, %88, %89 : vector<16x16xi32>
    %cst_23 = arith.constant 0.000000e+00 : f32
    %cst_24 = arith.constant -1.000000e+30 : f32
    %91 = vector.broadcast %cst_23 : f32 to vector<16x16xf32>
    %92 = vector.broadcast %cst_24 : f32 to vector<16x16xf32>
    %93 = arith.select %90, %91, %92 : vector<16x16xi1>, vector<16x16xf32>
    %c0_25 = arith.constant 0 : index
    %c0_26 = arith.constant 0 : index
    %c0_27 = arith.constant 0 : index
    %94 = vector.load %arg2[%c0_25, %c0_26, %c0_27] : memref<2x32x384xf32, #tpu.memory_space<vmem>>, vector<1x32x384xf32>
    %95 = vector.shape_cast %94 : vector<1x32x384xf32> to vector<32x384xf32>
    %c0_28 = arith.constant 0 : index
    %c0_29 = arith.constant 0 : index
    %c0_30 = arith.constant 0 : index
    %96 = vector.load %arg3[%c0_28, %c0_29, %c0_30] : memref<2x16x64xf32, #tpu.memory_space<vmem>>, vector<1x16x64xf32>
    %97 = vector.shape_cast %96 : vector<1x16x64xf32> to vector<16x64xf32>
    %98 = vector.extract_strided_slice %95 {offsets = [0, 0], sizes = [32, 96], strides = [1, 1]} : vector<32x384xf32> to vector<32x96xf32>
    %cst_31 = arith.constant dense<0.000000e+00> : vector<16x96xf32>
    %99 = tpu.matmul %0, %98, %cst_31 {dimension_numbers = #tpu.dot_dimension_numbers<[1], [0], [0], [1], [0, 0, 1, 1], [], []>} : vector<16x32xf32>, vector<32x96xf32>, vector<16x96xf32> -> vector<16x96xf32>
    %100 = vector.extract_strided_slice %99 {offsets = [0, 0], sizes = [16, 32], strides = [1, 1]} : vector<16x96xf32> to vector<16x32xf32>
    %101 = vector.extract_strided_slice %97 {offsets = [0, 0], sizes = [1, 32], strides = [1, 1]} : vector<16x64xf32> to vector<1x32xf32>
    %102 = vector.broadcast %101 : vector<1x32xf32> to vector<16x32xf32>
    %103 = arith.addf %100, %102 : vector<16x32xf32>
    %104 = vector.extract_strided_slice %99 {offsets = [0, 32], sizes = [16, 32], strides = [1, 1]} : vector<16x96xf32> to vector<16x32xf32>
    %105 = vector.extract_strided_slice %97 {offsets = [1, 0], sizes = [1, 32], strides = [1, 1]} : vector<16x64xf32> to vector<1x32xf32>
    %106 = vector.broadcast %105 : vector<1x32xf32> to vector<16x32xf32>
    %107 = arith.addf %104, %106 : vector<16x32xf32>
    %108 = vector.extract_strided_slice %99 {offsets = [0, 64], sizes = [16, 32], strides = [1, 1]} : vector<16x96xf32> to vector<16x32xf32>
    %109 = vector.extract_strided_slice %97 {offsets = [2, 0], sizes = [1, 32], strides = [1, 1]} : vector<16x64xf32> to vector<1x32xf32>
    %110 = vector.broadcast %109 : vector<1x32xf32> to vector<16x32xf32>
    %111 = arith.addf %108, %110 : vector<16x32xf32>
    %cst_32 = arith.constant 0.000000e+00 : f32
    %112 = vector.broadcast %cst_32 : f32 to vector<16x32xf32>
    %113 = vector.broadcast %9 : vector<1x32xf32> to vector<16x32xf32>
    %114 = arith.mulf %103, %113 : vector<16x32xf32>
    %cst_33 = arith.constant dense<0.000000e+00> : vector<16x16xf32>
    %115 = tpu.matmul %114, %107, %cst_33 {dimension_numbers = #tpu.dot_dimension_numbers<[1], [1], [0], [0], [0, 0, 1, 0], [], []>} : vector<16x32xf32>, vector<16x32xf32>, vector<16x16xf32> -> vector<16x16xf32>
    %cst_34 = arith.constant 0.353553385 : f32
    %116 = vector.broadcast %cst_34 : f32 to vector<16x16xf32>
    %117 = arith.mulf %115, %116 : vector<16x16xf32>
    %118 = arith.addf %117, %87 : vector<16x16xf32>
    %cst_35 = arith.constant dense<0xFF800000> : vector<16xf32>
    %119 = vector.multi_reduction <maximumf>, %118, %cst_35 [1] : vector<16x16xf32> to vector<16xf32>
    %120 = vector.shape_cast %119 : vector<16xf32> to vector<16x1xf32>
    %121 = vector.broadcast %120 : vector<16x1xf32> to vector<16x16xf32>
    %122 = arith.subf %118, %121 : vector<16x16xf32>
    %123 = math.exp %122 : vector<16x16xf32>
    %cst_36 = arith.constant dense<0.000000e+00> : vector<16xf32>
    %124 = vector.multi_reduction <add>, %123, %cst_36 [1] : vector<16x16xf32> to vector<16xf32>
    %125 = vector.shape_cast %124 : vector<16xf32> to vector<16x1xf32>
    %126 = tpu.reciprocal %125 : vector<16x1xf32> -> vector<16x1xf32>
    %127 = vector.broadcast %126 : vector<16x1xf32> to vector<16x16xf32>
    %128 = arith.mulf %123, %127 : vector<16x16xf32>
    %129 = vector.broadcast %9 : vector<1x32xf32> to vector<16x32xf32>
    %130 = arith.mulf %111, %129 : vector<16x32xf32>
    %cst_37 = arith.constant dense<0.000000e+00> : vector<16x32xf32>
    %131 = tpu.matmul %128, %130, %cst_37 {dimension_numbers = #tpu.dot_dimension_numbers<[1], [0], [0], [1], [0, 0, 1, 1], [], []>} : vector<16x16xf32>, vector<16x32xf32>, vector<16x32xf32> -> vector<16x32xf32>
    %132 = arith.addf %112, %131 : vector<16x32xf32>
    %133 = vector.broadcast %16 : vector<1x32xf32> to vector<16x32xf32>
    %134 = arith.mulf %103, %133 : vector<16x32xf32>
    %cst_38 = arith.constant dense<0.000000e+00> : vector<16x16xf32>
    %135 = tpu.matmul %134, %107, %cst_38 {dimension_numbers = #tpu.dot_dimension_numbers<[1], [1], [0], [0], [0, 0, 1, 0], [], []>} : vector<16x32xf32>, vector<16x32xf32>, vector<16x16xf32> -> vector<16x16xf32>
    %cst_39 = arith.constant 0.353553385 : f32
    %136 = vector.broadcast %cst_39 : f32 to vector<16x16xf32>
    %137 = arith.mulf %135, %136 : vector<16x16xf32>
    %138 = arith.addf %137, %87 : vector<16x16xf32>
    %cst_40 = arith.constant dense<0xFF800000> : vector<16xf32>
    %139 = vector.multi_reduction <maximumf>, %138, %cst_40 [1] : vector<16x16xf32> to vector<16xf32>
    %140 = vector.shape_cast %139 : vector<16xf32> to vector<16x1xf32>
    %141 = vector.broadcast %140 : vector<16x1xf32> to vector<16x16xf32>
    %142 = arith.subf %138, %141 : vector<16x16xf32>
    %143 = math.exp %142 : vector<16x16xf32>
    %cst_41 = arith.constant dense<0.000000e+00> : vector<16xf32>
    %144 = vector.multi_reduction <add>, %143, %cst_41 [1] : vector<16x16xf32> to vector<16xf32>
    %145 = vector.shape_cast %144 : vector<16xf32> to vector<16x1xf32>
    %146 = tpu.reciprocal %145 : vector<16x1xf32> -> vector<16x1xf32>
    %147 = vector.broadcast %146 : vector<16x1xf32> to vector<16x16xf32>
    %148 = arith.mulf %143, %147 : vector<16x16xf32>
    %149 = vector.broadcast %16 : vector<1x32xf32> to vector<16x32xf32>
    %150 = arith.mulf %111, %149 : vector<16x32xf32>
    %cst_42 = arith.constant dense<0.000000e+00> : vector<16x32xf32>
    %151 = tpu.matmul %148, %150, %cst_42 {dimension_numbers = #tpu.dot_dimension_numbers<[1], [0], [0], [1], [0, 0, 1, 1], [], []>} : vector<16x16xf32>, vector<16x32xf32>, vector<16x32xf32> -> vector<16x32xf32>
    %152 = arith.addf %132, %151 : vector<16x32xf32>
    %153 = vector.broadcast %23 : vector<1x32xf32> to vector<16x32xf32>
    %154 = arith.mulf %103, %153 : vector<16x32xf32>
    %cst_43 = arith.constant dense<0.000000e+00> : vector<16x16xf32>
    %155 = tpu.matmul %154, %107, %cst_43 {dimension_numbers = #tpu.dot_dimension_numbers<[1], [1], [0], [0], [0, 0, 1, 0], [], []>} : vector<16x32xf32>, vector<16x32xf32>, vector<16x16xf32> -> vector<16x16xf32>
    %cst_44 = arith.constant 0.353553385 : f32
    %156 = vector.broadcast %cst_44 : f32 to vector<16x16xf32>
    %157 = arith.mulf %155, %156 : vector<16x16xf32>
    %158 = arith.addf %157, %87 : vector<16x16xf32>
    %cst_45 = arith.constant dense<0xFF800000> : vector<16xf32>
    %159 = vector.multi_reduction <maximumf>, %158, %cst_45 [1] : vector<16x16xf32> to vector<16xf32>
    %160 = vector.shape_cast %159 : vector<16xf32> to vector<16x1xf32>
    %161 = vector.broadcast %160 : vector<16x1xf32> to vector<16x16xf32>
    %162 = arith.subf %158, %161 : vector<16x16xf32>
    %163 = math.exp %162 : vector<16x16xf32>
    %cst_46 = arith.constant dense<0.000000e+00> : vector<16xf32>
    %164 = vector.multi_reduction <add>, %163, %cst_46 [1] : vector<16x16xf32> to vector<16xf32>
    %165 = vector.shape_cast %164 : vector<16xf32> to vector<16x1xf32>
    %166 = tpu.reciprocal %165 : vector<16x1xf32> -> vector<16x1xf32>
    %167 = vector.broadcast %166 : vector<16x1xf32> to vector<16x16xf32>
    %168 = arith.mulf %163, %167 : vector<16x16xf32>
    %169 = vector.broadcast %23 : vector<1x32xf32> to vector<16x32xf32>
    %170 = arith.mulf %111, %169 : vector<16x32xf32>
    %cst_47 = arith.constant dense<0.000000e+00> : vector<16x32xf32>
    %171 = tpu.matmul %168, %170, %cst_47 {dimension_numbers = #tpu.dot_dimension_numbers<[1], [0], [0], [1], [0, 0, 1, 1], [], []>} : vector<16x16xf32>, vector<16x32xf32>, vector<16x32xf32> -> vector<16x32xf32>
    %172 = arith.addf %152, %171 : vector<16x32xf32>
    %173 = vector.broadcast %30 : vector<1x32xf32> to vector<16x32xf32>
    %174 = arith.mulf %103, %173 : vector<16x32xf32>
    %cst_48 = arith.constant dense<0.000000e+00> : vector<16x16xf32>
    %175 = tpu.matmul %174, %107, %cst_48 {dimension_numbers = #tpu.dot_dimension_numbers<[1], [1], [0], [0], [0, 0, 1, 0], [], []>} : vector<16x32xf32>, vector<16x32xf32>, vector<16x16xf32> -> vector<16x16xf32>
    %cst_49 = arith.constant 0.353553385 : f32
    %176 = vector.broadcast %cst_49 : f32 to vector<16x16xf32>
    %177 = arith.mulf %175, %176 : vector<16x16xf32>
    %178 = arith.addf %177, %87 : vector<16x16xf32>
    %cst_50 = arith.constant dense<0xFF800000> : vector<16xf32>
    %179 = vector.multi_reduction <maximumf>, %178, %cst_50 [1] : vector<16x16xf32> to vector<16xf32>
    %180 = vector.shape_cast %179 : vector<16xf32> to vector<16x1xf32>
    %181 = vector.broadcast %180 : vector<16x1xf32> to vector<16x16xf32>
    %182 = arith.subf %178, %181 : vector<16x16xf32>
    %183 = math.exp %182 : vector<16x16xf32>
    %cst_51 = arith.constant dense<0.000000e+00> : vector<16xf32>
    %184 = vector.multi_reduction <add>, %183, %cst_51 [1] : vector<16x16xf32> to vector<16xf32>
    %185 = vector.shape_cast %184 : vector<16xf32> to vector<16x1xf32>
    %186 = tpu.reciprocal %185 : vector<16x1xf32> -> vector<16x1xf32>
    %187 = vector.broadcast %186 : vector<16x1xf32> to vector<16x16xf32>
    %188 = arith.mulf %183, %187 : vector<16x16xf32>
    %189 = vector.broadcast %30 : vector<1x32xf32> to vector<16x32xf32>
    %190 = arith.mulf %111, %189 : vector<16x32xf32>
    %cst_52 = arith.constant dense<0.000000e+00> : vector<16x32xf32>
    %191 = tpu.matmul %188, %190, %cst_52 {dimension_numbers = #tpu.dot_dimension_numbers<[1], [0], [0], [1], [0, 0, 1, 1], [], []>} : vector<16x16xf32>, vector<16x32xf32>, vector<16x32xf32> -> vector<16x32xf32>
    %192 = arith.addf %172, %191 : vector<16x32xf32>
    %193 = vector.extract_strided_slice %95 {offsets = [0, 96], sizes = [32, 32], strides = [1, 1]} : vector<32x384xf32> to vector<32x32xf32>
    %cst_53 = arith.constant dense<0.000000e+00> : vector<16x32xf32>
    %194 = tpu.matmul %192, %193, %cst_53 {dimension_numbers = #tpu.dot_dimension_numbers<[1], [0], [0], [1], [0, 0, 1, 1], [], []>} : vector<16x32xf32>, vector<32x32xf32>, vector<16x32xf32> -> vector<16x32xf32>
    %195 = vector.extract_strided_slice %97 {offsets = [3, 0], sizes = [1, 32], strides = [1, 1]} : vector<16x64xf32> to vector<1x32xf32>
    %196 = vector.broadcast %195 : vector<1x32xf32> to vector<16x32xf32>
    %197 = arith.addf %194, %196 : vector<16x32xf32>
    %198 = arith.addf %0, %197 : vector<16x32xf32>
    %199 = vector.extract_strided_slice %97 {offsets = [10, 0], sizes = [1, 32], strides = [1, 1]} : vector<16x64xf32> to vector<1x32xf32>
    %200 = vector.extract_strided_slice %97 {offsets = [11, 0], sizes = [1, 32], strides = [1, 1]} : vector<16x64xf32> to vector<1x32xf32>
    %cst_54 = arith.constant dense<0.000000e+00> : vector<16xf32>
    %201 = vector.multi_reduction <add>, %198, %cst_54 [1] : vector<16x32xf32> to vector<16xf32>
    %202 = vector.shape_cast %201 : vector<16xf32> to vector<16x1xf32>
    %cst_55 = arith.constant 3.200000e+01 : f32
    %203 = vector.broadcast %cst_55 : f32 to vector<16x1xf32>
    %204 = arith.divf %202, %203 : vector<16x1xf32>
    %205 = vector.broadcast %204 : vector<16x1xf32> to vector<16x32xf32>
    %206 = arith.subf %198, %205 : vector<16x32xf32>
    %207 = arith.mulf %206, %206 : vector<16x32xf32>
    %cst_56 = arith.constant dense<0.000000e+00> : vector<16xf32>
    %208 = vector.multi_reduction <add>, %207, %cst_56 [1] : vector<16x32xf32> to vector<16xf32>
    %209 = vector.shape_cast %208 : vector<16xf32> to vector<16x1xf32>
    %cst_57 = arith.constant 3.200000e+01 : f32
    %210 = vector.broadcast %cst_57 : f32 to vector<16x1xf32>
    %211 = arith.divf %209, %210 : vector<16x1xf32>
    %212 = vector.broadcast %204 : vector<16x1xf32> to vector<16x32xf32>
    %213 = arith.subf %198, %212 : vector<16x32xf32>
    %cst_58 = arith.constant 9.99999974E-6 : f32
    %214 = vector.broadcast %cst_58 : f32 to vector<16x1xf32>
    %215 = arith.addf %211, %214 : vector<16x1xf32>
    %216 = math.rsqrt %215 : vector<16x1xf32>
    %217 = vector.broadcast %216 : vector<16x1xf32> to vector<16x32xf32>
    %218 = arith.mulf %213, %217 : vector<16x32xf32>
    %219 = vector.broadcast %199 : vector<1x32xf32> to vector<16x32xf32>
    %220 = arith.mulf %218, %219 : vector<16x32xf32>
    %221 = vector.broadcast %200 : vector<1x32xf32> to vector<16x32xf32>
    %222 = arith.addf %220, %221 : vector<16x32xf32>
    %223 = vector.extract_strided_slice %95 {offsets = [0, 128], sizes = [32, 32], strides = [1, 1]} : vector<32x384xf32> to vector<32x32xf32>
    %cst_59 = arith.constant dense<0.000000e+00> : vector<16x32xf32>
    %224 = tpu.matmul %222, %223, %cst_59 {dimension_numbers = #tpu.dot_dimension_numbers<[1], [0], [0], [1], [0, 0, 1, 1], [], []>} : vector<16x32xf32>, vector<32x32xf32>, vector<16x32xf32> -> vector<16x32xf32>
    %225 = vector.extract_strided_slice %97 {offsets = [4, 0], sizes = [1, 32], strides = [1, 1]} : vector<16x64xf32> to vector<1x32xf32>
    %226 = vector.broadcast %225 : vector<1x32xf32> to vector<16x32xf32>
    %227 = arith.addf %224, %226 : vector<16x32xf32>
    %228 = vector.extract_strided_slice %95 {offsets = [0, 160], sizes = [32, 64], strides = [1, 1]} : vector<32x384xf32> to vector<32x64xf32>
    %cst_60 = arith.constant dense<0.000000e+00> : vector<16x64xf32>
    %229 = tpu.matmul %1, %228, %cst_60 {dimension_numbers = #tpu.dot_dimension_numbers<[1], [0], [0], [1], [0, 0, 1, 1], [], []>} : vector<16x32xf32>, vector<32x64xf32>, vector<16x64xf32> -> vector<16x64xf32>
    %230 = vector.extract_strided_slice %229 {offsets = [0, 0], sizes = [16, 32], strides = [1, 1]} : vector<16x64xf32> to vector<16x32xf32>
    %231 = vector.extract_strided_slice %97 {offsets = [5, 0], sizes = [1, 32], strides = [1, 1]} : vector<16x64xf32> to vector<1x32xf32>
    %232 = vector.broadcast %231 : vector<1x32xf32> to vector<16x32xf32>
    %233 = arith.addf %230, %232 : vector<16x32xf32>
    %234 = vector.extract_strided_slice %229 {offsets = [0, 32], sizes = [16, 32], strides = [1, 1]} : vector<16x64xf32> to vector<16x32xf32>
    %235 = vector.extract_strided_slice %97 {offsets = [6, 0], sizes = [1, 32], strides = [1, 1]} : vector<16x64xf32> to vector<1x32xf32>
    %236 = vector.broadcast %235 : vector<1x32xf32> to vector<16x32xf32>
    %237 = arith.addf %234, %236 : vector<16x32xf32>
    %cst_61 = arith.constant 0.000000e+00 : f32
    %238 = vector.broadcast %cst_61 : f32 to vector<16x32xf32>
    %239 = vector.broadcast %9 : vector<1x32xf32> to vector<16x32xf32>
    %240 = arith.mulf %227, %239 : vector<16x32xf32>
    %cst_62 = arith.constant dense<0.000000e+00> : vector<16x16xf32>
    %241 = tpu.matmul %240, %233, %cst_62 {dimension_numbers = #tpu.dot_dimension_numbers<[1], [1], [0], [0], [0, 0, 1, 0], [], []>} : vector<16x32xf32>, vector<16x32xf32>, vector<16x16xf32> -> vector<16x16xf32>
    %cst_63 = arith.constant 0.353553385 : f32
    %242 = vector.broadcast %cst_63 : f32 to vector<16x16xf32>
    %243 = arith.mulf %241, %242 : vector<16x16xf32>
    %244 = arith.addf %243, %93 : vector<16x16xf32>
    %cst_64 = arith.constant dense<0xFF800000> : vector<16xf32>
    %245 = vector.multi_reduction <maximumf>, %244, %cst_64 [1] : vector<16x16xf32> to vector<16xf32>
    %246 = vector.shape_cast %245 : vector<16xf32> to vector<16x1xf32>
    %247 = vector.broadcast %246 : vector<16x1xf32> to vector<16x16xf32>
    %248 = arith.subf %244, %247 : vector<16x16xf32>
    %249 = math.exp %248 : vector<16x16xf32>
    %cst_65 = arith.constant dense<0.000000e+00> : vector<16xf32>
    %250 = vector.multi_reduction <add>, %249, %cst_65 [1] : vector<16x16xf32> to vector<16xf32>
    %251 = vector.shape_cast %250 : vector<16xf32> to vector<16x1xf32>
    %252 = tpu.reciprocal %251 : vector<16x1xf32> -> vector<16x1xf32>
    %253 = vector.broadcast %252 : vector<16x1xf32> to vector<16x16xf32>
    %254 = arith.mulf %249, %253 : vector<16x16xf32>
    %255 = vector.broadcast %9 : vector<1x32xf32> to vector<16x32xf32>
    %256 = arith.mulf %237, %255 : vector<16x32xf32>
    %cst_66 = arith.constant dense<0.000000e+00> : vector<16x32xf32>
    %257 = tpu.matmul %254, %256, %cst_66 {dimension_numbers = #tpu.dot_dimension_numbers<[1], [0], [0], [1], [0, 0, 1, 1], [], []>} : vector<16x16xf32>, vector<16x32xf32>, vector<16x32xf32> -> vector<16x32xf32>
    %258 = arith.addf %238, %257 : vector<16x32xf32>
    %259 = vector.broadcast %16 : vector<1x32xf32> to vector<16x32xf32>
    %260 = arith.mulf %227, %259 : vector<16x32xf32>
    %cst_67 = arith.constant dense<0.000000e+00> : vector<16x16xf32>
    %261 = tpu.matmul %260, %233, %cst_67 {dimension_numbers = #tpu.dot_dimension_numbers<[1], [1], [0], [0], [0, 0, 1, 0], [], []>} : vector<16x32xf32>, vector<16x32xf32>, vector<16x16xf32> -> vector<16x16xf32>
    %cst_68 = arith.constant 0.353553385 : f32
    %262 = vector.broadcast %cst_68 : f32 to vector<16x16xf32>
    %263 = arith.mulf %261, %262 : vector<16x16xf32>
    %264 = arith.addf %263, %93 : vector<16x16xf32>
    %cst_69 = arith.constant dense<0xFF800000> : vector<16xf32>
    %265 = vector.multi_reduction <maximumf>, %264, %cst_69 [1] : vector<16x16xf32> to vector<16xf32>
    %266 = vector.shape_cast %265 : vector<16xf32> to vector<16x1xf32>
    %267 = vector.broadcast %266 : vector<16x1xf32> to vector<16x16xf32>
    %268 = arith.subf %264, %267 : vector<16x16xf32>
    %269 = math.exp %268 : vector<16x16xf32>
    %cst_70 = arith.constant dense<0.000000e+00> : vector<16xf32>
    %270 = vector.multi_reduction <add>, %269, %cst_70 [1] : vector<16x16xf32> to vector<16xf32>
    %271 = vector.shape_cast %270 : vector<16xf32> to vector<16x1xf32>
    %272 = tpu.reciprocal %271 : vector<16x1xf32> -> vector<16x1xf32>
    %273 = vector.broadcast %272 : vector<16x1xf32> to vector<16x16xf32>
    %274 = arith.mulf %269, %273 : vector<16x16xf32>
    %275 = vector.broadcast %16 : vector<1x32xf32> to vector<16x32xf32>
    %276 = arith.mulf %237, %275 : vector<16x32xf32>
    %cst_71 = arith.constant dense<0.000000e+00> : vector<16x32xf32>
    %277 = tpu.matmul %274, %276, %cst_71 {dimension_numbers = #tpu.dot_dimension_numbers<[1], [0], [0], [1], [0, 0, 1, 1], [], []>} : vector<16x16xf32>, vector<16x32xf32>, vector<16x32xf32> -> vector<16x32xf32>
    %278 = arith.addf %258, %277 : vector<16x32xf32>
    %279 = vector.broadcast %23 : vector<1x32xf32> to vector<16x32xf32>
    %280 = arith.mulf %227, %279 : vector<16x32xf32>
    %cst_72 = arith.constant dense<0.000000e+00> : vector<16x16xf32>
    %281 = tpu.matmul %280, %233, %cst_72 {dimension_numbers = #tpu.dot_dimension_numbers<[1], [1], [0], [0], [0, 0, 1, 0], [], []>} : vector<16x32xf32>, vector<16x32xf32>, vector<16x16xf32> -> vector<16x16xf32>
    %cst_73 = arith.constant 0.353553385 : f32
    %282 = vector.broadcast %cst_73 : f32 to vector<16x16xf32>
    %283 = arith.mulf %281, %282 : vector<16x16xf32>
    %284 = arith.addf %283, %93 : vector<16x16xf32>
    %cst_74 = arith.constant dense<0xFF800000> : vector<16xf32>
    %285 = vector.multi_reduction <maximumf>, %284, %cst_74 [1] : vector<16x16xf32> to vector<16xf32>
    %286 = vector.shape_cast %285 : vector<16xf32> to vector<16x1xf32>
    %287 = vector.broadcast %286 : vector<16x1xf32> to vector<16x16xf32>
    %288 = arith.subf %284, %287 : vector<16x16xf32>
    %289 = math.exp %288 : vector<16x16xf32>
    %cst_75 = arith.constant dense<0.000000e+00> : vector<16xf32>
    %290 = vector.multi_reduction <add>, %289, %cst_75 [1] : vector<16x16xf32> to vector<16xf32>
    %291 = vector.shape_cast %290 : vector<16xf32> to vector<16x1xf32>
    %292 = tpu.reciprocal %291 : vector<16x1xf32> -> vector<16x1xf32>
    %293 = vector.broadcast %292 : vector<16x1xf32> to vector<16x16xf32>
    %294 = arith.mulf %289, %293 : vector<16x16xf32>
    %295 = vector.broadcast %23 : vector<1x32xf32> to vector<16x32xf32>
    %296 = arith.mulf %237, %295 : vector<16x32xf32>
    %cst_76 = arith.constant dense<0.000000e+00> : vector<16x32xf32>
    %297 = tpu.matmul %294, %296, %cst_76 {dimension_numbers = #tpu.dot_dimension_numbers<[1], [0], [0], [1], [0, 0, 1, 1], [], []>} : vector<16x16xf32>, vector<16x32xf32>, vector<16x32xf32> -> vector<16x32xf32>
    %298 = arith.addf %278, %297 : vector<16x32xf32>
    %299 = vector.broadcast %30 : vector<1x32xf32> to vector<16x32xf32>
    %300 = arith.mulf %227, %299 : vector<16x32xf32>
    %cst_77 = arith.constant dense<0.000000e+00> : vector<16x16xf32>
    %301 = tpu.matmul %300, %233, %cst_77 {dimension_numbers = #tpu.dot_dimension_numbers<[1], [1], [0], [0], [0, 0, 1, 0], [], []>} : vector<16x32xf32>, vector<16x32xf32>, vector<16x16xf32> -> vector<16x16xf32>
    %cst_78 = arith.constant 0.353553385 : f32
    %302 = vector.broadcast %cst_78 : f32 to vector<16x16xf32>
    %303 = arith.mulf %301, %302 : vector<16x16xf32>
    %304 = arith.addf %303, %93 : vector<16x16xf32>
    %cst_79 = arith.constant dense<0xFF800000> : vector<16xf32>
    %305 = vector.multi_reduction <maximumf>, %304, %cst_79 [1] : vector<16x16xf32> to vector<16xf32>
    %306 = vector.shape_cast %305 : vector<16xf32> to vector<16x1xf32>
    %307 = vector.broadcast %306 : vector<16x1xf32> to vector<16x16xf32>
    %308 = arith.subf %304, %307 : vector<16x16xf32>
    %309 = math.exp %308 : vector<16x16xf32>
    %cst_80 = arith.constant dense<0.000000e+00> : vector<16xf32>
    %310 = vector.multi_reduction <add>, %309, %cst_80 [1] : vector<16x16xf32> to vector<16xf32>
    %311 = vector.shape_cast %310 : vector<16xf32> to vector<16x1xf32>
    %312 = tpu.reciprocal %311 : vector<16x1xf32> -> vector<16x1xf32>
    %313 = vector.broadcast %312 : vector<16x1xf32> to vector<16x16xf32>
    %314 = arith.mulf %309, %313 : vector<16x16xf32>
    %315 = vector.broadcast %30 : vector<1x32xf32> to vector<16x32xf32>
    %316 = arith.mulf %237, %315 : vector<16x32xf32>
    %cst_81 = arith.constant dense<0.000000e+00> : vector<16x32xf32>
    %317 = tpu.matmul %314, %316, %cst_81 {dimension_numbers = #tpu.dot_dimension_numbers<[1], [0], [0], [1], [0, 0, 1, 1], [], []>} : vector<16x16xf32>, vector<16x32xf32>, vector<16x32xf32> -> vector<16x32xf32>
    %318 = arith.addf %298, %317 : vector<16x32xf32>
    %319 = vector.extract_strided_slice %95 {offsets = [0, 224], sizes = [32, 32], strides = [1, 1]} : vector<32x384xf32> to vector<32x32xf32>
    %cst_82 = arith.constant dense<0.000000e+00> : vector<16x32xf32>
    %320 = tpu.matmul %318, %319, %cst_82 {dimension_numbers = #tpu.dot_dimension_numbers<[1], [0], [0], [1], [0, 0, 1, 1], [], []>} : vector<16x32xf32>, vector<32x32xf32>, vector<16x32xf32> -> vector<16x32xf32>
    %321 = vector.extract_strided_slice %97 {offsets = [7, 0], sizes = [1, 32], strides = [1, 1]} : vector<16x64xf32> to vector<1x32xf32>
    %322 = vector.broadcast %321 : vector<1x32xf32> to vector<16x32xf32>
    %323 = arith.addf %320, %322 : vector<16x32xf32>
    %324 = arith.addf %222, %323 : vector<16x32xf32>
    %325 = vector.extract_strided_slice %97 {offsets = [12, 0], sizes = [1, 32], strides = [1, 1]} : vector<16x64xf32> to vector<1x32xf32>
    %326 = vector.extract_strided_slice %97 {offsets = [13, 0], sizes = [1, 32], strides = [1, 1]} : vector<16x64xf32> to vector<1x32xf32>
    %cst_83 = arith.constant dense<0.000000e+00> : vector<16xf32>
    %327 = vector.multi_reduction <add>, %324, %cst_83 [1] : vector<16x32xf32> to vector<16xf32>
    %328 = vector.shape_cast %327 : vector<16xf32> to vector<16x1xf32>
    %cst_84 = arith.constant 3.200000e+01 : f32
    %329 = vector.broadcast %cst_84 : f32 to vector<16x1xf32>
    %330 = arith.divf %328, %329 : vector<16x1xf32>
    %331 = vector.broadcast %330 : vector<16x1xf32> to vector<16x32xf32>
    %332 = arith.subf %324, %331 : vector<16x32xf32>
    %333 = arith.mulf %332, %332 : vector<16x32xf32>
    %cst_85 = arith.constant dense<0.000000e+00> : vector<16xf32>
    %334 = vector.multi_reduction <add>, %333, %cst_85 [1] : vector<16x32xf32> to vector<16xf32>
    %335 = vector.shape_cast %334 : vector<16xf32> to vector<16x1xf32>
    %cst_86 = arith.constant 3.200000e+01 : f32
    %336 = vector.broadcast %cst_86 : f32 to vector<16x1xf32>
    %337 = arith.divf %335, %336 : vector<16x1xf32>
    %338 = vector.broadcast %330 : vector<16x1xf32> to vector<16x32xf32>
    %339 = arith.subf %324, %338 : vector<16x32xf32>
    %cst_87 = arith.constant 9.99999974E-6 : f32
    %340 = vector.broadcast %cst_87 : f32 to vector<16x1xf32>
    %341 = arith.addf %337, %340 : vector<16x1xf32>
    %342 = math.rsqrt %341 : vector<16x1xf32>
    %343 = vector.broadcast %342 : vector<16x1xf32> to vector<16x32xf32>
    %344 = arith.mulf %339, %343 : vector<16x32xf32>
    %345 = vector.broadcast %325 : vector<1x32xf32> to vector<16x32xf32>
    %346 = arith.mulf %344, %345 : vector<16x32xf32>
    %347 = vector.broadcast %326 : vector<1x32xf32> to vector<16x32xf32>
    %348 = arith.addf %346, %347 : vector<16x32xf32>
    %349 = vector.extract_strided_slice %95 {offsets = [0, 256], sizes = [32, 64], strides = [1, 1]} : vector<32x384xf32> to vector<32x64xf32>
    %cst_88 = arith.constant dense<0.000000e+00> : vector<16x64xf32>
    %350 = tpu.matmul %348, %349, %cst_88 {dimension_numbers = #tpu.dot_dimension_numbers<[1], [0], [0], [1], [0, 0, 1, 1], [], []>} : vector<16x32xf32>, vector<32x64xf32>, vector<16x64xf32> -> vector<16x64xf32>
    %351 = vector.extract_strided_slice %97 {offsets = [8, 0], sizes = [1, 64], strides = [1, 1]} : vector<16x64xf32> to vector<1x64xf32>
    %352 = vector.broadcast %351 : vector<1x64xf32> to vector<16x64xf32>
    %353 = arith.addf %350, %352 : vector<16x64xf32>
    %cst_89 = arith.constant 0.000000e+00 : f32
    %354 = vector.broadcast %cst_89 : f32 to vector<16x64xf32>
    %355 = arith.maximumf %353, %354 : vector<16x64xf32>
    %356 = vector.extract_strided_slice %95 {offsets = [0, 320], sizes = [32, 64], strides = [1, 1]} : vector<32x384xf32> to vector<32x64xf32>
    %cst_90 = arith.constant dense<0.000000e+00> : vector<16x32xf32>
    %357 = tpu.matmul %355, %356, %cst_90 {dimension_numbers = #tpu.dot_dimension_numbers<[1], [1], [0], [0], [0, 0, 1, 0], [], []>} : vector<16x64xf32>, vector<32x64xf32>, vector<16x32xf32> -> vector<16x32xf32>
    %358 = vector.extract_strided_slice %97 {offsets = [9, 0], sizes = [1, 32], strides = [1, 1]} : vector<16x64xf32> to vector<1x32xf32>
    %359 = vector.broadcast %358 : vector<1x32xf32> to vector<16x32xf32>
    %360 = arith.addf %357, %359 : vector<16x32xf32>
    %361 = arith.addf %348, %360 : vector<16x32xf32>
    %362 = vector.extract_strided_slice %97 {offsets = [14, 0], sizes = [1, 32], strides = [1, 1]} : vector<16x64xf32> to vector<1x32xf32>
    %363 = vector.extract_strided_slice %97 {offsets = [15, 0], sizes = [1, 32], strides = [1, 1]} : vector<16x64xf32> to vector<1x32xf32>
    %cst_91 = arith.constant dense<0.000000e+00> : vector<16xf32>
    %364 = vector.multi_reduction <add>, %361, %cst_91 [1] : vector<16x32xf32> to vector<16xf32>
    %365 = vector.shape_cast %364 : vector<16xf32> to vector<16x1xf32>
    %cst_92 = arith.constant 3.200000e+01 : f32
    %366 = vector.broadcast %cst_92 : f32 to vector<16x1xf32>
    %367 = arith.divf %365, %366 : vector<16x1xf32>
    %368 = vector.broadcast %367 : vector<16x1xf32> to vector<16x32xf32>
    %369 = arith.subf %361, %368 : vector<16x32xf32>
    %370 = arith.mulf %369, %369 : vector<16x32xf32>
    %cst_93 = arith.constant dense<0.000000e+00> : vector<16xf32>
    %371 = vector.multi_reduction <add>, %370, %cst_93 [1] : vector<16x32xf32> to vector<16xf32>
    %372 = vector.shape_cast %371 : vector<16xf32> to vector<16x1xf32>
    %cst_94 = arith.constant 3.200000e+01 : f32
    %373 = vector.broadcast %cst_94 : f32 to vector<16x1xf32>
    %374 = arith.divf %372, %373 : vector<16x1xf32>
    %375 = vector.broadcast %367 : vector<16x1xf32> to vector<16x32xf32>
    %376 = arith.subf %361, %375 : vector<16x32xf32>
    %cst_95 = arith.constant 9.99999974E-6 : f32
    %377 = vector.broadcast %cst_95 : f32 to vector<16x1xf32>
    %378 = arith.addf %374, %377 : vector<16x1xf32>
    %379 = math.rsqrt %378 : vector<16x1xf32>
    %380 = vector.broadcast %379 : vector<16x1xf32> to vector<16x32xf32>
    %381 = arith.mulf %376, %380 : vector<16x32xf32>
    %382 = vector.broadcast %362 : vector<1x32xf32> to vector<16x32xf32>
    %383 = arith.mulf %381, %382 : vector<16x32xf32>
    %384 = vector.broadcast %363 : vector<1x32xf32> to vector<16x32xf32>
    %385 = arith.addf %383, %384 : vector<16x32xf32>
    %c1 = arith.constant 1 : index
    %c0_96 = arith.constant 0 : index
    %c0_97 = arith.constant 0 : index
    %386 = vector.load %arg2[%c1, %c0_96, %c0_97] : memref<2x32x384xf32, #tpu.memory_space<vmem>>, vector<1x32x384xf32>
    %387 = vector.shape_cast %386 : vector<1x32x384xf32> to vector<32x384xf32>
    %c1_98 = arith.constant 1 : index
    %c0_99 = arith.constant 0 : index
    %c0_100 = arith.constant 0 : index
    %388 = vector.load %arg3[%c1_98, %c0_99, %c0_100] : memref<2x16x64xf32, #tpu.memory_space<vmem>>, vector<1x16x64xf32>
    %389 = vector.shape_cast %388 : vector<1x16x64xf32> to vector<16x64xf32>
    %390 = vector.extract_strided_slice %387 {offsets = [0, 0], sizes = [32, 96], strides = [1, 1]} : vector<32x384xf32> to vector<32x96xf32>
    %cst_101 = arith.constant dense<0.000000e+00> : vector<16x96xf32>
    %391 = tpu.matmul %385, %390, %cst_101 {dimension_numbers = #tpu.dot_dimension_numbers<[1], [0], [0], [1], [0, 0, 1, 1], [], []>} : vector<16x32xf32>, vector<32x96xf32>, vector<16x96xf32> -> vector<16x96xf32>
    %392 = vector.extract_strided_slice %391 {offsets = [0, 0], sizes = [16, 32], strides = [1, 1]} : vector<16x96xf32> to vector<16x32xf32>
    %393 = vector.extract_strided_slice %389 {offsets = [0, 0], sizes = [1, 32], strides = [1, 1]} : vector<16x64xf32> to vector<1x32xf32>
    %394 = vector.broadcast %393 : vector<1x32xf32> to vector<16x32xf32>
    %395 = arith.addf %392, %394 : vector<16x32xf32>
    %396 = vector.extract_strided_slice %391 {offsets = [0, 32], sizes = [16, 32], strides = [1, 1]} : vector<16x96xf32> to vector<16x32xf32>
    %397 = vector.extract_strided_slice %389 {offsets = [1, 0], sizes = [1, 32], strides = [1, 1]} : vector<16x64xf32> to vector<1x32xf32>
    %398 = vector.broadcast %397 : vector<1x32xf32> to vector<16x32xf32>
    %399 = arith.addf %396, %398 : vector<16x32xf32>
    %400 = vector.extract_strided_slice %391 {offsets = [0, 64], sizes = [16, 32], strides = [1, 1]} : vector<16x96xf32> to vector<16x32xf32>
    %401 = vector.extract_strided_slice %389 {offsets = [2, 0], sizes = [1, 32], strides = [1, 1]} : vector<16x64xf32> to vector<1x32xf32>
    %402 = vector.broadcast %401 : vector<1x32xf32> to vector<16x32xf32>
    %403 = arith.addf %400, %402 : vector<16x32xf32>
    %cst_102 = arith.constant 0.000000e+00 : f32
    %404 = vector.broadcast %cst_102 : f32 to vector<16x32xf32>
    %405 = vector.broadcast %9 : vector<1x32xf32> to vector<16x32xf32>
    %406 = arith.mulf %395, %405 : vector<16x32xf32>
    %cst_103 = arith.constant dense<0.000000e+00> : vector<16x16xf32>
    %407 = tpu.matmul %406, %399, %cst_103 {dimension_numbers = #tpu.dot_dimension_numbers<[1], [1], [0], [0], [0, 0, 1, 0], [], []>} : vector<16x32xf32>, vector<16x32xf32>, vector<16x16xf32> -> vector<16x16xf32>
    %cst_104 = arith.constant 0.353553385 : f32
    %408 = vector.broadcast %cst_104 : f32 to vector<16x16xf32>
    %409 = arith.mulf %407, %408 : vector<16x16xf32>
    %410 = arith.addf %409, %87 : vector<16x16xf32>
    %cst_105 = arith.constant dense<0xFF800000> : vector<16xf32>
    %411 = vector.multi_reduction <maximumf>, %410, %cst_105 [1] : vector<16x16xf32> to vector<16xf32>
    %412 = vector.shape_cast %411 : vector<16xf32> to vector<16x1xf32>
    %413 = vector.broadcast %412 : vector<16x1xf32> to vector<16x16xf32>
    %414 = arith.subf %410, %413 : vector<16x16xf32>
    %415 = math.exp %414 : vector<16x16xf32>
    %cst_106 = arith.constant dense<0.000000e+00> : vector<16xf32>
    %416 = vector.multi_reduction <add>, %415, %cst_106 [1] : vector<16x16xf32> to vector<16xf32>
    %417 = vector.shape_cast %416 : vector<16xf32> to vector<16x1xf32>
    %418 = tpu.reciprocal %417 : vector<16x1xf32> -> vector<16x1xf32>
    %419 = vector.broadcast %418 : vector<16x1xf32> to vector<16x16xf32>
    %420 = arith.mulf %415, %419 : vector<16x16xf32>
    %421 = vector.broadcast %9 : vector<1x32xf32> to vector<16x32xf32>
    %422 = arith.mulf %403, %421 : vector<16x32xf32>
    %cst_107 = arith.constant dense<0.000000e+00> : vector<16x32xf32>
    %423 = tpu.matmul %420, %422, %cst_107 {dimension_numbers = #tpu.dot_dimension_numbers<[1], [0], [0], [1], [0, 0, 1, 1], [], []>} : vector<16x16xf32>, vector<16x32xf32>, vector<16x32xf32> -> vector<16x32xf32>
    %424 = arith.addf %404, %423 : vector<16x32xf32>
    %425 = vector.broadcast %16 : vector<1x32xf32> to vector<16x32xf32>
    %426 = arith.mulf %395, %425 : vector<16x32xf32>
    %cst_108 = arith.constant dense<0.000000e+00> : vector<16x16xf32>
    %427 = tpu.matmul %426, %399, %cst_108 {dimension_numbers = #tpu.dot_dimension_numbers<[1], [1], [0], [0], [0, 0, 1, 0], [], []>} : vector<16x32xf32>, vector<16x32xf32>, vector<16x16xf32> -> vector<16x16xf32>
    %cst_109 = arith.constant 0.353553385 : f32
    %428 = vector.broadcast %cst_109 : f32 to vector<16x16xf32>
    %429 = arith.mulf %427, %428 : vector<16x16xf32>
    %430 = arith.addf %429, %87 : vector<16x16xf32>
    %cst_110 = arith.constant dense<0xFF800000> : vector<16xf32>
    %431 = vector.multi_reduction <maximumf>, %430, %cst_110 [1] : vector<16x16xf32> to vector<16xf32>
    %432 = vector.shape_cast %431 : vector<16xf32> to vector<16x1xf32>
    %433 = vector.broadcast %432 : vector<16x1xf32> to vector<16x16xf32>
    %434 = arith.subf %430, %433 : vector<16x16xf32>
    %435 = math.exp %434 : vector<16x16xf32>
    %cst_111 = arith.constant dense<0.000000e+00> : vector<16xf32>
    %436 = vector.multi_reduction <add>, %435, %cst_111 [1] : vector<16x16xf32> to vector<16xf32>
    %437 = vector.shape_cast %436 : vector<16xf32> to vector<16x1xf32>
    %438 = tpu.reciprocal %437 : vector<16x1xf32> -> vector<16x1xf32>
    %439 = vector.broadcast %438 : vector<16x1xf32> to vector<16x16xf32>
    %440 = arith.mulf %435, %439 : vector<16x16xf32>
    %441 = vector.broadcast %16 : vector<1x32xf32> to vector<16x32xf32>
    %442 = arith.mulf %403, %441 : vector<16x32xf32>
    %cst_112 = arith.constant dense<0.000000e+00> : vector<16x32xf32>
    %443 = tpu.matmul %440, %442, %cst_112 {dimension_numbers = #tpu.dot_dimension_numbers<[1], [0], [0], [1], [0, 0, 1, 1], [], []>} : vector<16x16xf32>, vector<16x32xf32>, vector<16x32xf32> -> vector<16x32xf32>
    %444 = arith.addf %424, %443 : vector<16x32xf32>
    %445 = vector.broadcast %23 : vector<1x32xf32> to vector<16x32xf32>
    %446 = arith.mulf %395, %445 : vector<16x32xf32>
    %cst_113 = arith.constant dense<0.000000e+00> : vector<16x16xf32>
    %447 = tpu.matmul %446, %399, %cst_113 {dimension_numbers = #tpu.dot_dimension_numbers<[1], [1], [0], [0], [0, 0, 1, 0], [], []>} : vector<16x32xf32>, vector<16x32xf32>, vector<16x16xf32> -> vector<16x16xf32>
    %cst_114 = arith.constant 0.353553385 : f32
    %448 = vector.broadcast %cst_114 : f32 to vector<16x16xf32>
    %449 = arith.mulf %447, %448 : vector<16x16xf32>
    %450 = arith.addf %449, %87 : vector<16x16xf32>
    %cst_115 = arith.constant dense<0xFF800000> : vector<16xf32>
    %451 = vector.multi_reduction <maximumf>, %450, %cst_115 [1] : vector<16x16xf32> to vector<16xf32>
    %452 = vector.shape_cast %451 : vector<16xf32> to vector<16x1xf32>
    %453 = vector.broadcast %452 : vector<16x1xf32> to vector<16x16xf32>
    %454 = arith.subf %450, %453 : vector<16x16xf32>
    %455 = math.exp %454 : vector<16x16xf32>
    %cst_116 = arith.constant dense<0.000000e+00> : vector<16xf32>
    %456 = vector.multi_reduction <add>, %455, %cst_116 [1] : vector<16x16xf32> to vector<16xf32>
    %457 = vector.shape_cast %456 : vector<16xf32> to vector<16x1xf32>
    %458 = tpu.reciprocal %457 : vector<16x1xf32> -> vector<16x1xf32>
    %459 = vector.broadcast %458 : vector<16x1xf32> to vector<16x16xf32>
    %460 = arith.mulf %455, %459 : vector<16x16xf32>
    %461 = vector.broadcast %23 : vector<1x32xf32> to vector<16x32xf32>
    %462 = arith.mulf %403, %461 : vector<16x32xf32>
    %cst_117 = arith.constant dense<0.000000e+00> : vector<16x32xf32>
    %463 = tpu.matmul %460, %462, %cst_117 {dimension_numbers = #tpu.dot_dimension_numbers<[1], [0], [0], [1], [0, 0, 1, 1], [], []>} : vector<16x16xf32>, vector<16x32xf32>, vector<16x32xf32> -> vector<16x32xf32>
    %464 = arith.addf %444, %463 : vector<16x32xf32>
    %465 = vector.broadcast %30 : vector<1x32xf32> to vector<16x32xf32>
    %466 = arith.mulf %395, %465 : vector<16x32xf32>
    %cst_118 = arith.constant dense<0.000000e+00> : vector<16x16xf32>
    %467 = tpu.matmul %466, %399, %cst_118 {dimension_numbers = #tpu.dot_dimension_numbers<[1], [1], [0], [0], [0, 0, 1, 0], [], []>} : vector<16x32xf32>, vector<16x32xf32>, vector<16x16xf32> -> vector<16x16xf32>
    %cst_119 = arith.constant 0.353553385 : f32
    %468 = vector.broadcast %cst_119 : f32 to vector<16x16xf32>
    %469 = arith.mulf %467, %468 : vector<16x16xf32>
    %470 = arith.addf %469, %87 : vector<16x16xf32>
    %cst_120 = arith.constant dense<0xFF800000> : vector<16xf32>
    %471 = vector.multi_reduction <maximumf>, %470, %cst_120 [1] : vector<16x16xf32> to vector<16xf32>
    %472 = vector.shape_cast %471 : vector<16xf32> to vector<16x1xf32>
    %473 = vector.broadcast %472 : vector<16x1xf32> to vector<16x16xf32>
    %474 = arith.subf %470, %473 : vector<16x16xf32>
    %475 = math.exp %474 : vector<16x16xf32>
    %cst_121 = arith.constant dense<0.000000e+00> : vector<16xf32>
    %476 = vector.multi_reduction <add>, %475, %cst_121 [1] : vector<16x16xf32> to vector<16xf32>
    %477 = vector.shape_cast %476 : vector<16xf32> to vector<16x1xf32>
    %478 = tpu.reciprocal %477 : vector<16x1xf32> -> vector<16x1xf32>
    %479 = vector.broadcast %478 : vector<16x1xf32> to vector<16x16xf32>
    %480 = arith.mulf %475, %479 : vector<16x16xf32>
    %481 = vector.broadcast %30 : vector<1x32xf32> to vector<16x32xf32>
    %482 = arith.mulf %403, %481 : vector<16x32xf32>
    %cst_122 = arith.constant dense<0.000000e+00> : vector<16x32xf32>
    %483 = tpu.matmul %480, %482, %cst_122 {dimension_numbers = #tpu.dot_dimension_numbers<[1], [0], [0], [1], [0, 0, 1, 1], [], []>} : vector<16x16xf32>, vector<16x32xf32>, vector<16x32xf32> -> vector<16x32xf32>
    %484 = arith.addf %464, %483 : vector<16x32xf32>
    %485 = vector.extract_strided_slice %387 {offsets = [0, 96], sizes = [32, 32], strides = [1, 1]} : vector<32x384xf32> to vector<32x32xf32>
    %cst_123 = arith.constant dense<0.000000e+00> : vector<16x32xf32>
    %486 = tpu.matmul %484, %485, %cst_123 {dimension_numbers = #tpu.dot_dimension_numbers<[1], [0], [0], [1], [0, 0, 1, 1], [], []>} : vector<16x32xf32>, vector<32x32xf32>, vector<16x32xf32> -> vector<16x32xf32>
    %487 = vector.extract_strided_slice %389 {offsets = [3, 0], sizes = [1, 32], strides = [1, 1]} : vector<16x64xf32> to vector<1x32xf32>
    %488 = vector.broadcast %487 : vector<1x32xf32> to vector<16x32xf32>
    %489 = arith.addf %486, %488 : vector<16x32xf32>
    %490 = arith.addf %385, %489 : vector<16x32xf32>
    %491 = vector.extract_strided_slice %389 {offsets = [10, 0], sizes = [1, 32], strides = [1, 1]} : vector<16x64xf32> to vector<1x32xf32>
    %492 = vector.extract_strided_slice %389 {offsets = [11, 0], sizes = [1, 32], strides = [1, 1]} : vector<16x64xf32> to vector<1x32xf32>
    %cst_124 = arith.constant dense<0.000000e+00> : vector<16xf32>
    %493 = vector.multi_reduction <add>, %490, %cst_124 [1] : vector<16x32xf32> to vector<16xf32>
    %494 = vector.shape_cast %493 : vector<16xf32> to vector<16x1xf32>
    %cst_125 = arith.constant 3.200000e+01 : f32
    %495 = vector.broadcast %cst_125 : f32 to vector<16x1xf32>
    %496 = arith.divf %494, %495 : vector<16x1xf32>
    %497 = vector.broadcast %496 : vector<16x1xf32> to vector<16x32xf32>
    %498 = arith.subf %490, %497 : vector<16x32xf32>
    %499 = arith.mulf %498, %498 : vector<16x32xf32>
    %cst_126 = arith.constant dense<0.000000e+00> : vector<16xf32>
    %500 = vector.multi_reduction <add>, %499, %cst_126 [1] : vector<16x32xf32> to vector<16xf32>
    %501 = vector.shape_cast %500 : vector<16xf32> to vector<16x1xf32>
    %cst_127 = arith.constant 3.200000e+01 : f32
    %502 = vector.broadcast %cst_127 : f32 to vector<16x1xf32>
    %503 = arith.divf %501, %502 : vector<16x1xf32>
    %504 = vector.broadcast %496 : vector<16x1xf32> to vector<16x32xf32>
    %505 = arith.subf %490, %504 : vector<16x32xf32>
    %cst_128 = arith.constant 9.99999974E-6 : f32
    %506 = vector.broadcast %cst_128 : f32 to vector<16x1xf32>
    %507 = arith.addf %503, %506 : vector<16x1xf32>
    %508 = math.rsqrt %507 : vector<16x1xf32>
    %509 = vector.broadcast %508 : vector<16x1xf32> to vector<16x32xf32>
    %510 = arith.mulf %505, %509 : vector<16x32xf32>
    %511 = vector.broadcast %491 : vector<1x32xf32> to vector<16x32xf32>
    %512 = arith.mulf %510, %511 : vector<16x32xf32>
    %513 = vector.broadcast %492 : vector<1x32xf32> to vector<16x32xf32>
    %514 = arith.addf %512, %513 : vector<16x32xf32>
    %515 = vector.extract_strided_slice %387 {offsets = [0, 128], sizes = [32, 32], strides = [1, 1]} : vector<32x384xf32> to vector<32x32xf32>
    %cst_129 = arith.constant dense<0.000000e+00> : vector<16x32xf32>
    %516 = tpu.matmul %514, %515, %cst_129 {dimension_numbers = #tpu.dot_dimension_numbers<[1], [0], [0], [1], [0, 0, 1, 1], [], []>} : vector<16x32xf32>, vector<32x32xf32>, vector<16x32xf32> -> vector<16x32xf32>
    %517 = vector.extract_strided_slice %389 {offsets = [4, 0], sizes = [1, 32], strides = [1, 1]} : vector<16x64xf32> to vector<1x32xf32>
    %518 = vector.broadcast %517 : vector<1x32xf32> to vector<16x32xf32>
    %519 = arith.addf %516, %518 : vector<16x32xf32>
    %520 = vector.extract_strided_slice %387 {offsets = [0, 160], sizes = [32, 64], strides = [1, 1]} : vector<32x384xf32> to vector<32x64xf32>
    %cst_130 = arith.constant dense<0.000000e+00> : vector<16x64xf32>
    %521 = tpu.matmul %1, %520, %cst_130 {dimension_numbers = #tpu.dot_dimension_numbers<[1], [0], [0], [1], [0, 0, 1, 1], [], []>} : vector<16x32xf32>, vector<32x64xf32>, vector<16x64xf32> -> vector<16x64xf32>
    %522 = vector.extract_strided_slice %521 {offsets = [0, 0], sizes = [16, 32], strides = [1, 1]} : vector<16x64xf32> to vector<16x32xf32>
    %523 = vector.extract_strided_slice %389 {offsets = [5, 0], sizes = [1, 32], strides = [1, 1]} : vector<16x64xf32> to vector<1x32xf32>
    %524 = vector.broadcast %523 : vector<1x32xf32> to vector<16x32xf32>
    %525 = arith.addf %522, %524 : vector<16x32xf32>
    %526 = vector.extract_strided_slice %521 {offsets = [0, 32], sizes = [16, 32], strides = [1, 1]} : vector<16x64xf32> to vector<16x32xf32>
    %527 = vector.extract_strided_slice %389 {offsets = [6, 0], sizes = [1, 32], strides = [1, 1]} : vector<16x64xf32> to vector<1x32xf32>
    %528 = vector.broadcast %527 : vector<1x32xf32> to vector<16x32xf32>
    %529 = arith.addf %526, %528 : vector<16x32xf32>
    %cst_131 = arith.constant 0.000000e+00 : f32
    %530 = vector.broadcast %cst_131 : f32 to vector<16x32xf32>
    %531 = vector.broadcast %9 : vector<1x32xf32> to vector<16x32xf32>
    %532 = arith.mulf %519, %531 : vector<16x32xf32>
    %cst_132 = arith.constant dense<0.000000e+00> : vector<16x16xf32>
    %533 = tpu.matmul %532, %525, %cst_132 {dimension_numbers = #tpu.dot_dimension_numbers<[1], [1], [0], [0], [0, 0, 1, 0], [], []>} : vector<16x32xf32>, vector<16x32xf32>, vector<16x16xf32> -> vector<16x16xf32>
    %cst_133 = arith.constant 0.353553385 : f32
    %534 = vector.broadcast %cst_133 : f32 to vector<16x16xf32>
    %535 = arith.mulf %533, %534 : vector<16x16xf32>
    %536 = arith.addf %535, %93 : vector<16x16xf32>
    %cst_134 = arith.constant dense<0xFF800000> : vector<16xf32>
    %537 = vector.multi_reduction <maximumf>, %536, %cst_134 [1] : vector<16x16xf32> to vector<16xf32>
    %538 = vector.shape_cast %537 : vector<16xf32> to vector<16x1xf32>
    %539 = vector.broadcast %538 : vector<16x1xf32> to vector<16x16xf32>
    %540 = arith.subf %536, %539 : vector<16x16xf32>
    %541 = math.exp %540 : vector<16x16xf32>
    %cst_135 = arith.constant dense<0.000000e+00> : vector<16xf32>
    %542 = vector.multi_reduction <add>, %541, %cst_135 [1] : vector<16x16xf32> to vector<16xf32>
    %543 = vector.shape_cast %542 : vector<16xf32> to vector<16x1xf32>
    %544 = tpu.reciprocal %543 : vector<16x1xf32> -> vector<16x1xf32>
    %545 = vector.broadcast %544 : vector<16x1xf32> to vector<16x16xf32>
    %546 = arith.mulf %541, %545 : vector<16x16xf32>
    %547 = vector.broadcast %9 : vector<1x32xf32> to vector<16x32xf32>
    %548 = arith.mulf %529, %547 : vector<16x32xf32>
    %cst_136 = arith.constant dense<0.000000e+00> : vector<16x32xf32>
    %549 = tpu.matmul %546, %548, %cst_136 {dimension_numbers = #tpu.dot_dimension_numbers<[1], [0], [0], [1], [0, 0, 1, 1], [], []>} : vector<16x16xf32>, vector<16x32xf32>, vector<16x32xf32> -> vector<16x32xf32>
    %550 = arith.addf %530, %549 : vector<16x32xf32>
    %551 = vector.broadcast %16 : vector<1x32xf32> to vector<16x32xf32>
    %552 = arith.mulf %519, %551 : vector<16x32xf32>
    %cst_137 = arith.constant dense<0.000000e+00> : vector<16x16xf32>
    %553 = tpu.matmul %552, %525, %cst_137 {dimension_numbers = #tpu.dot_dimension_numbers<[1], [1], [0], [0], [0, 0, 1, 0], [], []>} : vector<16x32xf32>, vector<16x32xf32>, vector<16x16xf32> -> vector<16x16xf32>
    %cst_138 = arith.constant 0.353553385 : f32
    %554 = vector.broadcast %cst_138 : f32 to vector<16x16xf32>
    %555 = arith.mulf %553, %554 : vector<16x16xf32>
    %556 = arith.addf %555, %93 : vector<16x16xf32>
    %cst_139 = arith.constant dense<0xFF800000> : vector<16xf32>
    %557 = vector.multi_reduction <maximumf>, %556, %cst_139 [1] : vector<16x16xf32> to vector<16xf32>
    %558 = vector.shape_cast %557 : vector<16xf32> to vector<16x1xf32>
    %559 = vector.broadcast %558 : vector<16x1xf32> to vector<16x16xf32>
    %560 = arith.subf %556, %559 : vector<16x16xf32>
    %561 = math.exp %560 : vector<16x16xf32>
    %cst_140 = arith.constant dense<0.000000e+00> : vector<16xf32>
    %562 = vector.multi_reduction <add>, %561, %cst_140 [1] : vector<16x16xf32> to vector<16xf32>
    %563 = vector.shape_cast %562 : vector<16xf32> to vector<16x1xf32>
    %564 = tpu.reciprocal %563 : vector<16x1xf32> -> vector<16x1xf32>
    %565 = vector.broadcast %564 : vector<16x1xf32> to vector<16x16xf32>
    %566 = arith.mulf %561, %565 : vector<16x16xf32>
    %567 = vector.broadcast %16 : vector<1x32xf32> to vector<16x32xf32>
    %568 = arith.mulf %529, %567 : vector<16x32xf32>
    %cst_141 = arith.constant dense<0.000000e+00> : vector<16x32xf32>
    %569 = tpu.matmul %566, %568, %cst_141 {dimension_numbers = #tpu.dot_dimension_numbers<[1], [0], [0], [1], [0, 0, 1, 1], [], []>} : vector<16x16xf32>, vector<16x32xf32>, vector<16x32xf32> -> vector<16x32xf32>
    %570 = arith.addf %550, %569 : vector<16x32xf32>
    %571 = vector.broadcast %23 : vector<1x32xf32> to vector<16x32xf32>
    %572 = arith.mulf %519, %571 : vector<16x32xf32>
    %cst_142 = arith.constant dense<0.000000e+00> : vector<16x16xf32>
    %573 = tpu.matmul %572, %525, %cst_142 {dimension_numbers = #tpu.dot_dimension_numbers<[1], [1], [0], [0], [0, 0, 1, 0], [], []>} : vector<16x32xf32>, vector<16x32xf32>, vector<16x16xf32> -> vector<16x16xf32>
    %cst_143 = arith.constant 0.353553385 : f32
    %574 = vector.broadcast %cst_143 : f32 to vector<16x16xf32>
    %575 = arith.mulf %573, %574 : vector<16x16xf32>
    %576 = arith.addf %575, %93 : vector<16x16xf32>
    %cst_144 = arith.constant dense<0xFF800000> : vector<16xf32>
    %577 = vector.multi_reduction <maximumf>, %576, %cst_144 [1] : vector<16x16xf32> to vector<16xf32>
    %578 = vector.shape_cast %577 : vector<16xf32> to vector<16x1xf32>
    %579 = vector.broadcast %578 : vector<16x1xf32> to vector<16x16xf32>
    %580 = arith.subf %576, %579 : vector<16x16xf32>
    %581 = math.exp %580 : vector<16x16xf32>
    %cst_145 = arith.constant dense<0.000000e+00> : vector<16xf32>
    %582 = vector.multi_reduction <add>, %581, %cst_145 [1] : vector<16x16xf32> to vector<16xf32>
    %583 = vector.shape_cast %582 : vector<16xf32> to vector<16x1xf32>
    %584 = tpu.reciprocal %583 : vector<16x1xf32> -> vector<16x1xf32>
    %585 = vector.broadcast %584 : vector<16x1xf32> to vector<16x16xf32>
    %586 = arith.mulf %581, %585 : vector<16x16xf32>
    %587 = vector.broadcast %23 : vector<1x32xf32> to vector<16x32xf32>
    %588 = arith.mulf %529, %587 : vector<16x32xf32>
    %cst_146 = arith.constant dense<0.000000e+00> : vector<16x32xf32>
    %589 = tpu.matmul %586, %588, %cst_146 {dimension_numbers = #tpu.dot_dimension_numbers<[1], [0], [0], [1], [0, 0, 1, 1], [], []>} : vector<16x16xf32>, vector<16x32xf32>, vector<16x32xf32> -> vector<16x32xf32>
    %590 = arith.addf %570, %589 : vector<16x32xf32>
    %591 = vector.broadcast %30 : vector<1x32xf32> to vector<16x32xf32>
    %592 = arith.mulf %519, %591 : vector<16x32xf32>
    %cst_147 = arith.constant dense<0.000000e+00> : vector<16x16xf32>
    %593 = tpu.matmul %592, %525, %cst_147 {dimension_numbers = #tpu.dot_dimension_numbers<[1], [1], [0], [0], [0, 0, 1, 0], [], []>} : vector<16x32xf32>, vector<16x32xf32>, vector<16x16xf32> -> vector<16x16xf32>
    %cst_148 = arith.constant 0.353553385 : f32
    %594 = vector.broadcast %cst_148 : f32 to vector<16x16xf32>
    %595 = arith.mulf %593, %594 : vector<16x16xf32>
    %596 = arith.addf %595, %93 : vector<16x16xf32>
    %cst_149 = arith.constant dense<0xFF800000> : vector<16xf32>
    %597 = vector.multi_reduction <maximumf>, %596, %cst_149 [1] : vector<16x16xf32> to vector<16xf32>
    %598 = vector.shape_cast %597 : vector<16xf32> to vector<16x1xf32>
    %599 = vector.broadcast %598 : vector<16x1xf32> to vector<16x16xf32>
    %600 = arith.subf %596, %599 : vector<16x16xf32>
    %601 = math.exp %600 : vector<16x16xf32>
    %cst_150 = arith.constant dense<0.000000e+00> : vector<16xf32>
    %602 = vector.multi_reduction <add>, %601, %cst_150 [1] : vector<16x16xf32> to vector<16xf32>
    %603 = vector.shape_cast %602 : vector<16xf32> to vector<16x1xf32>
    %604 = tpu.reciprocal %603 : vector<16x1xf32> -> vector<16x1xf32>
    %605 = vector.broadcast %604 : vector<16x1xf32> to vector<16x16xf32>
    %606 = arith.mulf %601, %605 : vector<16x16xf32>
    %607 = vector.broadcast %30 : vector<1x32xf32> to vector<16x32xf32>
    %608 = arith.mulf %529, %607 : vector<16x32xf32>
    %cst_151 = arith.constant dense<0.000000e+00> : vector<16x32xf32>
    %609 = tpu.matmul %606, %608, %cst_151 {dimension_numbers = #tpu.dot_dimension_numbers<[1], [0], [0], [1], [0, 0, 1, 1], [], []>} : vector<16x16xf32>, vector<16x32xf32>, vector<16x32xf32> -> vector<16x32xf32>
    %610 = arith.addf %590, %609 : vector<16x32xf32>
    %611 = vector.extract_strided_slice %387 {offsets = [0, 224], sizes = [32, 32], strides = [1, 1]} : vector<32x384xf32> to vector<32x32xf32>
    %cst_152 = arith.constant dense<0.000000e+00> : vector<16x32xf32>
    %612 = tpu.matmul %610, %611, %cst_152 {dimension_numbers = #tpu.dot_dimension_numbers<[1], [0], [0], [1], [0, 0, 1, 1], [], []>} : vector<16x32xf32>, vector<32x32xf32>, vector<16x32xf32> -> vector<16x32xf32>
    %613 = vector.extract_strided_slice %389 {offsets = [7, 0], sizes = [1, 32], strides = [1, 1]} : vector<16x64xf32> to vector<1x32xf32>
    %614 = vector.broadcast %613 : vector<1x32xf32> to vector<16x32xf32>
    %615 = arith.addf %612, %614 : vector<16x32xf32>
    %616 = arith.addf %514, %615 : vector<16x32xf32>
    %617 = vector.extract_strided_slice %389 {offsets = [12, 0], sizes = [1, 32], strides = [1, 1]} : vector<16x64xf32> to vector<1x32xf32>
    %618 = vector.extract_strided_slice %389 {offsets = [13, 0], sizes = [1, 32], strides = [1, 1]} : vector<16x64xf32> to vector<1x32xf32>
    %cst_153 = arith.constant dense<0.000000e+00> : vector<16xf32>
    %619 = vector.multi_reduction <add>, %616, %cst_153 [1] : vector<16x32xf32> to vector<16xf32>
    %620 = vector.shape_cast %619 : vector<16xf32> to vector<16x1xf32>
    %cst_154 = arith.constant 3.200000e+01 : f32
    %621 = vector.broadcast %cst_154 : f32 to vector<16x1xf32>
    %622 = arith.divf %620, %621 : vector<16x1xf32>
    %623 = vector.broadcast %622 : vector<16x1xf32> to vector<16x32xf32>
    %624 = arith.subf %616, %623 : vector<16x32xf32>
    %625 = arith.mulf %624, %624 : vector<16x32xf32>
    %cst_155 = arith.constant dense<0.000000e+00> : vector<16xf32>
    %626 = vector.multi_reduction <add>, %625, %cst_155 [1] : vector<16x32xf32> to vector<16xf32>
    %627 = vector.shape_cast %626 : vector<16xf32> to vector<16x1xf32>
    %cst_156 = arith.constant 3.200000e+01 : f32
    %628 = vector.broadcast %cst_156 : f32 to vector<16x1xf32>
    %629 = arith.divf %627, %628 : vector<16x1xf32>
    %630 = vector.broadcast %622 : vector<16x1xf32> to vector<16x32xf32>
    %631 = arith.subf %616, %630 : vector<16x32xf32>
    %cst_157 = arith.constant 9.99999974E-6 : f32
    %632 = vector.broadcast %cst_157 : f32 to vector<16x1xf32>
    %633 = arith.addf %629, %632 : vector<16x1xf32>
    %634 = math.rsqrt %633 : vector<16x1xf32>
    %635 = vector.broadcast %634 : vector<16x1xf32> to vector<16x32xf32>
    %636 = arith.mulf %631, %635 : vector<16x32xf32>
    %637 = vector.broadcast %617 : vector<1x32xf32> to vector<16x32xf32>
    %638 = arith.mulf %636, %637 : vector<16x32xf32>
    %639 = vector.broadcast %618 : vector<1x32xf32> to vector<16x32xf32>
    %640 = arith.addf %638, %639 : vector<16x32xf32>
    %641 = vector.extract_strided_slice %387 {offsets = [0, 256], sizes = [32, 64], strides = [1, 1]} : vector<32x384xf32> to vector<32x64xf32>
    %cst_158 = arith.constant dense<0.000000e+00> : vector<16x64xf32>
    %642 = tpu.matmul %640, %641, %cst_158 {dimension_numbers = #tpu.dot_dimension_numbers<[1], [0], [0], [1], [0, 0, 1, 1], [], []>} : vector<16x32xf32>, vector<32x64xf32>, vector<16x64xf32> -> vector<16x64xf32>
    %643 = vector.extract_strided_slice %389 {offsets = [8, 0], sizes = [1, 64], strides = [1, 1]} : vector<16x64xf32> to vector<1x64xf32>
    %644 = vector.broadcast %643 : vector<1x64xf32> to vector<16x64xf32>
    %645 = arith.addf %642, %644 : vector<16x64xf32>
    %cst_159 = arith.constant 0.000000e+00 : f32
    %646 = vector.broadcast %cst_159 : f32 to vector<16x64xf32>
    %647 = arith.maximumf %645, %646 : vector<16x64xf32>
    %648 = vector.extract_strided_slice %387 {offsets = [0, 320], sizes = [32, 64], strides = [1, 1]} : vector<32x384xf32> to vector<32x64xf32>
    %cst_160 = arith.constant dense<0.000000e+00> : vector<16x32xf32>
    %649 = tpu.matmul %647, %648, %cst_160 {dimension_numbers = #tpu.dot_dimension_numbers<[1], [1], [0], [0], [0, 0, 1, 0], [], []>} : vector<16x64xf32>, vector<32x64xf32>, vector<16x32xf32> -> vector<16x32xf32>
    %650 = vector.extract_strided_slice %389 {offsets = [9, 0], sizes = [1, 32], strides = [1, 1]} : vector<16x64xf32> to vector<1x32xf32>
    %651 = vector.broadcast %650 : vector<1x32xf32> to vector<16x32xf32>
    %652 = arith.addf %649, %651 : vector<16x32xf32>
    %653 = arith.addf %640, %652 : vector<16x32xf32>
    %654 = vector.extract_strided_slice %389 {offsets = [14, 0], sizes = [1, 32], strides = [1, 1]} : vector<16x64xf32> to vector<1x32xf32>
    %655 = vector.extract_strided_slice %389 {offsets = [15, 0], sizes = [1, 32], strides = [1, 1]} : vector<16x64xf32> to vector<1x32xf32>
    %cst_161 = arith.constant dense<0.000000e+00> : vector<16xf32>
    %656 = vector.multi_reduction <add>, %653, %cst_161 [1] : vector<16x32xf32> to vector<16xf32>
    %657 = vector.shape_cast %656 : vector<16xf32> to vector<16x1xf32>
    %cst_162 = arith.constant 3.200000e+01 : f32
    %658 = vector.broadcast %cst_162 : f32 to vector<16x1xf32>
    %659 = arith.divf %657, %658 : vector<16x1xf32>
    %660 = vector.broadcast %659 : vector<16x1xf32> to vector<16x32xf32>
    %661 = arith.subf %653, %660 : vector<16x32xf32>
    %662 = arith.mulf %661, %661 : vector<16x32xf32>
    %cst_163 = arith.constant dense<0.000000e+00> : vector<16xf32>
    %663 = vector.multi_reduction <add>, %662, %cst_163 [1] : vector<16x32xf32> to vector<16xf32>
    %664 = vector.shape_cast %663 : vector<16xf32> to vector<16x1xf32>
    %cst_164 = arith.constant 3.200000e+01 : f32
    %665 = vector.broadcast %cst_164 : f32 to vector<16x1xf32>
    %666 = arith.divf %664, %665 : vector<16x1xf32>
    %667 = vector.broadcast %659 : vector<16x1xf32> to vector<16x32xf32>
    %668 = arith.subf %653, %667 : vector<16x32xf32>
    %cst_165 = arith.constant 9.99999974E-6 : f32
    %669 = vector.broadcast %cst_165 : f32 to vector<16x1xf32>
    %670 = arith.addf %666, %669 : vector<16x1xf32>
    %671 = math.rsqrt %670 : vector<16x1xf32>
    %672 = vector.broadcast %671 : vector<16x1xf32> to vector<16x32xf32>
    %673 = arith.mulf %668, %672 : vector<16x32xf32>
    %674 = vector.broadcast %654 : vector<1x32xf32> to vector<16x32xf32>
    %675 = arith.mulf %673, %674 : vector<16x32xf32>
    %676 = vector.broadcast %655 : vector<1x32xf32> to vector<16x32xf32>
    %677 = arith.addf %675, %676 : vector<16x32xf32>
    %c0_166 = arith.constant 0 : index
    %c0_167 = arith.constant 0 : index
    %678 = vector.load %arg4[%c0_166, %c0_167] : memref<1x32xf32, #tpu.memory_space<vmem>>, vector<1x32xf32>
    %679 = vector.broadcast %678 : vector<1x32xf32> to vector<16x32xf32>
    %680 = arith.mulf %677, %679 : vector<16x32xf32>
    %cst_168 = arith.constant dense<0.000000e+00> : vector<16xf32>
    %681 = vector.multi_reduction <add>, %680, %cst_168 [1] : vector<16x32xf32> to vector<16xf32>
    %682 = vector.shape_cast %681 : vector<16xf32> to vector<16x1xf32>
    %c0_169 = arith.constant 0 : index
    %c0_170 = arith.constant 0 : index
    %683 = vector.load %arg5[%c0_169, %c0_170] : memref<16x1xf32, #tpu.memory_space<vmem>>, vector<16x1xf32>
    tpu.vector_store %arg5[%c0_169, %c0_170], %682 {strides = array<i32>} : memref<16x1xf32, #tpu.memory_space<vmem>>, vector<16x1xf32>,
    return
  }
}

</mosaic_0001>

<llo_original>
// kernel: decoder_forward.1
$region0: #{decoder_forward.1}
  #allocation0 [shape = 'u32[]', space=smem, size = 0x4, offset = 0x4, fixed_abs, tag = 'smem constant byte address 0x4 - core index']
  #allocation1 [shape = 'u32[144,128]{1,0:T(1,128)}', space=vmem, size = 0x12000, scoped, tag = 'internal scratch']
  %s0 = inlined_call_operand.hbm [shape: f32[16,32], index: 0, kind: input, shape index: {}]
  %s1 = inlined_call_operand.hbm [shape: f32[16,32], index: 1, kind: input, shape index: {}]
  %s2 = inlined_call_operand.hbm [shape: f32[2,32,384], index: 2, kind: input, shape index: {}]
  %s3 = inlined_call_operand.hbm [shape: f32[2,16,64], index: 3, kind: input, shape index: {}]
  %s4 = inlined_call_operand.vmem [shape: f32[1,32], index: 4, kind: input, shape index: {}]
  %s5 = inlined_call_operand.vmem [shape: f32[16,1], index: 5, kind: output, shape index: {}]
  %s6 = sld [smem:[#allocation0]]
  $region46: #{decoder_forward.1} parent=0
    _
  %s8 = ssub.s32 1, %s6
  %s9 = scalar_select 0, %s8, %s6
  $region1: #{decoder_forward.1} parent=0
    #allocation2 [shape = 'u8[8192]{0}', space=vmem, size = 0x2000, scoped, tag = 'input window, operand 0, single buffered']
    #allocation3 [shape = 's32[1]{0}', space=sflag, size = 0x4, scoped, tag = 'scoped memory for decoder_forward.1']
    #allocation4 [shape = 'u8[8192]{0}', space=vmem, size = 0x2000, scoped, tag = 'input window, operand 1, single buffered']
    #allocation5 [shape = 's32[1]{0}', space=sflag, size = 0x4, scoped, tag = 'scoped memory for decoder_forward.1']
    #allocation6 [shape = 'u8[98304]{0}', space=vmem, size = 0x18000, scoped, tag = 'input window, operand 2, single buffered']
    #allocation7 [shape = 'u8[16384]{0}', space=vmem, size = 0x4000, scoped, tag = 'input window, operand 3, single buffered']
    #allocation8 [shape = 's32[1]{0}', space=sflag, size = 0x4, scoped, tag = 'scoped memory for decoder_forward.1']
    %10 = vsyncpa [#allocation3], 0
    %11 = vsyncpa [#allocation5], 0
    %12 = vsyncpa [#allocation8], 0
    // Predicated region
    $region2: #{decoder_forward.1} parent=1 // pred_check
      _
    $region3: #{decoder_forward.1} parent=1 // pred_check_branch
      %14 = sbr.rel (0) target = $region5
    $region4: #{decoder_forward.1} parent=1 // pred_region
      %s16 = ssub.s32 256, 256
      %17 = vsyncadd [#allocation3], %s16
      %s18 = sshll.u32 [#allocation2], 4
      %s19 = int_to_ptr.vmem [resolvable:$true] %s18
      %24 = dma.hbm_to_vmem [thread:$0]  %s0, 256, %s19, [#allocation3], 128, 128, 8
    $region5: #{decoder_forward.1} parent=1 // pred_fallthru
      _
    // Predicated region
    $region6: #{decoder_forward.1} parent=1 // pred_check
      _
    $region7: #{decoder_forward.1} parent=1 // pred_check_branch
      %26 = sbr.rel (0) target = $region9
    $region8: #{decoder_forward.1} parent=1 // pred_region
      %s28 = ssub.s32 256, 256
      %29 = vsyncadd [#allocation5], %s28
      %s30 = sshll.u32 [#allocation4], 4
      %s31 = int_to_ptr.vmem [resolvable:$true] %s30
      %36 = dma.hbm_to_vmem [thread:$0]  %s1, 256, %s31, [#allocation5], 128, 128, 8
    $region9: #{decoder_forward.1} parent=1 // pred_fallthru
      _
    // Predicated region
    $region10: #{decoder_forward.1} parent=1 // pred_check
      _
    $region11: #{decoder_forward.1} parent=1 // pred_check_branch
      %38 = sbr.rel (0) target = $region13
    $region12: #{decoder_forward.1} parent=1 // pred_region
      %s40 = ssub.s32 3072, 3072
      %41 = vsyncadd [#allocation5], %s40
      %s42 = sshll.u32 [#allocation6], 4
      %s43 = int_to_ptr.vmem [resolvable:$true] %s42
      %48 = dma.hbm_to_vmem [thread:$0]  %s2, 3072, %s43, [#allocation5], 384, 384, 24
    $region13: #{decoder_forward.1} parent=1 // pred_fallthru
      _
    // Predicated region
    $region14: #{decoder_forward.1} parent=1 // pred_check
      _
    $region15: #{decoder_forward.1} parent=1 // pred_check_branch
      %50 = sbr.rel (0) target = $region17
    $region16: #{decoder_forward.1} parent=1 // pred_region
      %s52 = ssub.s32 512, 512
      %53 = vsyncadd [#allocation8], %s52
      %s54 = sshll.u32 [#allocation7], 4
      %s55 = int_to_ptr.vmem [resolvable:$true] %s54
      %60 = dma.hbm_to_vmem [thread:$0]  %s3, 512, %s55, [#allocation8], 128, 128, 8
    $region17: #{decoder_forward.1} parent=1 // pred_fallthru
      _
    // Predicated region
    $region18: #{decoder_forward.1} parent=1 // pred_check
      _
    $region19: #{decoder_forward.1} parent=1 // pred_check_branch
      %62 = sbr.rel (0) target = $region21
    $region20: #{decoder_forward.1} parent=1 // pred_region
      _
    $region21: #{decoder_forward.1} parent=1 // pred_fallthru
      _
    // Predicated region
    $region22: #{decoder_forward.1} parent=1 // pred_check
      _
    $region23: #{decoder_forward.1} parent=1 // pred_check_branch
      %64 = sbr.rel (0) target = $region25
    $region24: #{decoder_forward.1} parent=1 // pred_region
      %65 = dma.done [#allocation3], 256
    $region25: #{decoder_forward.1} parent=1 // pred_fallthru
      _
    // Predicated region
    $region26: #{decoder_forward.1} parent=1 // pred_check
      _
    $region27: #{decoder_forward.1} parent=1 // pred_check_branch
      %67 = sbr.rel (0) target = $region29
    $region28: #{decoder_forward.1} parent=1 // pred_region
      %68 = dma.done [#allocation5], 256
    $region29: #{decoder_forward.1} parent=1 // pred_fallthru
      _
    // Predicated region
    $region30: #{decoder_forward.1} parent=1 // pred_check
      _
    $region31: #{decoder_forward.1} parent=1 // pred_check_branch
      %70 = sbr.rel (0) target = $region33
    $region32: #{decoder_forward.1} parent=1 // pred_region
      %71 = dma.done [#allocation5], 3072
    $region33: #{decoder_forward.1} parent=1 // pred_fallthru
      _
    // Predicated region
    $region34: #{decoder_forward.1} parent=1 // pred_check
      _
    $region35: #{decoder_forward.1} parent=1 // pred_check_branch
      %73 = sbr.rel (0) target = $region37
    $region36: #{decoder_forward.1} parent=1 // pred_region
      %74 = dma.done [#allocation8], 512
    $region37: #{decoder_forward.1} parent=1 // pred_fallthru
      _
    %v75 = vld [vmem:[#allocation2] sm:$0xff]
    %v76 = vld [vmem:[#allocation2 + $0x8] sm:$0xff]
    %v77 = vld [vmem:[#allocation4] sm:$0xff]
    %v78 = vld [vmem:[#allocation4 + $0x8] sm:$0xff]
    %v79 = vlaneseq
    %v80 = vand.u32 %v79, 127
    %vm81 = vcmp.ge.s32.totalorder %v80, 0
    %vm82 = vcmp.lt.s32.totalorder %v80, 8
    %vm83 = vmand %vm81, %vm82
    %v84 = vsel %vm83, 1, 0
    %v85 = vcvt.s32.f32 %v84
    %vm86 = vcmp.ge.s32.totalorder %v80, 8
    %vm87 = vcmp.lt.s32.totalorder %v80, 16
    %vm88 = vmand %vm86, %vm87
    %v89 = vsel %vm88, 1, 0
    %v90 = vcvt.s32.f32 %v89
    %vm91 = vcmp.ge.s32.totalorder %v80, 16
    %vm92 = vcmp.lt.s32.totalorder %v80, 24
    %vm93 = vmand %vm91, %vm92
    %v94 = vsel %vm93, 1, 0
    %v95 = vcvt.s32.f32 %v94
    %vm96 = vcmp.ge.s32.totalorder %v80, 24
    %vm97 = vcmp.lt.s32.totalorder %v80, 32
    %vm98 = vmand %vm96, %vm97
    %v99 = vsel %vm98, 1, 0
    %v100 = vcvt.s32.f32 %v99
    %v101 = vlaneseq
    %v102 = vshrl.u32 %v101, 7
    %v103 = vadd.s32 %v102, 8
    %vm104 = vcmp.lt.s32.totalorder %v102, 0
    %v105 = vsub.s32 0, %v102
    %v106 = vsel %vm104, %v105, %v102
    %v107 = vshrl.u32 %v106, 1
    %v108 = vand.u32 %v106, 1
    %v109 = vsub.s32 0, %v108
    %v110 = vsel %vm104, %v109, %v108
    %vm111 = vcmp.lt.s32.totalorder %v103, 0
    %v112 = vsub.s32 0, %v103
    %v113 = vsel %vm111, %v112, %v103
    %v114 = vshrl.u32 %v113, 1
    %v115 = vand.u32 %v113, 1
    %v116 = vsub.s32 0, %v115
    %v117 = vsel %vm111, %v116, %v115
    %vm118 = vcmp.ne.s32.totalorder %v110, 0
    %vm119 = vcmp.ne.s32.totalorder %v117, 0
    %vm120 = vcmp.lt.s32.totalorder %v110, 0
    %vm121 = vcmp.lt.s32.totalorder %v117, 0
    %vm122 = vmand %vm120, %vm118
    %vm123 = vmand %vm121, %vm119
    %v124 = vadd.s32 %v110, 2
    %v125 = vadd.s32 %v117, 2
    %v126 = vsel %vm122, %v124, %v110
    %v127 = vsel %vm123, %v125, %v117
    %vm128 = vcmp.lt.s32.totalorder %v80, 0
    %v129 = vsub.s32 0, %v80
    %v130 = vsel %vm128, %v129, %v80
    %v131 = vshrl.u32 %v130, 1
    %v132 = vand.u32 %v130, 1
    %v133 = vsub.s32 0, %v132
    %v134 = vsel %vm128, %v133, %v132
    %vm135 = vcmp.ne.s32.totalorder %v134, 0
    %vm136 = vcmp.lt.s32.totalorder %v134, 0
    %vm137 = vmand %vm136, %vm135
    %v138 = vadd.s32 %v134, 2
    %v139 = vsel %vm137, %v138, %v134
    %vm140 = vcmp.eq.s32.totalorder %v126, %v139
    %vm141 = vcmp.eq.s32.totalorder %v127, %v139
    %v142 = vsel %vm140, 0.0, -1e+30
    %v143 = vsel %vm141, 0.0, -1e+30
    %v144 = vld [vmem:[#allocation6] sm:$0xff]
    %v145 = vld [vmem:[#allocation6 + $0x8] sm:$0xff]
    %v146 = vld [vmem:[#allocation6 + $0x10] sm:$0xff]
    %v147 = vld [vmem:[#allocation6 + $0x18] sm:$0xff]
    %v148 = vld [vmem:[#allocation6 + $0x20] sm:$0xff]
    %v149 = vld [vmem:[#allocation6 + $0x28] sm:$0xff]
    %v150 = vld [vmem:[#allocation6 + $0x30] sm:$0xff]
    %v151 = vld [vmem:[#allocation6 + $0x38] sm:$0xff]
    %v152 = vld [vmem:[#allocation6 + $0x40] sm:$0xff]
    %v153 = vld [vmem:[#allocation6 + $0x48] sm:$0xff]
    %v154 = vld [vmem:[#allocation6 + $0x50] sm:$0xff]
    %v155 = vld [vmem:[#allocation6 + $0x58] sm:$0xff]
    %v156 = vld [vmem:[#allocation7] sm:$0xff]
    %v157 = vld [vmem:[#allocation7 + $0x8] sm:$0xff]
    %vm158 = vcmask 261120
    %v160 = vsel %vm158, %v75, 0
    %v163 = vsel %vm158, %v76, 0
    %165 = vmatprep.subr.mxu0 0.0
    %166 = vmatpush1.msra.mxu0 0.0
    %167 = vmatprep.subr.mxu0 0.0
    %168 = vmatpush1.msra.mxu0 0.0
    %169 = vmatprep.subr.mxu0 0.0
    %170 = vmatpush1.msra.mxu0 0.0
    %171 = vmatprep.subr.mxu0 0.0
    %172 = vmatpush1.msra.mxu0 0.0
    %173 = vmatprep.subr.mxu0 0.0
    %174 = vmatpush1.msra.mxu0 0.0
    %175 = vmatprep.subr.mxu0 0.0
    %176 = vmatpush1.msra.mxu0 0.0
    %177 = vmatprep.subr.mxu0 0.0
    %178 = vmatpush1.msra.mxu0 0.0
    %179 = vmatprep.subr.mxu0 0.0
    %180 = vmatpush1.msra.mxu0 0.0
    %181 = vmatprep.subr.mxu0 0.0
    %182 = vmatpush1.msra.mxu0 0.0
    %183 = vmatprep.subr.mxu0 0.0
    %184 = vmatpush1.msra.mxu0 0.0
    %185 = vmatprep.subr.mxu0 0.0
    %186 = vmatpush1.msra.mxu0 0.0
    %187 = vmatprep.subr.mxu0 0.0
    %188 = vmatpush1.msra.mxu0 0.0
    %189 = vmatprep.subr.mxu0 0.0
    %190 = vmatpush1.msra.mxu0 %v153
    %191 = vmatprep.subr.mxu0 0.0
    %192 = vmatpush1.msra.mxu0 %v150
    %193 = vmatprep.subr.mxu0 0.0
    %194 = vmatpush1.msra.mxu0 %v147
    %195 = vmatprep.subr.mxu0 0.0
    %196 = vmatpush1.msra.mxu0 %v144
    %197 = vmatprep.subr.mxu0 0.0
    %198 = vmatpush2.msra.mxu0 0.0
    %199 = vmatprep.subr.mxu0 0.0
    %200 = vmatpush2.msra.mxu0 0.0
    %201 = vmatprep.subr.mxu0 0.0
    %202 = vmatpush2.msra.mxu0 0.0
    %203 = vmatprep.subr.mxu0 0.0
    %204 = vmatpush2.msra.mxu0 0.0
    %205 = vmatprep.subr.mxu0 0.0
    %206 = vmatpush2.msra.mxu0 0.0
    %207 = vmatprep.subr.mxu0 0.0
    %208 = vmatpush2.msra.mxu0 0.0
    %209 = vmatprep.subr.mxu0 0.0
    %210 = vmatpush2.msra.mxu0 0.0
    %211 = vmatprep.subr.mxu0 0.0
    %212 = vmatpush2.msra.mxu0 0.0
    %213 = vmatprep.subr.mxu0 0.0
    %214 = vmatpush2.msra.mxu0 0.0
    %215 = vmatprep.subr.mxu0 0.0
    %216 = vmatpush2.msra.mxu0 0.0
    %217 = vmatprep.subr.mxu0 0.0
    %218 = vmatpush2.msra.mxu0 0.0
    %219 = vmatprep.subr.mxu0 0.0
    %220 = vmatpush2.msra.mxu0 0.0
    %221 = vmatprep.subr.mxu0 0.0
    %222 = vmatpush2.msra.mxu0 0.0
    %223 = vmatprep.subr.mxu0 0.0
    %224 = vmatpush2.msra.mxu0 0.0
    %225 = vmatprep.subr.mxu0 0.0
    %226 = vmatpush2.msra.mxu0 0.0
    %227 = vmatprep.subr.mxu0 0.0
    %228 = vmatpush2.msra.mxu0 0.0
    %229 = vmatprep.mubr.f32.mxu0 0.0
    %230 = vmatmul.mubr.f32.gmra.mxu0 %v160
    %v231 = vpop.f32.mrf.mxu0
    %v232 = vadd.f32 0.0, %v231
    %v233 = vpop.f32.mrf.mxu0
    %234 = vmatprep.mubr.f32.mxu0 0.0
    %235 = vmatmul.mubr.f32.gmra.mxu0 %v163
    %v236 = vpop.f32.mrf.mxu0
    %v237 = vadd.f32 0.0, %v236
    %v238 = vpop.f32.mrf.mxu0
    %239 = vdwg.mxu0
    %v240 = vlaneseq
    %v241 = vshrl.u32 %v240, 7
    %v242 = vsub.s32 0, %v241
    %v243 = vrot.slane %v156, %v242
    %v244 = vadd.f32 %v232, %v243
    %v245 = vadd.f32 %v237, %v243
    %v246 = vlaneseq
    %v247 = vshrl.u32 %v246, 7
    %v248 = vsub.s32 1, %v247
    %v249 = vrot.slane %v156, %v248
    %251 = vrot.lane.b32.xlu0 %v249, 32
    %v252 = vpop.permute.xlu0 %251
    %v254 = vadd.f32 %v232, %v252
    %v255 = vadd.f32 %v237, %v252
    %v256 = vlaneseq
    %v257 = vshrl.u32 %v256, 7
    %v258 = vsub.s32 2, %v257
    %v259 = vrot.slane %v156, %v258
    %261 = vrot.lane.b32.xlu0 %v259, 64
    %v262 = vpop.permute.xlu0 %261
    %v264 = vadd.f32 %v232, %v262
    %v265 = vadd.f32 %v237, %v262
    %v266 = vmul.f32 %v244, %v85
    %v267 = vmul.f32 %v245, %v85
    %270 = vrot.lane.b32.xlu0 %v254, 96
    %v271 = vpop.permute.xlu0 %270
    %272 = vrot.lane.b32.xlu0 %v255, 96
    %v273 = vpop.permute.xlu0 %272
    %v275 = vsel %vm158, %v266, 0
    %v278 = vsel %vm158, %v267, 0
    %v280 = vsel %vm158, %v271, 0
    %v282 = vsel %vm158, %v273, 0
    %284 = vmatprep.subr.mxu0 0.0
    %285 = vmatpush1.xpose.msra.mxu0 0.0
    %286 = vmatprep.subr.mxu0 0.0
    %287 = vmatpush1.xpose.msra.mxu0 0.0
    %288 = vmatprep.subr.mxu0 0.0
    %289 = vmatpush1.xpose.msra.mxu0 0.0
    %290 = vmatprep.subr.mxu0 0.0
    %291 = vmatpush1.xpose.msra.mxu0 0.0
    %292 = vmatprep.subr.mxu0 0.0
    %293 = vmatpush1.xpose.msra.mxu0 0.0
    %294 = vmatprep.subr.mxu0 0.0
    %295 = vmatpush1.xpose.msra.mxu0 0.0
    %296 = vmatprep.subr.mxu0 0.0
    %297 = vmatpush1.xpose.msra.mxu0 0.0
    %298 = vmatprep.subr.mxu0 0.0
    %299 = vmatpush1.xpose.msra.mxu0 0.0
    %300 = vmatprep.subr.mxu0 0.0
    %301 = vmatpush1.xpose.msra.mxu0 0.0
    %302 = vmatprep.subr.mxu0 0.0
    %303 = vmatpush1.xpose.msra.mxu0 0.0
    %304 = vmatprep.subr.mxu0 0.0
    %305 = vmatpush1.xpose.msra.mxu0 0.0
    %306 = vmatprep.subr.mxu0 0.0
    %307 = vmatpush1.xpose.msra.mxu0 0.0
    %308 = vmatprep.subr.mxu0 0.0
    %309 = vmatpush1.xpose.msra.mxu0 0.0
    %310 = vmatprep.subr.mxu0 0.0
    %311 = vmatpush1.xpose.msra.mxu0 0.0
    %312 = vmatprep.subr.mxu0 0.0
    %313 = vmatpush1.xpose.msra.mxu0 %v282
    %314 = vmatprep.subr.mxu0 0.0
    %315 = vmatpush1.xpose.msra.mxu0 %v280
    %316 = vmatprep.subr.mxu0 0.0
    %317 = vmatpush2.xpose.msra.mxu0 0.0
    %318 = vmatprep.subr.mxu0 0.0
    %319 = vmatpush2.xpose.msra.mxu0 0.0
    %320 = vmatprep.subr.mxu0 0.0
    %321 = vmatpush2.xpose.msra.mxu0 0.0
    %322 = vmatprep.subr.mxu0 0.0
    %323 = vmatpush2.xpose.msra.mxu0 0.0
    %324 = vmatprep.subr.mxu0 0.0
    %325 = vmatpush2.xpose.msra.mxu0 0.0
    %326 = vmatprep.subr.mxu0 0.0
    %327 = vmatpush2.xpose.msra.mxu0 0.0
    %328 = vmatprep.subr.mxu0 0.0
    %329 = vmatpush2.xpose.msra.mxu0 0.0
    %330 = vmatprep.subr.mxu0 0.0
    %331 = vmatpush2.xpose.msra.mxu0 0.0
    %332 = vmatprep.subr.mxu0 0.0
    %333 = vmatpush2.xpose.msra.mxu0 0.0
    %334 = vmatprep.subr.mxu0 0.0
    %335 = vmatpush2.xpose.msra.mxu0 0.0
    %336 = vmatprep.subr.mxu0 0.0
    %337 = vmatpush2.xpose.msra.mxu0 0.0
    %338 = vmatprep.subr.mxu0 0.0
    %339 = vmatpush2.xpose.msra.mxu0 0.0
    %340 = vmatprep.subr.mxu0 0.0
    %341 = vmatpush2.xpose.msra.mxu0 0.0
    %342 = vmatprep.subr.mxu0 0.0
    %343 = vmatpush2.xpose.msra.mxu0 0.0
    %344 = vmatprep.subr.mxu0 0.0
    %345 = vmatpush2.xpose.msra.mxu0 0.0
    %346 = vmatprep.subr.mxu0 0.0
    %347 = vmatpush2.xpose.msra.mxu0 0.0
    %348 = vmatprep.mubr.f32.mxu0 0.0
    %349 = vmatmul.mubr.f32.gmra.mxu0 %v275
    %v350 = vpop.f32.mrf.mxu0
    %v351 = vadd.f32 0.0, %v350
    %v352 = vpop.f32.mrf.mxu0
    %353 = vmatprep.mubr.f32.mxu0 0.0
    %354 = vmatmul.mubr.f32.gmra.mxu0 %v278
    %v355 = vpop.f32.mrf.mxu0
    %v356 = vadd.f32 0.0, %v355
    %v357 = vpop.f32.mrf.mxu0
    %358 = vdwg.mxu0
    %v359 = vmul.f32 %v351, 0.35355338
    %v360 = vmul.f32 %v356, 0.35355338
    %v361 = vadd.f32 %v359, %v142
    %v362 = vadd.f32 %v360, %v143
    %vm363 = vcmask 130048
    %v364 = vsel %vm363, %v361, -inf
    %365 = vmax.xlane.f32.xlu0 %v364
    %v366 = vpop.xlane.xlu0 %365
    %v367 = vsel %vm363, %v362, -inf
    %368 = vmax.xlane.f32.xlu0 %v367
    %v369 = vpop.xlane.xlu0 %368
    %v370 = vsub.f32 %v361, %v366
    %v371 = vsub.f32 %v362, %v369
    %v372 = vmul.f32 %v370, 1.442695
    %v373 = vpow.pop %v372
    %v374 = vmul.f32 %v371, 1.442695
    %v375 = vpow.pop %v374
    %v376 = vsel %vm363, %v373, 0.0
    %377 = vadd.xlane.f32.xlu0 %v376
    %v378 = vpop.xlane.xlu0 %377
    %v379 = vsel %vm363, %v375, 0.0
    %380 = vadd.xlane.f32.xlu0 %v379
    %v381 = vpop.xlane.xlu0 %380
    %v382 = vrcp.pop %v378
    %v383 = vrcp.pop %v381
    %v384 = vmul.f32 %v373, %v382
    %v385 = vmul.f32 %v375, %v383
    %387 = vrot.lane.b32.xlu0 %v85, 64
    %v388 = vpop.permute.xlu0 %387
    %v390 = vmul.f32 %v264, %v388
    %v391 = vmul.f32 %v265, %v388
    %v392 = vmul.f32 %v244, %v90
    %v393 = vmul.f32 %v245, %v90
    %v395 = vsel %vm158, %v392, 0
    %v398 = vsel %vm158, %v393, 0
    %400 = vmatprep.subr.mxu0 0.0
    %401 = vmatpush1.xpose.msra.mxu0 0.0
    %402 = vmatprep.subr.mxu0 0.0
    %403 = vmatpush1.xpose.msra.mxu0 0.0
    %404 = vmatprep.subr.mxu0 0.0
    %405 = vmatpush1.xpose.msra.mxu0 0.0
    %406 = vmatprep.subr.mxu0 0.0
    %407 = vmatpush1.xpose.msra.mxu0 0.0
    %408 = vmatprep.subr.mxu0 0.0
    %409 = vmatpush1.xpose.msra.mxu0 0.0
    %410 = vmatprep.subr.mxu0 0.0
    %411 = vmatpush1.xpose.msra.mxu0 0.0
    %412 = vmatprep.subr.mxu0 0.0
    %413 = vmatpush1.xpose.msra.mxu0 0.0
    %414 = vmatprep.subr.mxu0 0.0
    %415 = vmatpush1.xpose.msra.mxu0 0.0
    %416 = vmatprep.subr.mxu0 0.0
    %417 = vmatpush1.xpose.msra.mxu0 0.0
    %418 = vmatprep.subr.mxu0 0.0
    %419 = vmatpush1.xpose.msra.mxu0 0.0
    %420 = vmatprep.subr.mxu0 0.0
    %421 = vmatpush1.xpose.msra.mxu0 0.0
    %422 = vmatprep.subr.mxu0 0.0
    %423 = vmatpush1.xpose.msra.mxu0 0.0
    %424 = vmatprep.subr.mxu0 0.0
    %425 = vmatpush1.xpose.msra.mxu0 0.0
    %426 = vmatprep.subr.mxu0 0.0
    %427 = vmatpush1.xpose.msra.mxu0 0.0
    %428 = vmatprep.subr.mxu0 0.0
    %429 = vmatpush1.xpose.msra.mxu0 %v282
    %430 = vmatprep.subr.mxu0 0.0
    %431 = vmatpush1.xpose.msra.mxu0 %v280
    %432 = vmatprep.subr.mxu0 0.0
    %433 = vmatpush2.xpose.msra.mxu0 0.0
    %434 = vmatprep.subr.mxu0 0.0
    %435 = vmatpush2.xpose.msra.mxu0 0.0
    %436 = vmatprep.subr.mxu0 0.0
    %437 = vmatpush2.xpose.msra.mxu0 0.0
    %438 = vmatprep.subr.mxu0 0.0
    %439 = vmatpush2.xpose.msra.mxu0 0.0
    %440 = vmatprep.subr.mxu0 0.0
    %441 = vmatpush2.xpose.msra.mxu0 0.0
    %442 = vmatprep.subr.mxu0 0.0
    %443 = vmatpush2.xpose.msra.mxu0 0.0
    %444 = vmatprep.subr.mxu0 0.0
    %445 = vmatpush2.xpose.msra.mxu0 0.0
    %446 = vmatprep.subr.mxu0 0.0
    %447 = vmatpush2.xpose.msra.mxu0 0.0
    %448 = vmatprep.subr.mxu0 0.0
    %449 = vmatpush2.xpose.msra.mxu0 0.0
    %450 = vmatprep.subr.mxu0 0.0
    %451 = vmatpush2.xpose.msra.mxu0 0.0
    %452 = vmatprep.subr.mxu0 0.0
    %453 = vmatpush2.xpose.msra.mxu0 0.0
    %454 = vmatprep.subr.mxu0 0.0
    %455 = vmatpush2.xpose.msra.mxu0 0.0
    %456 = vmatprep.subr.mxu0 0.0
    %457 = vmatpush2.xpose.msra.mxu0 0.0
    %458 = vmatprep.subr.mxu0 0.0
    %459 = vmatpush2.xpose.msra.mxu0 0.0
    %460 = vmatprep.subr.mxu0 0.0
    %461 = vmatpush2.xpose.msra.mxu0 0.0
    %462 = vmatprep.subr.mxu0 0.0
    %463 = vmatpush2.xpose.msra.mxu0 0.0
    %464 = vmatprep.mubr.f32.mxu0 0.0
    %465 = vmatmul.mubr.f32.gmra.mxu0 %v395
    %v466 = vpop.f32.mrf.mxu0
    %v467 = vadd.f32 0.0, %v466
    %v468 = vpop.f32.mrf.mxu0
    %469 = vmatprep.mubr.f32.mxu0 0.0
    %470 = vmatmul.mubr.f32.gmra.mxu0 %v398
    %v471 = vpop.f32.mrf.mxu0
    %v472 = vadd.f32 0.0, %v471
    %v473 = vpop.f32.mrf.mxu0
    %474 = vdwg.mxu0
    %v475 = vmul.f32 %v467, 0.35355338
    %v476 = vmul.f32 %v472, 0.35355338
    %v477 = vadd.f32 %v475, %v142
    %v478 = vadd.f32 %v476, %v143
    %v479 = vsel %vm363, %v477, -inf
    %480 = vmax.xlane.f32.xlu0 %v479
    %v481 = vpop.xlane.xlu0 %480
    %v482 = vsel %vm363, %v478, -inf
    %483 = vmax.xlane.f32.xlu0 %v482
    %v484 = vpop.xlane.xlu0 %483
    %v485 = vsub.f32 %v477, %v481
    %v486 = vsub.f32 %v478, %v484
    %v487 = vmul.f32 %v485, 1.442695
    %v488 = vpow.pop %v487
    %v489 = vmul.f32 %v486, 1.442695
    %v490 = vpow.pop %v489
    %v491 = vsel %vm363, %v488, 0.0
    %492 = vadd.xlane.f32.xlu0 %v491
    %v493 = vpop.xlane.xlu0 %492
    %v494 = vsel %vm363, %v490, 0.0
    %495 = vadd.xlane.f32.xlu0 %v494
    %v496 = vpop.xlane.xlu0 %495
    %v497 = vrcp.pop %v493
    %v498 = vrcp.pop %v496
    %v499 = vmul.f32 %v488, %v497
    %v500 = vmul.f32 %v490, %v498
    %502 = vrot.lane.b32.xlu0 %v90, 64
    %v503 = vpop.permute.xlu0 %502
    %v505 = vmul.f32 %v264, %v503
    %v506 = vmul.f32 %v265, %v503
    %509 = vrot.lane.b32.xlu0 %v505, 64
    %v510 = vpop.permute.xlu0 %509
    %511 = vrot.lane.b32.xlu0 %v506, 64
    %v512 = vpop.permute.xlu0 %511
    %v516 = vsel %vm363, %v499, 0
    %v519 = vsel %vm363, %v500, 0
    %521 = vmatprep.subr.mxu0 0.0
    %522 = vmatpush1.msra.mxu0 0.0
    %523 = vmatprep.subr.mxu0 0.0
    %524 = vmatpush1.msra.mxu0 0.0
    %525 = vmatprep.subr.mxu0 0.0
    %526 = vmatpush1.msra.mxu0 0.0
    %527 = vmatprep.subr.mxu0 0.0
    %528 = vmatpush1.msra.mxu0 0.0
    %529 = vmatprep.subr.mxu0 0.0
    %530 = vmatpush1.msra.mxu0 0.0
    %531 = vmatprep.subr.mxu0 0.0
    %532 = vmatpush1.msra.mxu0 0.0
    %533 = vmatprep.subr.mxu0 0.0
    %534 = vmatpush1.msra.mxu0 0.0
    %535 = vmatprep.subr.mxu0 0.0
    %536 = vmatpush1.msra.mxu0 0.0
    %537 = vmatprep.subr.mxu0 0.0
    %538 = vmatpush1.msra.mxu0 0.0
    %539 = vmatprep.subr.mxu0 0.0
    %540 = vmatpush1.msra.mxu0 0.0
    %541 = vmatprep.subr.mxu0 0.0
    %542 = vmatpush1.msra.mxu0 0.0
    %543 = vmatprep.subr.mxu0 0.0
    %544 = vmatpush1.msra.mxu0 0.0
    %545 = vmatprep.subr.mxu0 0.0
    %546 = vmatpush1.msra.mxu0 0.0
    %547 = vmatprep.subr.mxu0 0.0
    %548 = vmatpush1.msra.mxu0 0.0
    %549 = vmatprep.subr.mxu0 0.0
    %550 = vmatpush1.msra.mxu0 %v512
    %551 = vmatprep.subr.mxu0 0.0
    %552 = vmatpush1.msra.mxu0 %v510
    %553 = vmatprep.subr.mxu0 0.0
    %554 = vmatpush2.msra.mxu0 0.0
    %555 = vmatprep.subr.mxu0 0.0
    %556 = vmatpush2.msra.mxu0 0.0
    %557 = vmatprep.subr.mxu0 0.0
    %558 = vmatpush2.msra.mxu0 0.0
    %559 = vmatprep.subr.mxu0 0.0
    %560 = vmatpush2.msra.mxu0 0.0
    %561 = vmatprep.subr.mxu0 0.0
    %562 = vmatpush2.msra.mxu0 0.0
    %563 = vmatprep.subr.mxu0 0.0
    %564 = vmatpush2.msra.mxu0 0.0
    %565 = vmatprep.subr.mxu0 0.0
    %566 = vmatpush2.msra.mxu0 0.0
    %567 = vmatprep.subr.mxu0 0.0
    %568 = vmatpush2.msra.mxu0 0.0
    %569 = vmatprep.subr.mxu0 0.0
    %570 = vmatpush2.msra.mxu0 0.0
    %571 = vmatprep.subr.mxu0 0.0
    %572 = vmatpush2.msra.mxu0 0.0
    %573 = vmatprep.subr.mxu0 0.0
    %574 = vmatpush2.msra.mxu0 0.0
    %575 = vmatprep.subr.mxu0 0.0
    %576 = vmatpush2.msra.mxu0 0.0
    %577 = vmatprep.subr.mxu0 0.0
    %578 = vmatpush2.msra.mxu0 0.0
    %579 = vmatprep.subr.mxu0 0.0
    %580 = vmatpush2.msra.mxu0 0.0
    %581 = vmatprep.subr.mxu0 0.0
    %582 = vmatpush2.msra.mxu0 0.0
    %583 = vmatprep.subr.mxu0 0.0
    %584 = vmatpush2.msra.mxu0 0.0
    %585 = vmatprep.mubr.f32.mxu0 0.0
    %586 = vmatmul.mubr.f32.gmra.mxu0 %v516
    %v587 = vpop.f32.mrf.mxu0
    %v588 = vadd.f32 0.0, %v587
    %v589 = vpop.f32.mrf.mxu0
    %590 = vmatprep.mubr.f32.mxu0 0.0
    %591 = vmatmul.mubr.f32.gmra.mxu0 %v519
    %v592 = vpop.f32.mrf.mxu0
    %v593 = vadd.f32 0.0, %v592
    %v594 = vpop.f32.mrf.mxu0
    %595 = vdwg.mxu0
    %598 = vrot.lane.b32.xlu0 %v390, 64
    %v599 = vpop.permute.xlu0 %598
    %600 = vrot.lane.b32.xlu0 %v391, 64
    %v601 = vpop.permute.xlu0 %600
    %v605 = vsel %vm363, %v384, 0
    %v608 = vsel %vm363, %v385, 0
    %610 = vmatprep.subr.mxu0 0.0
    %611 = vmatpush1.msra.mxu0 0.0
    %612 = vmatprep.subr.mxu0 0.0
    %613 = vmatpush1.msra.mxu0 0.0
    %614 = vmatprep.subr.mxu0 0.0
    %615 = vmatpush1.msra.mxu0 0.0
    %616 = vmatprep.subr.mxu0 0.0
    %617 = vmatpush1.msra.mxu0 0.0
    %618 = vmatprep.subr.mxu0 0.0
    %619 = vmatpush1.msra.mxu0 0.0
    %620 = vmatprep.subr.mxu0 0.0
    %621 = vmatpush1.msra.mxu0 0.0
    %622 = vmatprep.subr.mxu0 0.0
    %623 = vmatpush1.msra.mxu0 0.0
    %624 = vmatprep.subr.mxu0 0.0
    %625 = vmatpush1.msra.mxu0 0.0
    %626 = vmatprep.subr.mxu0 0.0
    %627 = vmatpush1.msra.mxu0 0.0
    %628 = vmatprep.subr.mxu0 0.0
    %629 = vmatpush1.msra.mxu0 0.0
    %630 = vmatprep.subr.mxu0 0.0
    %631 = vmatpush1.msra.mxu0 0.0
    %632 = vmatprep.subr.mxu0 0.0
    %633 = vmatpush1.msra.mxu0 0.0
    %634 = vmatprep.subr.mxu0 0.0
    %635 = vmatpush1.msra.mxu0 0.0
    %636 = vmatprep.subr.mxu0 0.0
    %637 = vmatpush1.msra.mxu0 0.0
    %638 = vmatprep.subr.mxu0 0.0
    %639 = vmatpush1.msra.mxu0 %v601
    %640 = vmatprep.subr.mxu0 0.0
    %641 = vmatpush1.msra.mxu0 %v599
    %642 = vmatprep.subr.mxu0 0.0
    %643 = vmatpush2.msra.mxu0 0.0
    %644 = vmatprep.subr.mxu0 0.0
    %645 = vmatpush2.msra.mxu0 0.0
    %646 = vmatprep.subr.mxu0 0.0
    %647 = vmatpush2.msra.mxu0 0.0
    %648 = vmatprep.subr.mxu0 0.0
    %649 = vmatpush2.msra.mxu0 0.0
    %650 = vmatprep.subr.mxu0 0.0
    %651 = vmatpush2.msra.mxu0 0.0
    %652 = vmatprep.subr.mxu0 0.0
    %653 = vmatpush2.msra.mxu0 0.0
    %654 = vmatprep.subr.mxu0 0.0
    %655 = vmatpush2.msra.mxu0 0.0
    %656 = vmatprep.subr.mxu0 0.0
    %657 = vmatpush2.msra.mxu0 0.0
    %658 = vmatprep.subr.mxu0 0.0
    %659 = vmatpush2.msra.mxu0 0.0
    %660 = vmatprep.subr.mxu0 0.0
    %661 = vmatpush2.msra.mxu0 0.0
    %662 = vmatprep.subr.mxu0 0.0
    %663 = vmatpush2.msra.mxu0 0.0
    %664 = vmatprep.subr.mxu0 0.0
    %665 = vmatpush2.msra.mxu0 0.0
    %666 = vmatprep.subr.mxu0 0.0
    %667 = vmatpush2.msra.mxu0 0.0
    %668 = vmatprep.subr.mxu0 0.0
    %669 = vmatpush2.msra.mxu0 0.0
    %670 = vmatprep.subr.mxu0 0.0
    %671 = vmatpush2.msra.mxu0 0.0
    %672 = vmatprep.subr.mxu0 0.0
    %673 = vmatpush2.msra.mxu0 0.0
    %674 = vmatprep.mubr.f32.mxu0 0.0
    %675 = vmatmul.mubr.f32.gmra.mxu0 %v605
    %v676 = vpop.f32.mrf.mxu0
    %v677 = vadd.f32 %v588, %v676
    %v678 = vpop.f32.mrf.mxu0
    %679 = vmatprep.mubr.f32.mxu0 0.0
    %680 = vmatmul.mubr.f32.gmra.mxu0 %v608
    %v681 = vpop.f32.mrf.mxu0
    %v682 = vadd.f32 %v593, %v681
    %v683 = vpop.f32.mrf.mxu0
    %684 = vdwg.mxu0
    %v685 = vmul.f32 %v244, %v95
    %v686 = vmul.f32 %v245, %v95
    %v688 = vsel %vm158, %v685, 0
    %v691 = vsel %vm158, %v686, 0
    %693 = vmatprep.subr.mxu0 0.0
    %694 = vmatpush1.xpose.msra.mxu0 0.0
    %695 = vmatprep.subr.mxu0 0.0
    %696 = vmatpush1.xpose.msra.mxu0 0.0
    %697 = vmatprep.subr.mxu0 0.0
    %698 = vmatpush1.xpose.msra.mxu0 0.0
    %699 = vmatprep.subr.mxu0 0.0
    %700 = vmatpush1.xpose.msra.mxu0 0.0
    %701 = vmatprep.subr.mxu0 0.0
    %702 = vmatpush1.xpose.msra.mxu0 0.0
    %703 = vmatprep.subr.mxu0 0.0
    %704 = vmatpush1.xpose.msra.mxu0 0.0
    %705 = vmatprep.subr.mxu0 0.0
    %706 = vmatpush1.xpose.msra.mxu0 0.0
    %707 = vmatprep.subr.mxu0 0.0
    %708 = vmatpush1.xpose.msra.mxu0 0.0
    %709 = vmatprep.subr.mxu0 0.0
    %710 = vmatpush1.xpose.msra.mxu0 0.0
    %711 = vmatprep.subr.mxu0 0.0
    %712 = vmatpush1.xpose.msra.mxu0 0.0
    %713 = vmatprep.subr.mxu0 0.0
    %714 = vmatpush1.xpose.msra.mxu0 0.0
    %715 = vmatprep.subr.mxu0 0.0
    %716 = vmatpush1.xpose.msra.mxu0 0.0
    %717 = vmatprep.subr.mxu0 0.0
    %718 = vmatpush1.xpose.msra.mxu0 0.0
    %719 = vmatprep.subr.mxu0 0.0
    %720 = vmatpush1.xpose.msra.mxu0 0.0
    %721 = vmatprep.subr.mxu0 0.0
    %722 = vmatpush1.xpose.msra.mxu0 %v282
    %723 = vmatprep.subr.mxu0 0.0
    %724 = vmatpush1.xpose.msra.mxu0 %v280
    %725 = vmatprep.subr.mxu0 0.0
    %726 = vmatpush2.xpose.msra.mxu0 0.0
    %727 = vmatprep.subr.mxu0 0.0
    %728 = vmatpush2.xpose.msra.mxu0 0.0
    %729 = vmatprep.subr.mxu0 0.0
    %730 = vmatpush2.xpose.msra.mxu0 0.0
    %731 = vmatprep.subr.mxu0 0.0
    %732 = vmatpush2.xpose.msra.mxu0 0.0
    %733 = vmatprep.subr.mxu0 0.0
    %734 = vmatpush2.xpose.msra.mxu0 0.0
    %735 = vmatprep.subr.mxu0 0.0
    %736 = vmatpush2.xpose.msra.mxu0 0.0
    %737 = vmatprep.subr.mxu0 0.0
    %738 = vmatpush2.xpose.msra.mxu0 0.0
    %739 = vmatprep.subr.mxu0 0.0
    %740 = vmatpush2.xpose.msra.mxu0 0.0
    %741 = vmatprep.subr.mxu0 0.0
    %742 = vmatpush2.xpose.msra.mxu0 0.0
    %743 = vmatprep.subr.mxu0 0.0
    %744 = vmatpush2.xpose.msra.mxu0 0.0
    %745 = vmatprep.subr.mxu0 0.0
    %746 = vmatpush2.xpose.msra.mxu0 0.0
    %747 = vmatprep.subr.mxu0 0.0
    %748 = vmatpush2.xpose.msra.mxu0 0.0
    %749 = vmatprep.subr.mxu0 0.0
    %750 = vmatpush2.xpose.msra.mxu0 0.0
    %751 = vmatprep.subr.mxu0 0.0
    %752 = vmatpush2.xpose.msra.mxu0 0.0
    %753 = vmatprep.subr.mxu0 0.0
    %754 = vmatpush2.xpose.msra.mxu0 0.0
    %755 = vmatprep.subr.mxu0 0.0
    %756 = vmatpush2.xpose.msra.mxu0 0.0
    %757 = vmatprep.mubr.f32.mxu0 0.0
    %758 = vmatmul.mubr.f32.gmra.mxu0 %v688
    %v759 = vpop.f32.mrf.mxu0
    %v760 = vadd.f32 0.0, %v759
    %v761 = vpop.f32.mrf.mxu0
    %762 = vmatprep.mubr.f32.mxu0 0.0
    %763 = vmatmul.mubr.f32.gmra.mxu0 %v691
    %v764 = vpop.f32.mrf.mxu0
    %v765 = vadd.f32 0.0, %v764
    %v766 = vpop.f32.mrf.mxu0
    %767 = vdwg.mxu0
    %v768 = vmul.f32 %v760, 0.35355338
    %v769 = vmul.f32 %v765, 0.35355338
    %v770 = vadd.f32 %v768, %v142
    %v771 = vadd.f32 %v769, %v143
    %v772 = vsel %vm363, %v770, -inf
    %773 = vmax.xlane.f32.xlu0 %v772
    %v774 = vpop.xlane.xlu0 %773
    %v775 = vsel %vm363, %v771, -inf
    %776 = vmax.xlane.f32.xlu0 %v775
    %v777 = vpop.xlane.xlu0 %776
    %v778 = vsub.f32 %v770, %v774
    %v779 = vsub.f32 %v771, %v777
    %v780 = vmul.f32 %v778, 1.442695
    %v781 = vpow.pop %v780
    %v782 = vmul.f32 %v779, 1.442695
    %v783 = vpow.pop %v782
    %v784 = vsel %vm363, %v781, 0.0
    %785 = vadd.xlane.f32.xlu0 %v784
    %v786 = vpop.xlane.xlu0 %785
    %v787 = vsel %vm363, %v783, 0.0
    %788 = vadd.xlane.f32.xlu0 %v787
    %v789 = vpop.xlane.xlu0 %788
    %v790 = vrcp.pop %v786
    %v791 = vrcp.pop %v789
    %v792 = vmul.f32 %v781, %v790
    %v793 = vmul.f32 %v783, %v791
    %795 = vrot.lane.b32.xlu0 %v95, 64
    %v796 = vpop.permute.xlu0 %795
    %v798 = vmul.f32 %v264, %v796
    %v799 = vmul.f32 %v265, %v796
    %802 = vrot.lane.b32.xlu0 %v798, 64
    %v803 = vpop.permute.xlu0 %802
    %804 = vrot.lane.b32.xlu0 %v799, 64
    %v805 = vpop.permute.xlu0 %804
    %v809 = vsel %vm363, %v792, 0
    %v812 = vsel %vm363, %v793, 0
    %814 = vmatprep.subr.mxu0 0.0
    %815 = vmatpush1.msra.mxu0 0.0
    %816 = vmatprep.subr.mxu0 0.0
    %817 = vmatpush1.msra.mxu0 0.0
    %818 = vmatprep.subr.mxu0 0.0
    %819 = vmatpush1.msra.mxu0 0.0
    %820 = vmatprep.subr.mxu0 0.0
    %821 = vmatpush1.msra.mxu0 0.0
    %822 = vmatprep.subr.mxu0 0.0
    %823 = vmatpush1.msra.mxu0 0.0
    %824 = vmatprep.subr.mxu0 0.0
    %825 = vmatpush1.msra.mxu0 0.0
    %826 = vmatprep.subr.mxu0 0.0
    %827 = vmatpush1.msra.mxu0 0.0
    %828 = vmatprep.subr.mxu0 0.0
    %829 = vmatpush1.msra.mxu0 0.0
    %830 = vmatprep.subr.mxu0 0.0
    %831 = vmatpush1.msra.mxu0 0.0
    %832 = vmatprep.subr.mxu0 0.0
    %833 = vmatpush1.msra.mxu0 0.0
    %834 = vmatprep.subr.mxu0 0.0
    %835 = vmatpush1.msra.mxu0 0.0
    %836 = vmatprep.subr.mxu0 0.0
    %837 = vmatpush1.msra.mxu0 0.0
    %838 = vmatprep.subr.mxu0 0.0
    %839 = vmatpush1.msra.mxu0 0.0
    %840 = vmatprep.subr.mxu0 0.0
    %841 = vmatpush1.msra.mxu0 0.0
    %842 = vmatprep.subr.mxu0 0.0
    %843 = vmatpush1.msra.mxu0 %v805
    %844 = vmatprep.subr.mxu0 0.0
    %845 = vmatpush1.msra.mxu0 %v803
    %846 = vmatprep.subr.mxu0 0.0
    %847 = vmatpush2.msra.mxu0 0.0
    %848 = vmatprep.subr.mxu0 0.0
    %849 = vmatpush2.msra.mxu0 0.0
    %850 = vmatprep.subr.mxu0 0.0
    %851 = vmatpush2.msra.mxu0 0.0
    %852 = vmatprep.subr.mxu0 0.0
    %853 = vmatpush2.msra.mxu0 0.0
    %854 = vmatprep.subr.mxu0 0.0
    %855 = vmatpush2.msra.mxu0 0.0
    %856 = vmatprep.subr.mxu0 0.0
    %857 = vmatpush2.msra.mxu0 0.0
    %858 = vmatprep.subr.mxu0 0.0
    %859 = vmatpush2.msra.mxu0 0.0
    %860 = vmatprep.subr.mxu0 0.0
    %861 = vmatpush2.msra.mxu0 0.0
    %862 = vmatprep.subr.mxu0 0.0
    %863 = vmatpush2.msra.mxu0 0.0
    %864 = vmatprep.subr.mxu0 0.0
    %865 = vmatpush2.msra.mxu0 0.0
    %866 = vmatprep.subr.mxu0 0.0
    %867 = vmatpush2.msra.mxu0 0.0
    %868 = vmatprep.subr.mxu0 0.0
    %869 = vmatpush2.msra.mxu0 0.0
    %870 = vmatprep.subr.mxu0 0.0
    %871 = vmatpush2.msra.mxu0 0.0
    %872 = vmatprep.subr.mxu0 0.0
    %873 = vmatpush2.msra.mxu0 0.0
    %874 = vmatprep.subr.mxu0 0.0
    %875 = vmatpush2.msra.mxu0 0.0
    %876 = vmatprep.subr.mxu0 0.0
    %877 = vmatpush2.msra.mxu0 0.0
    %878 = vmatprep.mubr.f32.mxu0 0.0
    %879 = vmatmul.mubr.f32.gmra.mxu0 %v809
    %v880 = vpop.f32.mrf.mxu0
    %v881 = vadd.f32 0.0, %v880
    %v882 = vpop.f32.mrf.mxu0
    %883 = vmatprep.mubr.f32.mxu0 0.0
    %884 = vmatmul.mubr.f32.gmra.mxu0 %v812
    %v885 = vpop.f32.mrf.mxu0
    %v886 = vadd.f32 0.0, %v885
    %v887 = vpop.f32.mrf.mxu0
    %888 = vdwg.mxu0
    %v889 = vadd.f32 %v677, %v881
    %v890 = vadd.f32 %v682, %v886
    %v891 = vmul.f32 %v244, %v100
    %v892 = vmul.f32 %v245, %v100
    %v894 = vsel %vm158, %v891, 0
    %v897 = vsel %vm158, %v892, 0
    %899 = vmatprep.subr.mxu0 0.0
    %900 = vmatpush1.xpose.msra.mxu0 0.0
    %901 = vmatprep.subr.mxu0 0.0
    %902 = vmatpush1.xpose.msra.mxu0 0.0
    %903 = vmatprep.subr.mxu0 0.0
    %904 = vmatpush1.xpose.msra.mxu0 0.0
    %905 = vmatprep.subr.mxu0 0.0
    %906 = vmatpush1.xpose.msra.mxu0 0.0
    %907 = vmatprep.subr.mxu0 0.0
    %908 = vmatpush1.xpose.msra.mxu0 0.0
    %909 = vmatprep.subr.mxu0 0.0
    %910 = vmatpush1.xpose.msra.mxu0 0.0
    %911 = vmatprep.subr.mxu0 0.0
    %912 = vmatpush1.xpose.msra.mxu0 0.0
    %913 = vmatprep.subr.mxu0 0.0
    %914 = vmatpush1.xpose.msra.mxu0 0.0
    %915 = vmatprep.subr.mxu0 0.0
    %916 = vmatpush1.xpose.msra.mxu0 0.0
    %917 = vmatprep.subr.mxu0 0.0
    %918 = vmatpush1.xpose.msra.mxu0 0.0
    %919 = vmatprep.subr.mxu0 0.0
    %920 = vmatpush1.xpose.msra.mxu0 0.0
    %921 = vmatprep.subr.mxu0 0.0
    %922 = vmatpush1.xpose.msra.mxu0 0.0
    %923 = vmatprep.subr.mxu0 0.0
    %924 = vmatpush1.xpose.msra.mxu0 0.0
    %925 = vmatprep.subr.mxu0 0.0
    %926 = vmatpush1.xpose.msra.mxu0 0.0
    %927 = vmatprep.subr.mxu0 0.0
    %928 = vmatpush1.xpose.msra.mxu0 %v282
    %929 = vmatprep.subr.mxu0 0.0
    %930 = vmatpush1.xpose.msra.mxu0 %v280
    %931 = vmatprep.subr.mxu0 0.0
    %932 = vmatpush2.xpose.msra.mxu0 0.0
    %933 = vmatprep.subr.mxu0 0.0
    %934 = vmatpush2.xpose.msra.mxu0 0.0
    %935 = vmatprep.subr.mxu0 0.0
    %936 = vmatpush2.xpose.msra.mxu0 0.0
    %937 = vmatprep.subr.mxu0 0.0
    %938 = vmatpush2.xpose.msra.mxu0 0.0
    %939 = vmatprep.subr.mxu0 0.0
    %940 = vmatpush2.xpose.msra.mxu0 0.0
    %941 = vmatprep.subr.mxu0 0.0
    %942 = vmatpush2.xpose.msra.mxu0 0.0
    %943 = vmatprep.subr.mxu0 0.0
    %944 = vmatpush2.xpose.msra.mxu0 0.0
    %945 = vmatprep.subr.mxu0 0.0
    %946 = vmatpush2.xpose.msra.mxu0 0.0
    %947 = vmatprep.subr.mxu0 0.0
    %948 = vmatpush2.xpose.msra.mxu0 0.0
    %949 = vmatprep.subr.mxu0 0.0
    %950 = vmatpush2.xpose.msra.mxu0 0.0
    %951 = vmatprep.subr.mxu0 0.0
    %952 = vmatpush2.xpose.msra.mxu0 0.0
    %953 = vmatprep.subr.mxu0 0.0
    %954 = vmatpush2.xpose.msra.mxu0 0.0
    %955 = vmatprep.subr.mxu0 0.0
    %956 = vmatpush2.xpose.msra.mxu0 0.0
    %957 = vmatprep.subr.mxu0 0.0
    %958 = vmatpush2.xpose.msra.mxu0 0.0
    %959 = vmatprep.subr.mxu0 0.0
    %960 = vmatpush2.xpose.msra.mxu0 0.0
    %961 = vmatprep.subr.mxu0 0.0
    %962 = vmatpush2.xpose.msra.mxu0 0.0
    %963 = vmatprep.mubr.f32.mxu0 0.0
    %964 = vmatmul.mubr.f32.gmra.mxu0 %v894
    %v965 = vpop.f32.mrf.mxu0
    %v966 = vadd.f32 0.0, %v965
    %v967 = vpop.f32.mrf.mxu0
    %968 = vmatprep.mubr.f32.mxu0 0.0
    %969 = vmatmul.mubr.f32.gmra.mxu0 %v897
    %v970 = vpop.f32.mrf.mxu0
    %v971 = vadd.f32 0.0, %v970
    %v972 = vpop.f32.mrf.mxu0
    %973 = vdwg.mxu0
    %v974 = vmul.f32 %v966, 0.35355338
    %v975 = vmul.f32 %v971, 0.35355338
    %v976 = vadd.f32 %v974, %v142
    %v977 = vadd.f32 %v975, %v143
    %v978 = vsel %vm363, %v976, -inf
    %979 = vmax.xlane.f32.xlu0 %v978
    %v980 = vpop.xlane.xlu0 %979
    %v981 = vsel %vm363, %v977, -inf
    %982 = vmax.xlane.f32.xlu0 %v981
    %v983 = vpop.xlane.xlu0 %982
    %v984 = vsub.f32 %v976, %v980
    %v985 = vsub.f32 %v977, %v983
    %v986 = vmul.f32 %v984, 1.442695
    %v987 = vpow.pop %v986
    %v988 = vmul.f32 %v985, 1.442695
    %v989 = vpow.pop %v988
    %v990 = vsel %vm363, %v987, 0.0
    %991 = vadd.xlane.f32.xlu0 %v990
    %v992 = vpop.xlane.xlu0 %991
    %v993 = vsel %vm363, %v989, 0.0
    %994 = vadd.xlane.f32.xlu0 %v993
    %v995 = vpop.xlane.xlu0 %994
    %v996 = vrcp.pop %v992
    %v997 = vrcp.pop %v995
    %v998 = vmul.f32 %v987, %v996
    %v999 = vmul.f32 %v989, %v997
    %1001 = vrot.lane.b32.xlu0 %v100, 64
    %v1002 = vpop.permute.xlu0 %1001
    %v1004 = vmul.f32 %v264, %v1002
    %v1005 = vmul.f32 %v265, %v1002
    %1008 = vrot.lane.b32.xlu0 %v1004, 64
    %v1009 = vpop.permute.xlu0 %1008
    %1010 = vrot.lane.b32.xlu0 %v1005, 64
    %v1011 = vpop.permute.xlu0 %1010
    %v1015 = vsel %vm363, %v998, 0
    %v1018 = vsel %vm363, %v999, 0
    %1020 = vmatprep.subr.mxu0 0.0
    %1021 = vmatpush1.msra.mxu0 0.0
    %1022 = vmatprep.subr.mxu0 0.0
    %1023 = vmatpush1.msra.mxu0 0.0
    %1024 = vmatprep.subr.mxu0 0.0
    %1025 = vmatpush1.msra.mxu0 0.0
    %1026 = vmatprep.subr.mxu0 0.0
    %1027 = vmatpush1.msra.mxu0 0.0
    %1028 = vmatprep.subr.mxu0 0.0
    %1029 = vmatpush1.msra.mxu0 0.0
    %1030 = vmatprep.subr.mxu0 0.0
    %1031 = vmatpush1.msra.mxu0 0.0
    %1032 = vmatprep.subr.mxu0 0.0
    %1033 = vmatpush1.msra.mxu0 0.0
    %1034 = vmatprep.subr.mxu0 0.0
    %1035 = vmatpush1.msra.mxu0 0.0
    %1036 = vmatprep.subr.mxu0 0.0
    %1037 = vmatpush1.msra.mxu0 0.0
    %1038 = vmatprep.subr.mxu0 0.0
    %1039 = vmatpush1.msra.mxu0 0.0
    %1040 = vmatprep.subr.mxu0 0.0
    %1041 = vmatpush1.msra.mxu0 0.0
    %1042 = vmatprep.subr.mxu0 0.0
    %1043 = vmatpush1.msra.mxu0 0.0
    %1044 = vmatprep.subr.mxu0 0.0
    %1045 = vmatpush1.msra.mxu0 0.0
    %1046 = vmatprep.subr.mxu0 0.0
    %1047 = vmatpush1.msra.mxu0 0.0
    %1048 = vmatprep.subr.mxu0 0.0
    %1049 = vmatpush1.msra.mxu0 %v1011
    %1050 = vmatprep.subr.mxu0 0.0
    %1051 = vmatpush1.msra.mxu0 %v1009
    %1052 = vmatprep.subr.mxu0 0.0
    %1053 = vmatpush2.msra.mxu0 0.0
    %1054 = vmatprep.subr.mxu0 0.0
    %1055 = vmatpush2.msra.mxu0 0.0
    %1056 = vmatprep.subr.mxu0 0.0
    %1057 = vmatpush2.msra.mxu0 0.0
    %1058 = vmatprep.subr.mxu0 0.0
    %1059 = vmatpush2.msra.mxu0 0.0
    %1060 = vmatprep.subr.mxu0 0.0
    %1061 = vmatpush2.msra.mxu0 0.0
    %1062 = vmatprep.subr.mxu0 0.0
    %1063 = vmatpush2.msra.mxu0 0.0
    %1064 = vmatprep.subr.mxu0 0.0
    %1065 = vmatpush2.msra.mxu0 0.0
    %1066 = vmatprep.subr.mxu0 0.0
    %1067 = vmatpush2.msra.mxu0 0.0
    %1068 = vmatprep.subr.mxu0 0.0
    %1069 = vmatpush2.msra.mxu0 0.0
    %1070 = vmatprep.subr.mxu0 0.0
    %1071 = vmatpush2.msra.mxu0 0.0
    %1072 = vmatprep.subr.mxu0 0.0
    %1073 = vmatpush2.msra.mxu0 0.0
    %1074 = vmatprep.subr.mxu0 0.0
    %1075 = vmatpush2.msra.mxu0 0.0
    %1076 = vmatprep.subr.mxu0 0.0
    %1077 = vmatpush2.msra.mxu0 0.0
    %1078 = vmatprep.subr.mxu0 0.0
    %1079 = vmatpush2.msra.mxu0 0.0
    %1080 = vmatprep.subr.mxu0 0.0
    %1081 = vmatpush2.msra.mxu0 0.0
    %1082 = vmatprep.subr.mxu0 0.0
    %1083 = vmatpush2.msra.mxu0 0.0
    %1084 = vmatprep.mubr.f32.mxu0 0.0
    %1085 = vmatmul.mubr.f32.gmra.mxu0 %v1015
    %v1086 = vpop.f32.mrf.mxu0
    %v1087 = vadd.f32 0.0, %v1086
    %v1088 = vpop.f32.mrf.mxu0
    %1089 = vmatprep.mubr.f32.mxu0 0.0
    %1090 = vmatmul.mubr.f32.gmra.mxu0 %v1018
    %v1091 = vpop.f32.mrf.mxu0
    %v1092 = vadd.f32 0.0, %v1091
    %v1093 = vpop.f32.mrf.mxu0
    %1094 = vdwg.mxu0
    %v1095 = vadd.f32 %v889, %v1087
    %v1096 = vadd.f32 %v890, %v1092
    %v1097 = vlaneseq
    %v1098 = vshrl.u32 %v1097, 7
    %v1099 = vsub.s32 3, %v1098
    %v1100 = vrot.slane %v156, %v1099
    %1105 = vrot.lane.b32.xlu0 %v144, 32
    %v1106 = vpop.permute.xlu0 %1105
    %1107 = vrot.lane.b32.xlu0 %v147, 32
    %v1108 = vpop.permute.xlu0 %1107
    %1109 = vrot.lane.b32.xlu0 %v150, 32
    %v1110 = vpop.permute.xlu0 %1109
    %1111 = vrot.lane.b32.xlu0 %v153, 32
    %v1112 = vpop.permute.xlu0 %1111
    %v1118 = vsel %vm158, %v1095, 0
    %v1121 = vsel %vm158, %v1096, 0
    %1123 = vmatprep.subr.mxu0 0.0
    %1124 = vmatpush1.msra.mxu0 0.0
    %1125 = vmatprep.subr.mxu0 0.0
    %1126 = vmatpush1.msra.mxu0 0.0
    %1127 = vmatprep.subr.mxu0 0.0
    %1128 = vmatpush1.msra.mxu0 0.0
    %1129 = vmatprep.subr.mxu0 0.0
    %1130 = vmatpush1.msra.mxu0 0.0
    %1131 = vmatprep.subr.mxu0 0.0
    %1132 = vmatpush1.msra.mxu0 0.0
    %1133 = vmatprep.subr.mxu0 0.0
    %1134 = vmatpush1.msra.mxu0 0.0
    %1135 = vmatprep.subr.mxu0 0.0
    %1136 = vmatpush1.msra.mxu0 0.0
    %1137 = vmatprep.subr.mxu0 0.0
    %1138 = vmatpush1.msra.mxu0 0.0
    %1139 = vmatprep.subr.mxu0 0.0
    %1140 = vmatpush1.msra.mxu0 0.0
    %1141 = vmatprep.subr.mxu0 0.0
    %1142 = vmatpush1.msra.mxu0 0.0
    %1143 = vmatprep.subr.mxu0 0.0
    %1144 = vmatpush1.msra.mxu0 0.0
    %1145 = vmatprep.subr.mxu0 0.0
    %1146 = vmatpush1.msra.mxu0 0.0
    %1147 = vmatprep.subr.mxu0 0.0
    %1148 = vmatpush1.msra.mxu0 %v1112
    %1149 = vmatprep.subr.mxu0 0.0
    %1150 = vmatpush1.msra.mxu0 %v1110
    %1151 = vmatprep.subr.mxu0 0.0
    %1152 = vmatpush1.msra.mxu0 %v1108
    %1153 = vmatprep.subr.mxu0 0.0
    %1154 = vmatpush1.msra.mxu0 %v1106
    %1155 = vmatprep.subr.mxu0 0.0
    %1156 = vmatpush2.msra.mxu0 0.0
    %1157 = vmatprep.subr.mxu0 0.0
    %1158 = vmatpush2.msra.mxu0 0.0
    %1159 = vmatprep.subr.mxu0 0.0
    %1160 = vmatpush2.msra.mxu0 0.0
    %1161 = vmatprep.subr.mxu0 0.0
    %1162 = vmatpush2.msra.mxu0 0.0
    %1163 = vmatprep.subr.mxu0 0.0
    %1164 = vmatpush2.msra.mxu0 0.0
    %1165 = vmatprep.subr.mxu0 0.0
    %1166 = vmatpush2.msra.mxu0 0.0
    %1167 = vmatprep.subr.mxu0 0.0
    %1168 = vmatpush2.msra.mxu0 0.0
    %1169 = vmatprep.subr.mxu0 0.0
    %1170 = vmatpush2.msra.mxu0 0.0
    %1171 = vmatprep.subr.mxu0 0.0
    %1172 = vmatpush2.msra.mxu0 0.0
    %1173 = vmatprep.subr.mxu0 0.0
    %1174 = vmatpush2.msra.mxu0 0.0
    %1175 = vmatprep.subr.mxu0 0.0
    %1176 = vmatpush2.msra.mxu0 0.0
    %1177 = vmatprep.subr.mxu0 0.0
    %1178 = vmatpush2.msra.mxu0 0.0
    %1179 = vmatprep.subr.mxu0 0.0
    %1180 = vmatpush2.msra.mxu0 0.0
    %1181 = vmatprep.subr.mxu0 0.0
    %1182 = vmatpush2.msra.mxu0 0.0
    %1183 = vmatprep.subr.mxu0 0.0
    %1184 = vmatpush2.msra.mxu0 0.0
    %1185 = vmatprep.subr.mxu0 0.0
    %1186 = vmatpush2.msra.mxu0 0.0
    %1187 = vmatprep.mubr.f32.mxu0 0.0
    %1188 = vmatmul.mubr.f32.gmra.mxu0 %v1118
    %v1189 = vpop.f32.mrf.mxu0
    %v1190 = vadd.f32 %v1100, %v1189
    %v1191 = vpop.f32.mrf.mxu0
    %1192 = vmatprep.mubr.f32.mxu0 0.0
    %1193 = vmatmul.mubr.f32.gmra.mxu0 %v1121
    %v1194 = vpop.f32.mrf.mxu0
    %v1195 = vadd.f32 %v1100, %v1194
    %v1196 = vpop.f32.mrf.mxu0
    %1197 = vdwg.mxu0
    %v1198 = vadd.f32 %v75, %v1190
    %v1199 = vadd.f32 %v76, %v1195
    %v1200 = vsel %vm158, %v1198, 0.0
    %1201 = vadd.xlane.f32.xlu0 %v1200
    %v1202 = vpop.xlane.xlu0 %1201
    %v1203 = vsel %vm158, %v1199, 0.0
    %1204 = vadd.xlane.f32.xlu0 %v1203
    %v1205 = vpop.xlane.xlu0 %1204
    %v1206 = vrcp.pop 32.0
    %v1207 = vmul.f32 %v1202, %v1206
    %v1208 = vmul.f32 %v1205, %v1206
    %v1209 = vsub.f32 %v1198, %v1207
    %v1210 = vsub.f32 %v1199, %v1208
    %v1211 = vmul.f32 %v1209, %v1209
    %v1212 = vmul.f32 %v1210, %v1210
    %v1213 = vsel %vm158, %v1211, 0.0
    %1214 = vadd.xlane.f32.xlu0 %v1213
    %v1215 = vpop.xlane.xlu0 %1214
    %v1216 = vsel %vm158, %v1212, 0.0
    %1217 = vadd.xlane.f32.xlu0 %v1216
    %v1218 = vpop.xlane.xlu0 %1217
    %v1219 = vmul.f32 %v1215, %v1206
    %v1220 = vmul.f32 %v1218, %v1206
    %v1221 = vadd.f32 %v1219, 1e-05
    %v1222 = vadd.f32 %v1220, 1e-05
    %v1223 = vrsqrt.pop %v1221
    %v1224 = vrsqrt.pop %v1222
    %v1225 = vmul.f32 %v1209, %v1223
    %v1226 = vmul.f32 %v1210, %v1224
    %v1227 = vlaneseq
    %v1228 = vshrl.u32 %v1227, 7
    %v1229 = vsub.s32 2, %v1228
    %v1230 = vrot.slane %v157, %v1229
    %v1231 = vmul.f32 %v1225, %v1230
    %v1232 = vmul.f32 %v1226, %v1230
    %v1233 = vlaneseq
    %v1234 = vshrl.u32 %v1233, 7
    %v1235 = vsub.s32 3, %v1234
    %v1236 = vrot.slane %v157, %v1235
    %v1237 = vadd.f32 %v1231, %v1236
    %v1238 = vadd.f32 %v1232, %v1236
    %v1239 = vlaneseq
    %v1240 = vshrl.u32 %v1239, 7
    %v1241 = vsub.s32 4, %v1240
    %v1242 = vrot.slane %v156, %v1241
    %v1244 = vsel %vm158, %v1237, 0
    %v1247 = vsel %vm158, %v1238, 0
    %1249 = vmatprep.subr.mxu0 0.0
    %1250 = vmatpush1.msra.mxu0 0.0
    %1251 = vmatprep.subr.mxu0 0.0
    %1252 = vmatpush1.msra.mxu0 0.0
    %1253 = vmatprep.subr.mxu0 0.0
    %1254 = vmatpush1.msra.mxu0 0.0
    %1255 = vmatprep.subr.mxu0 0.0
    %1256 = vmatpush1.msra.mxu0 0.0
    %1257 = vmatprep.subr.mxu0 0.0
    %1258 = vmatpush1.msra.mxu0 0.0
    %1259 = vmatprep.subr.mxu0 0.0
    %1260 = vmatpush1.msra.mxu0 0.0
    %1261 = vmatprep.subr.mxu0 0.0
    %1262 = vmatpush1.msra.mxu0 0.0
    %1263 = vmatprep.subr.mxu0 0.0
    %1264 = vmatpush1.msra.mxu0 0.0
    %1265 = vmatprep.subr.mxu0 0.0
    %1266 = vmatpush1.msra.mxu0 0.0
    %1267 = vmatprep.subr.mxu0 0.0
    %1268 = vmatpush1.msra.mxu0 0.0
    %1269 = vmatprep.subr.mxu0 0.0
    %1270 = vmatpush1.msra.mxu0 0.0
    %1271 = vmatprep.subr.mxu0 0.0
    %1272 = vmatpush1.msra.mxu0 0.0
    %1273 = vmatprep.subr.mxu0 0.0
    %1274 = vmatpush1.msra.mxu0 %v154
    %1275 = vmatprep.subr.mxu0 0.0
    %1276 = vmatpush1.msra.mxu0 %v151
    %1277 = vmatprep.subr.mxu0 0.0
    %1278 = vmatpush1.msra.mxu0 %v148
    %1279 = vmatprep.subr.mxu0 0.0
    %1280 = vmatpush1.msra.mxu0 %v145
    %1281 = vmatprep.subr.mxu0 0.0
    %1282 = vmatpush2.msra.mxu0 0.0
    %1283 = vmatprep.subr.mxu0 0.0
    %1284 = vmatpush2.msra.mxu0 0.0
    %1285 = vmatprep.subr.mxu0 0.0
    %1286 = vmatpush2.msra.mxu0 0.0
    %1287 = vmatprep.subr.mxu0 0.0
    %1288 = vmatpush2.msra.mxu0 0.0
    %1289 = vmatprep.subr.mxu0 0.0
    %1290 = vmatpush2.msra.mxu0 0.0
    %1291 = vmatprep.subr.mxu0 0.0
    %1292 = vmatpush2.msra.mxu0 0.0
    %1293 = vmatprep.subr.mxu0 0.0
    %1294 = vmatpush2.msra.mxu0 0.0
    %1295 = vmatprep.subr.mxu0 0.0
    %1296 = vmatpush2.msra.mxu0 0.0
    %1297 = vmatprep.subr.mxu0 0.0
    %1298 = vmatpush2.msra.mxu0 0.0
    %1299 = vmatprep.subr.mxu0 0.0
    %1300 = vmatpush2.msra.mxu0 0.0
    %1301 = vmatprep.subr.mxu0 0.0
    %1302 = vmatpush2.msra.mxu0 0.0
    %1303 = vmatprep.subr.mxu0 0.0
    %1304 = vmatpush2.msra.mxu0 0.0
    %1305 = vmatprep.subr.mxu0 0.0
    %1306 = vmatpush2.msra.mxu0 0.0
    %1307 = vmatprep.subr.mxu0 0.0
    %1308 = vmatpush2.msra.mxu0 0.0
    %1309 = vmatprep.subr.mxu0 0.0
    %1310 = vmatpush2.msra.mxu0 0.0
    %1311 = vmatprep.subr.mxu0 0.0
    %1312 = vmatpush2.msra.mxu0 0.0
    %1313 = vmatprep.mubr.f32.mxu0 0.0
    %1314 = vmatmul.mubr.f32.gmra.mxu0 %v1244
    %v1315 = vpop.f32.mrf.mxu0
    %v1316 = vadd.f32 %v1242, %v1315
    %v1317 = vpop.f32.mrf.mxu0
    %1318 = vmatprep.mubr.f32.mxu0 0.0
    %1319 = vmatmul.mubr.f32.gmra.mxu0 %v1247
    %v1320 = vpop.f32.mrf.mxu0
    %v1321 = vadd.f32 %v1242, %v1320
    %v1322 = vpop.f32.mrf.mxu0
    %1323 = vdwg.mxu0
    %1328 = vrot.lane.b32.xlu0 %v145, 96
    %v1329 = vpop.permute.xlu0 %1328
    %1330 = vrot.lane.b32.xlu0 %v148, 96
    %v1331 = vpop.permute.xlu0 %1330
    %1332 = vrot.lane.b32.xlu0 %v151, 96
    %v1333 = vpop.permute.xlu0 %1332
    %1334 = vrot.lane.b32.xlu0 %v154, 96
    %v1335 = vpop.permute.xlu0 %1334
    %v1341 = vsel %vm158, %v77, 0
    %v1344 = vsel %vm158, %v78, 0
    %1346 = vmatprep.subr.mxu0 0.0
    %1347 = vmatpush1.msra.mxu0 0.0
    %1348 = vmatprep.subr.mxu0 0.0
    %1349 = vmatpush1.msra.mxu0 0.0
    %1350 = vmatprep.subr.mxu0 0.0
    %1351 = vmatpush1.msra.mxu0 0.0
    %1352 = vmatprep.subr.mxu0 0.0
    %1353 = vmatpush1.msra.mxu0 0.0
    %1354 = vmatprep.subr.mxu0 0.0
    %1355 = vmatpush1.msra.mxu0 0.0
    %1356 = vmatprep.subr.mxu0 0.0
    %1357 = vmatpush1.msra.mxu0 0.0
    %1358 = vmatprep.subr.mxu0 0.0
    %1359 = vmatpush1.msra.mxu0 0.0
    %1360 = vmatprep.subr.mxu0 0.0
    %1361 = vmatpush1.msra.mxu0 0.0
    %1362 = vmatprep.subr.mxu0 0.0
    %1363 = vmatpush1.msra.mxu0 0.0
    %1364 = vmatprep.subr.mxu0 0.0
    %1365 = vmatpush1.msra.mxu0 0.0
    %1366 = vmatprep.subr.mxu0 0.0
    %1367 = vmatpush1.msra.mxu0 0.0
    %1368 = vmatprep.subr.mxu0 0.0
    %1369 = vmatpush1.msra.mxu0 0.0
    %1370 = vmatprep.subr.mxu0 0.0
    %1371 = vmatpush1.msra.mxu0 %v1335
    %1372 = vmatprep.subr.mxu0 0.0
    %1373 = vmatpush1.msra.mxu0 %v1333
    %1374 = vmatprep.subr.mxu0 0.0
    %1375 = vmatpush1.msra.mxu0 %v1331
    %1376 = vmatprep.subr.mxu0 0.0
    %1377 = vmatpush1.msra.mxu0 %v1329
    %1378 = vmatprep.subr.mxu0 0.0
    %1379 = vmatpush2.msra.mxu0 0.0
    %1380 = vmatprep.subr.mxu0 0.0
    %1381 = vmatpush2.msra.mxu0 0.0
    %1382 = vmatprep.subr.mxu0 0.0
    %1383 = vmatpush2.msra.mxu0 0.0
    %1384 = vmatprep.subr.mxu0 0.0
    %1385 = vmatpush2.msra.mxu0 0.0
    %1386 = vmatprep.subr.mxu0 0.0
    %1387 = vmatpush2.msra.mxu0 0.0
    %1388 = vmatprep.subr.mxu0 0.0
    %1389 = vmatpush2.msra.mxu0 0.0
    %1390 = vmatprep.subr.mxu0 0.0
    %1391 = vmatpush2.msra.mxu0 0.0
    %1392 = vmatprep.subr.mxu0 0.0
    %1393 = vmatpush2.msra.mxu0 0.0
    %1394 = vmatprep.subr.mxu0 0.0
    %1395 = vmatpush2.msra.mxu0 0.0
    %1396 = vmatprep.subr.mxu0 0.0
    %1397 = vmatpush2.msra.mxu0 0.0
    %1398 = vmatprep.subr.mxu0 0.0
    %1399 = vmatpush2.msra.mxu0 0.0
    %1400 = vmatprep.subr.mxu0 0.0
    %1401 = vmatpush2.msra.mxu0 0.0
    %1402 = vmatprep.subr.mxu0 0.0
    %1403 = vmatpush2.msra.mxu0 0.0
    %1404 = vmatprep.subr.mxu0 0.0
    %1405 = vmatpush2.msra.mxu0 0.0
    %1406 = vmatprep.subr.mxu0 0.0
    %1407 = vmatpush2.msra.mxu0 0.0
    %1408 = vmatprep.subr.mxu0 0.0
    %1409 = vmatpush2.msra.mxu0 0.0
    %1410 = vmatprep.mubr.f32.mxu0 0.0
    %1411 = vmatmul.mubr.f32.gmra.mxu0 %v1341
    %v1412 = vpop.f32.mrf.mxu0
    %v1413 = vadd.f32 0.0, %v1412
    %v1414 = vpop.f32.mrf.mxu0
    %1415 = vmatprep.mubr.f32.mxu0 0.0
    %1416 = vmatmul.mubr.f32.gmra.mxu0 %v1344
    %v1417 = vpop.f32.mrf.mxu0
    %v1418 = vadd.f32 0.0, %v1417
    %v1419 = vpop.f32.mrf.mxu0
    %1420 = vdwg.mxu0
    %v1421 = vlaneseq
    %v1422 = vshrl.u32 %v1421, 7
    %v1423 = vsub.s32 5, %v1422
    %v1424 = vrot.slane %v156, %v1423
    %v1425 = vadd.f32 %v1413, %v1424
    %v1426 = vadd.f32 %v1418, %v1424
    %v1427 = vlaneseq
    %v1428 = vshrl.u32 %v1427, 7
    %v1429 = vsub.s32 6, %v1428
    %v1430 = vrot.slane %v156, %v1429
    %1432 = vrot.lane.b32.xlu0 %v1430, 32
    %v1433 = vpop.permute.xlu0 %1432
    %v1435 = vadd.f32 %v1413, %v1433
    %v1436 = vadd.f32 %v1418, %v1433
    %v1437 = vmul.f32 %v1316, %v85
    %v1438 = vmul.f32 %v1321, %v85
    %v1440 = vsel %vm158, %v1437, 0
    %v1443 = vsel %vm158, %v1438, 0
    %v1446 = vsel %vm158, %v1425, 0
    %v1449 = vsel %vm158, %v1426, 0
    %1451 = vmatprep.subr.mxu0 0.0
    %1452 = vmatpush1.xpose.msra.mxu0 0.0
    %1453 = vmatprep.subr.mxu0 0.0
    %1454 = vmatpush1.xpose.msra.mxu0 0.0
    %1455 = vmatprep.subr.mxu0 0.0
    %1456 = vmatpush1.xpose.msra.mxu0 0.0
    %1457 = vmatprep.subr.mxu0 0.0
    %1458 = vmatpush1.xpose.msra.mxu0 0.0
    %1459 = vmatprep.subr.mxu0 0.0
    %1460 = vmatpush1.xpose.msra.mxu0 0.0
    %1461 = vmatprep.subr.mxu0 0.0
    %1462 = vmatpush1.xpose.msra.mxu0 0.0
    %1463 = vmatprep.subr.mxu0 0.0
    %1464 = vmatpush1.xpose.msra.mxu0 0.0
    %1465 = vmatprep.subr.mxu0 0.0
    %1466 = vmatpush1.xpose.msra.mxu0 0.0
    %1467 = vmatprep.subr.mxu0 0.0
    %1468 = vmatpush1.xpose.msra.mxu0 0.0
    %1469 = vmatprep.subr.mxu0 0.0
    %1470 = vmatpush1.xpose.msra.mxu0 0.0
    %1471 = vmatprep.subr.mxu0 0.0
    %1472 = vmatpush1.xpose.msra.mxu0 0.0
    %1473 = vmatprep.subr.mxu0 0.0
    %1474 = vmatpush1.xpose.msra.mxu0 0.0
    %1475 = vmatprep.subr.mxu0 0.0
    %1476 = vmatpush1.xpose.msra.mxu0 0.0
    %1477 = vmatprep.subr.mxu0 0.0
    %1478 = vmatpush1.xpose.msra.mxu0 0.0
    %1479 = vmatprep.subr.mxu0 0.0
    %1480 = vmatpush1.xpose.msra.mxu0 %v1449
    %1481 = vmatprep.subr.mxu0 0.0
    %1482 = vmatpush1.xpose.msra.mxu0 %v1446
    %1483 = vmatprep.subr.mxu0 0.0
    %1484 = vmatpush2.xpose.msra.mxu0 0.0
    %1485 = vmatprep.subr.mxu0 0.0
    %1486 = vmatpush2.xpose.msra.mxu0 0.0
    %1487 = vmatprep.subr.mxu0 0.0
    %1488 = vmatpush2.xpose.msra.mxu0 0.0
    %1489 = vmatprep.subr.mxu0 0.0
    %1490 = vmatpush2.xpose.msra.mxu0 0.0
    %1491 = vmatprep.subr.mxu0 0.0
    %1492 = vmatpush2.xpose.msra.mxu0 0.0
    %1493 = vmatprep.subr.mxu0 0.0
    %1494 = vmatpush2.xpose.msra.mxu0 0.0
    %1495 = vmatprep.subr.mxu0 0.0
    %1496 = vmatpush2.xpose.msra.mxu0 0.0
    %1497 = vmatprep.subr.mxu0 0.0
    %1498 = vmatpush2.xpose.msra.mxu0 0.0
    %1499 = vmatprep.subr.mxu0 0.0
    %1500 = vmatpush2.xpose.msra.mxu0 0.0
    %1501 = vmatprep.subr.mxu0 0.0
    %1502 = vmatpush2.xpose.msra.mxu0 0.0
    %1503 = vmatprep.subr.mxu0 0.0
    %1504 = vmatpush2.xpose.msra.mxu0 0.0
    %1505 = vmatprep.subr.mxu0 0.0
    %1506 = vmatpush2.xpose.msra.mxu0 0.0
    %1507 = vmatprep.subr.mxu0 0.0
    %1508 = vmatpush2.xpose.msra.mxu0 0.0
    %1509 = vmatprep.subr.mxu0 0.0
    %1510 = vmatpush2.xpose.msra.mxu0 0.0
    %1511 = vmatprep.subr.mxu0 0.0
    %1512 = vmatpush2.xpose.msra.mxu0 0.0
    %1513 = vmatprep.subr.mxu0 0.0
    %1514 = vmatpush2.xpose.msra.mxu0 0.0
    %1515 = vmatprep.mubr.f32.mxu0 0.0
    %1516 = vmatmul.mubr.f32.gmra.mxu0 %v1440
    %v1517 = vpop.f32.mrf.mxu0
    %v1518 = vadd.f32 0.0, %v1517
    %v1519 = vpop.f32.mrf.mxu0
    %1520 = vmatprep.mubr.f32.mxu0 0.0
    %1521 = vmatmul.mubr.f32.gmra.mxu0 %v1443
    %v1522 = vpop.f32.mrf.mxu0
    %v1523 = vadd.f32 0.0, %v1522
    %v1524 = vpop.f32.mrf.mxu0
    %1525 = vdwg.mxu0
    %v1526 = vmul.f32 %v1518, 0.35355338
    %v1527 = vmul.f32 %v1523, 0.35355338
    %v1528 = vadd.f32 %v1526, %v142
    %v1529 = vadd.f32 %v1527, %v143
    %v1530 = vsel %vm363, %v1528, -inf
    %1531 = vmax.xlane.f32.xlu0 %v1530
    %v1532 = vpop.xlane.xlu0 %1531
    %v1533 = vsel %vm363, %v1529, -inf
    %1534 = vmax.xlane.f32.xlu0 %v1533
    %v1535 = vpop.xlane.xlu0 %1534
    %v1536 = vsub.f32 %v1528, %v1532
    %v1537 = vsub.f32 %v1529, %v1535
    %v1538 = vmul.f32 %v1536, 1.442695
    %v1539 = vpow.pop %v1538
    %v1540 = vmul.f32 %v1537, 1.442695
    %v1541 = vpow.pop %v1540
    %v1542 = vsel %vm363, %v1539, 0.0
    %1543 = vadd.xlane.f32.xlu0 %v1542
    %v1544 = vpop.xlane.xlu0 %1543
    %v1545 = vsel %vm363, %v1541, 0.0
    %1546 = vadd.xlane.f32.xlu0 %v1545
    %v1547 = vpop.xlane.xlu0 %1546
    %v1548 = vrcp.pop %v1544
    %v1549 = vrcp.pop %v1547
    %v1550 = vmul.f32 %v1539, %v1548
    %v1551 = vmul.f32 %v1541, %v1549
    %1552 = vrot.lane.b32.xlu0 %v85, 32
    %v1553 = vpop.permute.xlu0 %1552
    %v1555 = vmul.f32 %v1435, %v1553
    %v1556 = vmul.f32 %v1436, %v1553
    %v1557 = vmul.f32 %v1316, %v90
    %v1558 = vmul.f32 %v1321, %v90
    %v1560 = vsel %vm158, %v1557, 0
    %v1563 = vsel %vm158, %v1558, 0
    %1565 = vmatprep.subr.mxu0 0.0
    %1566 = vmatpush1.xpose.msra.mxu0 0.0
    %1567 = vmatprep.subr.mxu0 0.0
    %1568 = vmatpush1.xpose.msra.mxu0 0.0
    %1569 = vmatprep.subr.mxu0 0.0
    %1570 = vmatpush1.xpose.msra.mxu0 0.0
    %1571 = vmatprep.subr.mxu0 0.0
    %1572 = vmatpush1.xpose.msra.mxu0 0.0
    %1573 = vmatprep.subr.mxu0 0.0
    %1574 = vmatpush1.xpose.msra.mxu0 0.0
    %1575 = vmatprep.subr.mxu0 0.0
    %1576 = vmatpush1.xpose.msra.mxu0 0.0
    %1577 = vmatprep.subr.mxu0 0.0
    %1578 = vmatpush1.xpose.msra.mxu0 0.0
    %1579 = vmatprep.subr.mxu0 0.0
    %1580 = vmatpush1.xpose.msra.mxu0 0.0
    %1581 = vmatprep.subr.mxu0 0.0
    %1582 = vmatpush1.xpose.msra.mxu0 0.0
    %1583 = vmatprep.subr.mxu0 0.0
    %1584 = vmatpush1.xpose.msra.mxu0 0.0
    %1585 = vmatprep.subr.mxu0 0.0
    %1586 = vmatpush1.xpose.msra.mxu0 0.0
    %1587 = vmatprep.subr.mxu0 0.0
    %1588 = vmatpush1.xpose.msra.mxu0 0.0
    %1589 = vmatprep.subr.mxu0 0.0
    %1590 = vmatpush1.xpose.msra.mxu0 0.0
    %1591 = vmatprep.subr.mxu0 0.0
    %1592 = vmatpush1.xpose.msra.mxu0 0.0
    %1593 = vmatprep.subr.mxu0 0.0
    %1594 = vmatpush1.xpose.msra.mxu0 %v1449
    %1595 = vmatprep.subr.mxu0 0.0
    %1596 = vmatpush1.xpose.msra.mxu0 %v1446
    %1597 = vmatprep.subr.mxu0 0.0
    %1598 = vmatpush2.xpose.msra.mxu0 0.0
    %1599 = vmatprep.subr.mxu0 0.0
    %1600 = vmatpush2.xpose.msra.mxu0 0.0
    %1601 = vmatprep.subr.mxu0 0.0
    %1602 = vmatpush2.xpose.msra.mxu0 0.0
    %1603 = vmatprep.subr.mxu0 0.0
    %1604 = vmatpush2.xpose.msra.mxu0 0.0
    %1605 = vmatprep.subr.mxu0 0.0
    %1606 = vmatpush2.xpose.msra.mxu0 0.0
    %1607 = vmatprep.subr.mxu0 0.0
    %1608 = vmatpush2.xpose.msra.mxu0 0.0
    %1609 = vmatprep.subr.mxu0 0.0
    %1610 = vmatpush2.xpose.msra.mxu0 0.0
    %1611 = vmatprep.subr.mxu0 0.0
    %1612 = vmatpush2.xpose.msra.mxu0 0.0
    %1613 = vmatprep.subr.mxu0 0.0
    %1614 = vmatpush2.xpose.msra.mxu0 0.0
    %1615 = vmatprep.subr.mxu0 0.0
    %1616 = vmatpush2.xpose.msra.mxu0 0.0
    %1617 = vmatprep.subr.mxu0 0.0
    %1618 = vmatpush2.xpose.msra.mxu0 0.0
    %1619 = vmatprep.subr.mxu0 0.0
    %1620 = vmatpush2.xpose.msra.mxu0 0.0
    %1621 = vmatprep.subr.mxu0 0.0
    %1622 = vmatpush2.xpose.msra.mxu0 0.0
    %1623 = vmatprep.subr.mxu0 0.0
    %1624 = vmatpush2.xpose.msra.mxu0 0.0
    %1625 = vmatprep.subr.mxu0 0.0
    %1626 = vmatpush2.xpose.msra.mxu0 0.0
    %1627 = vmatprep.subr.mxu0 0.0
    %1628 = vmatpush2.xpose.msra.mxu0 0.0
    %1629 = vmatprep.mubr.f32.mxu0 0.0
    %1630 = vmatmul.mubr.f32.gmra.mxu0 %v1560
    %v1631 = vpop.f32.mrf.mxu0
    %v1632 = vadd.f32 0.0, %v1631
    %v1633 = vpop.f32.mrf.mxu0
    %1634 = vmatprep.mubr.f32.mxu0 0.0
    %1635 = vmatmul.mubr.f32.gmra.mxu0 %v1563
    %v1636 = vpop.f32.mrf.mxu0
    %v1637 = vadd.f32 0.0, %v1636
    %v1638 = vpop.f32.mrf.mxu0
    %1639 = vdwg.mxu0
    %v1640 = vmul.f32 %v1632, 0.35355338
    %v1641 = vmul.f32 %v1637, 0.35355338
    %v1642 = vadd.f32 %v1640, %v142
    %v1643 = vadd.f32 %v1641, %v143
    %v1644 = vsel %vm363, %v1642, -inf
    %1645 = vmax.xlane.f32.xlu0 %v1644
    %v1646 = vpop.xlane.xlu0 %1645
    %v1647 = vsel %vm363, %v1643, -inf
    %1648 = vmax.xlane.f32.xlu0 %v1647
    %v1649 = vpop.xlane.xlu0 %1648
    %v1650 = vsub.f32 %v1642, %v1646
    %v1651 = vsub.f32 %v1643, %v1649
    %v1652 = vmul.f32 %v1650, 1.442695
    %v1653 = vpow.pop %v1652
    %v1654 = vmul.f32 %v1651, 1.442695
    %v1655 = vpow.pop %v1654
    %v1656 = vsel %vm363, %v1653, 0.0
    %1657 = vadd.xlane.f32.xlu0 %v1656
    %v1658 = vpop.xlane.xlu0 %1657
    %v1659 = vsel %vm363, %v1655, 0.0
    %1660 = vadd.xlane.f32.xlu0 %v1659
    %v1661 = vpop.xlane.xlu0 %1660
    %v1662 = vrcp.pop %v1658
    %v1663 = vrcp.pop %v1661
    %v1664 = vmul.f32 %v1653, %v1662
    %v1665 = vmul.f32 %v1655, %v1663
    %1666 = vrot.lane.b32.xlu0 %v90, 32
    %v1667 = vpop.permute.xlu0 %1666
    %v1669 = vmul.f32 %v1435, %v1667
    %v1670 = vmul.f32 %v1436, %v1667
    %1673 = vrot.lane.b32.xlu0 %v1669, 96
    %v1674 = vpop.permute.xlu0 %1673
    %1675 = vrot.lane.b32.xlu0 %v1670, 96
    %v1676 = vpop.permute.xlu0 %1675
    %v1680 = vsel %vm363, %v1664, 0
    %v1683 = vsel %vm363, %v1665, 0
    %1685 = vmatprep.subr.mxu0 0.0
    %1686 = vmatpush1.msra.mxu0 0.0
    %1687 = vmatprep.subr.mxu0 0.0
    %1688 = vmatpush1.msra.mxu0 0.0
    %1689 = vmatprep.subr.mxu0 0.0
    %1690 = vmatpush1.msra.mxu0 0.0
    %1691 = vmatprep.subr.mxu0 0.0
    %1692 = vmatpush1.msra.mxu0 0.0
    %1693 = vmatprep.subr.mxu0 0.0
    %1694 = vmatpush1.msra.mxu0 0.0
    %1695 = vmatprep.subr.mxu0 0.0
    %1696 = vmatpush1.msra.mxu0 0.0
    %1697 = vmatprep.subr.mxu0 0.0
    %1698 = vmatpush1.msra.mxu0 0.0
    %1699 = vmatprep.subr.mxu0 0.0
    %1700 = vmatpush1.msra.mxu0 0.0
    %1701 = vmatprep.subr.mxu0 0.0
    %1702 = vmatpush1.msra.mxu0 0.0
    %1703 = vmatprep.subr.mxu0 0.0
    %1704 = vmatpush1.msra.mxu0 0.0
    %1705 = vmatprep.subr.mxu0 0.0
    %1706 = vmatpush1.msra.mxu0 0.0
    %1707 = vmatprep.subr.mxu0 0.0
    %1708 = vmatpush1.msra.mxu0 0.0
    %1709 = vmatprep.subr.mxu0 0.0
    %1710 = vmatpush1.msra.mxu0 0.0
    %1711 = vmatprep.subr.mxu0 0.0
    %1712 = vmatpush1.msra.mxu0 0.0
    %1713 = vmatprep.subr.mxu0 0.0
    %1714 = vmatpush1.msra.mxu0 %v1676
    %1715 = vmatprep.subr.mxu0 0.0
    %1716 = vmatpush1.msra.mxu0 %v1674
    %1717 = vmatprep.subr.mxu0 0.0
    %1718 = vmatpush2.msra.mxu0 0.0
    %1719 = vmatprep.subr.mxu0 0.0
    %1720 = vmatpush2.msra.mxu0 0.0
    %1721 = vmatprep.subr.mxu0 0.0
    %1722 = vmatpush2.msra.mxu0 0.0
    %1723 = vmatprep.subr.mxu0 0.0
    %1724 = vmatpush2.msra.mxu0 0.0
    %1725 = vmatprep.subr.mxu0 0.0
    %1726 = vmatpush2.msra.mxu0 0.0
    %1727 = vmatprep.subr.mxu0 0.0
    %1728 = vmatpush2.msra.mxu0 0.0
    %1729 = vmatprep.subr.mxu0 0.0
    %1730 = vmatpush2.msra.mxu0 0.0
    %1731 = vmatprep.subr.mxu0 0.0
    %1732 = vmatpush2.msra.mxu0 0.0
    %1733 = vmatprep.subr.mxu0 0.0
    %1734 = vmatpush2.msra.mxu0 0.0
    %1735 = vmatprep.subr.mxu0 0.0
    %1736 = vmatpush2.msra.mxu0 0.0
    %1737 = vmatprep.subr.mxu0 0.0
    %1738 = vmatpush2.msra.mxu0 0.0
    %1739 = vmatprep.subr.mxu0 0.0
    %1740 = vmatpush2.msra.mxu0 0.0
    %1741 = vmatprep.subr.mxu0 0.0
    %1742 = vmatpush2.msra.mxu0 0.0
    %1743 = vmatprep.subr.mxu0 0.0
    %1744 = vmatpush2.msra.mxu0 0.0
    %1745 = vmatprep.subr.mxu0 0.0
    %1746 = vmatpush2.msra.mxu0 0.0
    %1747 = vmatprep.subr.mxu0 0.0
    %1748 = vmatpush2.msra.mxu0 0.0
    %1749 = vmatprep.mubr.f32.mxu0 0.0
    %1750 = vmatmul.mubr.f32.gmra.mxu0 %v1680
    %v1751 = vpop.f32.mrf.mxu0
    %v1752 = vadd.f32 0.0, %v1751
    %v1753 = vpop.f32.mrf.mxu0
    %1754 = vmatprep.mubr.f32.mxu0 0.0
    %1755 = vmatmul.mubr.f32.gmra.mxu0 %v1683
    %v1756 = vpop.f32.mrf.mxu0
    %v1757 = vadd.f32 0.0, %v1756
    %v1758 = vpop.f32.mrf.mxu0
    %1759 = vdwg.mxu0
    %1762 = vrot.lane.b32.xlu0 %v1555, 96
    %v1763 = vpop.permute.xlu0 %1762
    %1764 = vrot.lane.b32.xlu0 %v1556, 96
    %v1765 = vpop.permute.xlu0 %1764
    %v1769 = vsel %vm363, %v1550, 0
    %v1772 = vsel %vm363, %v1551, 0
    %1774 = vmatprep.subr.mxu0 0.0
    %1775 = vmatpush1.msra.mxu0 0.0
    %1776 = vmatprep.subr.mxu0 0.0
    %1777 = vmatpush1.msra.mxu0 0.0
    %1778 = vmatprep.subr.mxu0 0.0
    %1779 = vmatpush1.msra.mxu0 0.0
    %1780 = vmatprep.subr.mxu0 0.0
    %1781 = vmatpush1.msra.mxu0 0.0
    %1782 = vmatprep.subr.mxu0 0.0
    %1783 = vmatpush1.msra.mxu0 0.0
    %1784 = vmatprep.subr.mxu0 0.0
    %1785 = vmatpush1.msra.mxu0 0.0
    %1786 = vmatprep.subr.mxu0 0.0
    %1787 = vmatpush1.msra.mxu0 0.0
    %1788 = vmatprep.subr.mxu0 0.0
    %1789 = vmatpush1.msra.mxu0 0.0
    %1790 = vmatprep.subr.mxu0 0.0
    %1791 = vmatpush1.msra.mxu0 0.0
    %1792 = vmatprep.subr.mxu0 0.0
    %1793 = vmatpush1.msra.mxu0 0.0
    %1794 = vmatprep.subr.mxu0 0.0
    %1795 = vmatpush1.msra.mxu0 0.0
    %1796 = vmatprep.subr.mxu0 0.0
    %1797 = vmatpush1.msra.mxu0 0.0
    %1798 = vmatprep.subr.mxu0 0.0
    %1799 = vmatpush1.msra.mxu0 0.0
    %1800 = vmatprep.subr.mxu0 0.0
    %1801 = vmatpush1.msra.mxu0 0.0
    %1802 = vmatprep.subr.mxu0 0.0
    %1803 = vmatpush1.msra.mxu0 %v1765
    %1804 = vmatprep.subr.mxu0 0.0
    %1805 = vmatpush1.msra.mxu0 %v1763
    %1806 = vmatprep.subr.mxu0 0.0
    %1807 = vmatpush2.msra.mxu0 0.0
    %1808 = vmatprep.subr.mxu0 0.0
    %1809 = vmatpush2.msra.mxu0 0.0
    %1810 = vmatprep.subr.mxu0 0.0
    %1811 = vmatpush2.msra.mxu0 0.0
    %1812 = vmatprep.subr.mxu0 0.0
    %1813 = vmatpush2.msra.mxu0 0.0
    %1814 = vmatprep.subr.mxu0 0.0
    %1815 = vmatpush2.msra.mxu0 0.0
    %1816 = vmatprep.subr.mxu0 0.0
    %1817 = vmatpush2.msra.mxu0 0.0
    %1818 = vmatprep.subr.mxu0 0.0
    %1819 = vmatpush2.msra.mxu0 0.0
    %1820 = vmatprep.subr.mxu0 0.0
    %1821 = vmatpush2.msra.mxu0 0.0
    %1822 = vmatprep.subr.mxu0 0.0
    %1823 = vmatpush2.msra.mxu0 0.0
    %1824 = vmatprep.subr.mxu0 0.0
    %1825 = vmatpush2.msra.mxu0 0.0
    %1826 = vmatprep.subr.mxu0 0.0
    %1827 = vmatpush2.msra.mxu0 0.0
    %1828 = vmatprep.subr.mxu0 0.0
    %1829 = vmatpush2.msra.mxu0 0.0
    %1830 = vmatprep.subr.mxu0 0.0
    %1831 = vmatpush2.msra.mxu0 0.0
    %1832 = vmatprep.subr.mxu0 0.0
    %1833 = vmatpush2.msra.mxu0 0.0
    %1834 = vmatprep.subr.mxu0 0.0
    %1835 = vmatpush2.msra.mxu0 0.0
    %1836 = vmatprep.subr.mxu0 0.0
    %1837 = vmatpush2.msra.mxu0 0.0
    %1838 = vmatprep.mubr.f32.mxu0 0.0
    %1839 = vmatmul.mubr.f32.gmra.mxu0 %v1769
    %v1840 = vpop.f32.mrf.mxu0
    %v1841 = vadd.f32 %v1752, %v1840
    %v1842 = vpop.f32.mrf.mxu0
    %1843 = vmatprep.mubr.f32.mxu0 0.0
    %1844 = vmatmul.mubr.f32.gmra.mxu0 %v1772
    %v1845 = vpop.f32.mrf.mxu0
    %v1846 = vadd.f32 %v1757, %v1845
    %v1847 = vpop.f32.mrf.mxu0
    %1848 = vdwg.mxu0
    %v1849 = vmul.f32 %v1316, %v95
    %v1850 = vmul.f32 %v1321, %v95
    %v1852 = vsel %vm158, %v1849, 0
    %v1855 = vsel %vm158, %v1850, 0
    %1857 = vmatprep.subr.mxu0 0.0
    %1858 = vmatpush1.xpose.msra.mxu0 0.0
    %1859 = vmatprep.subr.mxu0 0.0
    %1860 = vmatpush1.xpose.msra.mxu0 0.0
    %1861 = vmatprep.subr.mxu0 0.0
    %1862 = vmatpush1.xpose.msra.mxu0 0.0
    %1863 = vmatprep.subr.mxu0 0.0
    %1864 = vmatpush1.xpose.msra.mxu0 0.0
    %1865 = vmatprep.subr.mxu0 0.0
    %1866 = vmatpush1.xpose.msra.mxu0 0.0
    %1867 = vmatprep.subr.mxu0 0.0
    %1868 = vmatpush1.xpose.msra.mxu0 0.0
    %1869 = vmatprep.subr.mxu0 0.0
    %1870 = vmatpush1.xpose.msra.mxu0 0.0
    %1871 = vmatprep.subr.mxu0 0.0
    %1872 = vmatpush1.xpose.msra.mxu0 0.0
    %1873 = vmatprep.subr.mxu0 0.0
    %1874 = vmatpush1.xpose.msra.mxu0 0.0
    %1875 = vmatprep.subr.mxu0 0.0
    %1876 = vmatpush1.xpose.msra.mxu0 0.0
    %1877 = vmatprep.subr.mxu0 0.0
    %1878 = vmatpush1.xpose.msra.mxu0 0.0
    %1879 = vmatprep.subr.mxu0 0.0
    %1880 = vmatpush1.xpose.msra.mxu0 0.0
    %1881 = vmatprep.subr.mxu0 0.0
    %1882 = vmatpush1.xpose.msra.mxu0 0.0
    %1883 = vmatprep.subr.mxu0 0.0
    %1884 = vmatpush1.xpose.msra.mxu0 0.0
    %1885 = vmatprep.subr.mxu0 0.0
    %1886 = vmatpush1.xpose.msra.mxu0 %v1449
    %1887 = vmatprep.subr.mxu0 0.0
    %1888 = vmatpush1.xpose.msra.mxu0 %v1446
    %1889 = vmatprep.subr.mxu0 0.0
    %1890 = vmatpush2.xpose.msra.mxu0 0.0
    %1891 = vmatprep.subr.mxu0 0.0
    %1892 = vmatpush2.xpose.msra.mxu0 0.0
    %1893 = vmatprep.subr.mxu0 0.0
    %1894 = vmatpush2.xpose.msra.mxu0 0.0
    %1895 = vmatprep.subr.mxu0 0.0
    %1896 = vmatpush2.xpose.msra.mxu0 0.0
    %1897 = vmatprep.subr.mxu0 0.0
    %1898 = vmatpush2.xpose.msra.mxu0 0.0
    %1899 = vmatprep.subr.mxu0 0.0
    %1900 = vmatpush2.xpose.msra.mxu0 0.0
    %1901 = vmatprep.subr.mxu0 0.0
    %1902 = vmatpush2.xpose.msra.mxu0 0.0
    %1903 = vmatprep.subr.mxu0 0.0
    %1904 = vmatpush2.xpose.msra.mxu0 0.0
    %1905 = vmatprep.subr.mxu0 0.0
    %1906 = vmatpush2.xpose.msra.mxu0 0.0
    %1907 = vmatprep.subr.mxu0 0.0
    %1908 = vmatpush2.xpose.msra.mxu0 0.0
    %1909 = vmatprep.subr.mxu0 0.0
    %1910 = vmatpush2.xpose.msra.mxu0 0.0
    %1911 = vmatprep.subr.mxu0 0.0
    %1912 = vmatpush2.xpose.msra.mxu0 0.0
    %1913 = vmatprep.subr.mxu0 0.0
    %1914 = vmatpush2.xpose.msra.mxu0 0.0
    %1915 = vmatprep.subr.mxu0 0.0
    %1916 = vmatpush2.xpose.msra.mxu0 0.0
    %1917 = vmatprep.subr.mxu0 0.0
    %1918 = vmatpush2.xpose.msra.mxu0 0.0
    %1919 = vmatprep.subr.mxu0 0.0
    %1920 = vmatpush2.xpose.msra.mxu0 0.0
    %1921 = vmatprep.mubr.f32.mxu0 0.0
    %1922 = vmatmul.mubr.f32.gmra.mxu0 %v1852
    %v1923 = vpop.f32.mrf.mxu0
    %v1924 = vadd.f32 0.0, %v1923
    %v1925 = vpop.f32.mrf.mxu0
    %1926 = vmatprep.mubr.f32.mxu0 0.0
    %1927 = vmatmul.mubr.f32.gmra.mxu0 %v1855
    %v1928 = vpop.f32.mrf.mxu0
    %v1929 = vadd.f32 0.0, %v1928
    %v1930 = vpop.f32.mrf.mxu0
    %1931 = vdwg.mxu0
    %v1932 = vmul.f32 %v1924, 0.35355338
    %v1933 = vmul.f32 %v1929, 0.35355338
    %v1934 = vadd.f32 %v1932, %v142
    %v1935 = vadd.f32 %v1933, %v143
    %v1936 = vsel %vm363, %v1934, -inf
    %1937 = vmax.xlane.f32.xlu0 %v1936
    %v1938 = vpop.xlane.xlu0 %1937
    %v1939 = vsel %vm363, %v1935, -inf
    %1940 = vmax.xlane.f32.xlu0 %v1939
    %v1941 = vpop.xlane.xlu0 %1940
    %v1942 = vsub.f32 %v1934, %v1938
    %v1943 = vsub.f32 %v1935, %v1941
    %v1944 = vmul.f32 %v1942, 1.442695
    %v1945 = vpow.pop %v1944
    %v1946 = vmul.f32 %v1943, 1.442695
    %v1947 = vpow.pop %v1946
    %v1948 = vsel %vm363, %v1945, 0.0
    %1949 = vadd.xlane.f32.xlu0 %v1948
    %v1950 = vpop.xlane.xlu0 %1949
    %v1951 = vsel %vm363, %v1947, 0.0
    %1952 = vadd.xlane.f32.xlu0 %v1951
    %v1953 = vpop.xlane.xlu0 %1952
    %v1954 = vrcp.pop %v1950
    %v1955 = vrcp.pop %v1953
    %v1956 = vmul.f32 %v1945, %v1954
    %v1957 = vmul.f32 %v1947, %v1955
    %1958 = vrot.lane.b32.xlu0 %v95, 32
    %v1959 = vpop.permute.xlu0 %1958
    %v1961 = vmul.f32 %v1435, %v1959
    %v1962 = vmul.f32 %v1436, %v1959
    %1965 = vrot.lane.b32.xlu0 %v1961, 96
    %v1966 = vpop.permute.xlu0 %1965
    %1967 = vrot.lane.b32.xlu0 %v1962, 96
    %v1968 = vpop.permute.xlu0 %1967
    %v1972 = vsel %vm363, %v1956, 0
    %v1975 = vsel %vm363, %v1957, 0
    %1977 = vmatprep.subr.mxu0 0.0
    %1978 = vmatpush1.msra.mxu0 0.0
    %1979 = vmatprep.subr.mxu0 0.0
    %1980 = vmatpush1.msra.mxu0 0.0
    %1981 = vmatprep.subr.mxu0 0.0
    %1982 = vmatpush1.msra.mxu0 0.0
    %1983 = vmatprep.subr.mxu0 0.0
    %1984 = vmatpush1.msra.mxu0 0.0
    %1985 = vmatprep.subr.mxu0 0.0
    %1986 = vmatpush1.msra.mxu0 0.0
    %1987 = vmatprep.subr.mxu0 0.0
    %1988 = vmatpush1.msra.mxu0 0.0
    %1989 = vmatprep.subr.mxu0 0.0
    %1990 = vmatpush1.msra.mxu0 0.0
    %1991 = vmatprep.subr.mxu0 0.0
    %1992 = vmatpush1.msra.mxu0 0.0
    %1993 = vmatprep.subr.mxu0 0.0
    %1994 = vmatpush1.msra.mxu0 0.0
    %1995 = vmatprep.subr.mxu0 0.0
    %1996 = vmatpush1.msra.mxu0 0.0
    %1997 = vmatprep.subr.mxu0 0.0
    %1998 = vmatpush1.msra.mxu0 0.0
    %1999 = vmatprep.subr.mxu0 0.0
    %2000 = vmatpush1.msra.mxu0 0.0
    %2001 = vmatprep.subr.mxu0 0.0
    %2002 = vmatpush1.msra.mxu0 0.0
    %2003 = vmatprep.subr.mxu0 0.0
    %2004 = vmatpush1.msra.mxu0 0.0
    %2005 = vmatprep.subr.mxu0 0.0
    %2006 = vmatpush1.msra.mxu0 %v1968
    %2007 = vmatprep.subr.mxu0 0.0
    %2008 = vmatpush1.msra.mxu0 %v1966
    %2009 = vmatprep.subr.mxu0 0.0
    %2010 = vmatpush2.msra.mxu0 0.0
    %2011 = vmatprep.subr.mxu0 0.0
    %2012 = vmatpush2.msra.mxu0 0.0
    %2013 = vmatprep.subr.mxu0 0.0
    %2014 = vmatpush2.msra.mxu0 0.0
    %2015 = vmatprep.subr.mxu0 0.0
    %2016 = vmatpush2.msra.mxu0 0.0
    %2017 = vmatprep.subr.mxu0 0.0
    %2018 = vmatpush2.msra.mxu0 0.0
    %2019 = vmatprep.subr.mxu0 0.0
    %2020 = vmatpush2.msra.mxu0 0.0
    %2021 = vmatprep.subr.mxu0 0.0
    %2022 = vmatpush2.msra.mxu0 0.0
    %2023 = vmatprep.subr.mxu0 0.0
    %2024 = vmatpush2.msra.mxu0 0.0
    %2025 = vmatprep.subr.mxu0 0.0
    %2026 = vmatpush2.msra.mxu0 0.0
    %2027 = vmatprep.subr.mxu0 0.0
    %2028 = vmatpush2.msra.mxu0 0.0
    %2029 = vmatprep.subr.mxu0 0.0
    %2030 = vmatpush2.msra.mxu0 0.0
    %2031 = vmatprep.subr.mxu0 0.0
    %2032 = vmatpush2.msra.mxu0 0.0
    %2033 = vmatprep.subr.mxu0 0.0
    %2034 = vmatpush2.msra.mxu0 0.0
    %2035 = vmatprep.subr.mxu0 0.0
    %2036 = vmatpush2.msra.mxu0 0.0
    %2037 = vmatprep.subr.mxu0 0.0
    %2038 = vmatpush2.msra.mxu0 0.0
    %2039 = vmatprep.subr.mxu0 0.0
    %2040 = vmatpush2.msra.mxu0 0.0
    %2041 = vmatprep.mubr.f32.mxu0 0.0
    %2042 = vmatmul.mubr.f32.gmra.mxu0 %v1972
    %v2043 = vpop.f32.mrf.mxu0
    %v2044 = vadd.f32 0.0, %v2043
    %v2045 = vpop.f32.mrf.mxu0
    %2046 = vmatprep.mubr.f32.mxu0 0.0
    %2047 = vmatmul.mubr.f32.gmra.mxu0 %v1975
    %v2048 = vpop.f32.mrf.mxu0
    %v2049 = vadd.f32 0.0, %v2048
    %v2050 = vpop.f32.mrf.mxu0
    %2051 = vdwg.mxu0
    %v2052 = vadd.f32 %v1841, %v2044
    %v2053 = vadd.f32 %v1846, %v2049
    %v2054 = vmul.f32 %v1316, %v100
    %v2055 = vmul.f32 %v1321, %v100
    %v2057 = vsel %vm158, %v2054, 0
    %v2060 = vsel %vm158, %v2055, 0
    %2062 = vmatprep.subr.mxu0 0.0
    %2063 = vmatpush1.xpose.msra.mxu0 0.0
    %2064 = vmatprep.subr.mxu0 0.0
    %2065 = vmatpush1.xpose.msra.mxu0 0.0
    %2066 = vmatprep.subr.mxu0 0.0
    %2067 = vmatpush1.xpose.msra.mxu0 0.0
    %2068 = vmatprep.subr.mxu0 0.0
    %2069 = vmatpush1.xpose.msra.mxu0 0.0
    %2070 = vmatprep.subr.mxu0 0.0
    %2071 = vmatpush1.xpose.msra.mxu0 0.0
    %2072 = vmatprep.subr.mxu0 0.0
    %2073 = vmatpush1.xpose.msra.mxu0 0.0
    %2074 = vmatprep.subr.mxu0 0.0
    %2075 = vmatpush1.xpose.msra.mxu0 0.0
    %2076 = vmatprep.subr.mxu0 0.0
    %2077 = vmatpush1.xpose.msra.mxu0 0.0
    %2078 = vmatprep.subr.mxu0 0.0
    %2079 = vmatpush1.xpose.msra.mxu0 0.0
    %2080 = vmatprep.subr.mxu0 0.0
    %2081 = vmatpush1.xpose.msra.mxu0 0.0
    %2082 = vmatprep.subr.mxu0 0.0
    %2083 = vmatpush1.xpose.msra.mxu0 0.0
    %2084 = vmatprep.subr.mxu0 0.0
    %2085 = vmatpush1.xpose.msra.mxu0 0.0
    %2086 = vmatprep.subr.mxu0 0.0
    %2087 = vmatpush1.xpose.msra.mxu0 0.0
    %2088 = vmatprep.subr.mxu0 0.0
    %2089 = vmatpush1.xpose.msra.mxu0 0.0
    %2090 = vmatprep.subr.mxu0 0.0
    %2091 = vmatpush1.xpose.msra.mxu0 %v1449
    %2092 = vmatprep.subr.mxu0 0.0
    %2093 = vmatpush1.xpose.msra.mxu0 %v1446
    %2094 = vmatprep.subr.mxu0 0.0
    %2095 = vmatpush2.xpose.msra.mxu0 0.0
    %2096 = vmatprep.subr.mxu0 0.0
    %2097 = vmatpush2.xpose.msra.mxu0 0.0
    %2098 = vmatprep.subr.mxu0 0.0
    %2099 = vmatpush2.xpose.msra.mxu0 0.0
    %2100 = vmatprep.subr.mxu0 0.0
    %2101 = vmatpush2.xpose.msra.mxu0 0.0
    %2102 = vmatprep.subr.mxu0 0.0
    %2103 = vmatpush2.xpose.msra.mxu0 0.0
    %2104 = vmatprep.subr.mxu0 0.0
    %2105 = vmatpush2.xpose.msra.mxu0 0.0
    %2106 = vmatprep.subr.mxu0 0.0
    %2107 = vmatpush2.xpose.msra.mxu0 0.0
    %2108 = vmatprep.subr.mxu0 0.0
    %2109 = vmatpush2.xpose.msra.mxu0 0.0
    %2110 = vmatprep.subr.mxu0 0.0
    %2111 = vmatpush2.xpose.msra.mxu0 0.0
    %2112 = vmatprep.subr.mxu0 0.0
    %2113 = vmatpush2.xpose.msra.mxu0 0.0
    %2114 = vmatprep.subr.mxu0 0.0
    %2115 = vmatpush2.xpose.msra.mxu0 0.0
    %2116 = vmatprep.subr.mxu0 0.0
    %2117 = vmatpush2.xpose.msra.mxu0 0.0
    %2118 = vmatprep.subr.mxu0 0.0
    %2119 = vmatpush2.xpose.msra.mxu0 0.0
    %2120 = vmatprep.subr.mxu0 0.0
    %2121 = vmatpush2.xpose.msra.mxu0 0.0
    %2122 = vmatprep.subr.mxu0 0.0
    %2123 = vmatpush2.xpose.msra.mxu0 0.0
    %2124 = vmatprep.subr.mxu0 0.0
    %2125 = vmatpush2.xpose.msra.mxu0 0.0
    %2126 = vmatprep.mubr.f32.mxu0 0.0
    %2127 = vmatmul.mubr.f32.gmra.mxu0 %v2057
    %v2128 = vpop.f32.mrf.mxu0
    %v2129 = vadd.f32 0.0, %v2128
    %v2130 = vpop.f32.mrf.mxu0
    %2131 = vmatprep.mubr.f32.mxu0 0.0
    %2132 = vmatmul.mubr.f32.gmra.mxu0 %v2060
    %v2133 = vpop.f32.mrf.mxu0
    %v2134 = vadd.f32 0.0, %v2133
    %v2135 = vpop.f32.mrf.mxu0
    %2136 = vdwg.mxu0
    %v2137 = vmul.f32 %v2129, 0.35355338
    %v2138 = vmul.f32 %v2134, 0.35355338
    %v2139 = vadd.f32 %v2137, %v142
    %v2140 = vadd.f32 %v2138, %v143
    %v2141 = vsel %vm363, %v2139, -inf
    %2142 = vmax.xlane.f32.xlu0 %v2141
    %v2143 = vpop.xlane.xlu0 %2142
    %v2144 = vsel %vm363, %v2140, -inf
    %2145 = vmax.xlane.f32.xlu0 %v2144
    %v2146 = vpop.xlane.xlu0 %2145
    %v2147 = vsub.f32 %v2139, %v2143
    %v2148 = vsub.f32 %v2140, %v2146
    %v2149 = vmul.f32 %v2147, 1.442695
    %v2150 = vpow.pop %v2149
    %v2151 = vmul.f32 %v2148, 1.442695
    %v2152 = vpow.pop %v2151
    %v2153 = vsel %vm363, %v2150, 0.0
    %2154 = vadd.xlane.f32.xlu0 %v2153
    %v2155 = vpop.xlane.xlu0 %2154
    %v2156 = vsel %vm363, %v2152, 0.0
    %2157 = vadd.xlane.f32.xlu0 %v2156
    %v2158 = vpop.xlane.xlu0 %2157
    %v2159 = vrcp.pop %v2155
    %v2160 = vrcp.pop %v2158
    %v2161 = vmul.f32 %v2150, %v2159
    %v2162 = vmul.f32 %v2152, %v2160
    %2163 = vrot.lane.b32.xlu0 %v100, 32
    %v2164 = vpop.permute.xlu0 %2163
    %v2166 = vmul.f32 %v1435, %v2164
    %v2167 = vmul.f32 %v1436, %v2164
    %2170 = vrot.lane.b32.xlu0 %v2166, 96
    %v2171 = vpop.permute.xlu0 %2170
    %2172 = vrot.lane.b32.xlu0 %v2167, 96
    %v2173 = vpop.permute.xlu0 %2172
    %v2177 = vsel %vm363, %v2161, 0
    %v2180 = vsel %vm363, %v2162, 0
    %2182 = vmatprep.subr.mxu0 0.0
    %2183 = vmatpush1.msra.mxu0 0.0
    %2184 = vmatprep.subr.mxu0 0.0
    %2185 = vmatpush1.msra.mxu0 0.0
    %2186 = vmatprep.subr.mxu0 0.0
    %2187 = vmatpush1.msra.mxu0 0.0
    %2188 = vmatprep.subr.mxu0 0.0
    %2189 = vmatpush1.msra.mxu0 0.0
    %2190 = vmatprep.subr.mxu0 0.0
    %2191 = vmatpush1.msra.mxu0 0.0
    %2192 = vmatprep.subr.mxu0 0.0
    %2193 = vmatpush1.msra.mxu0 0.0
    %2194 = vmatprep.subr.mxu0 0.0
    %2195 = vmatpush1.msra.mxu0 0.0
    %2196 = vmatprep.subr.mxu0 0.0
    %2197 = vmatpush1.msra.mxu0 0.0
    %2198 = vmatprep.subr.mxu0 0.0
    %2199 = vmatpush1.msra.mxu0 0.0
    %2200 = vmatprep.subr.mxu0 0.0
    %2201 = vmatpush1.msra.mxu0 0.0
    %2202 = vmatprep.subr.mxu0 0.0
    %2203 = vmatpush1.msra.mxu0 0.0
    %2204 = vmatprep.subr.mxu0 0.0
    %2205 = vmatpush1.msra.mxu0 0.0
    %2206 = vmatprep.subr.mxu0 0.0
    %2207 = vmatpush1.msra.mxu0 0.0
    %2208 = vmatprep.subr.mxu0 0.0
    %2209 = vmatpush1.msra.mxu0 0.0
    %2210 = vmatprep.subr.mxu0 0.0
    %2211 = vmatpush1.msra.mxu0 %v2173
    %2212 = vmatprep.subr.mxu0 0.0
    %2213 = vmatpush1.msra.mxu0 %v2171
    %2214 = vmatprep.subr.mxu0 0.0
    %2215 = vmatpush2.msra.mxu0 0.0
    %2216 = vmatprep.subr.mxu0 0.0
    %2217 = vmatpush2.msra.mxu0 0.0
    %2218 = vmatprep.subr.mxu0 0.0
    %2219 = vmatpush2.msra.mxu0 0.0
    %2220 = vmatprep.subr.mxu0 0.0
    %2221 = vmatpush2.msra.mxu0 0.0
    %2222 = vmatprep.subr.mxu0 0.0
    %2223 = vmatpush2.msra.mxu0 0.0
    %2224 = vmatprep.subr.mxu0 0.0
    %2225 = vmatpush2.msra.mxu0 0.0
    %2226 = vmatprep.subr.mxu0 0.0
    %2227 = vmatpush2.msra.mxu0 0.0
    %2228 = vmatprep.subr.mxu0 0.0
    %2229 = vmatpush2.msra.mxu0 0.0
    %2230 = vmatprep.subr.mxu0 0.0
    %2231 = vmatpush2.msra.mxu0 0.0
    %2232 = vmatprep.subr.mxu0 0.0
    %2233 = vmatpush2.msra.mxu0 0.0
    %2234 = vmatprep.subr.mxu0 0.0
    %2235 = vmatpush2.msra.mxu0 0.0
    %2236 = vmatprep.subr.mxu0 0.0
    %2237 = vmatpush2.msra.mxu0 0.0
    %2238 = vmatprep.subr.mxu0 0.0
    %2239 = vmatpush2.msra.mxu0 0.0
    %2240 = vmatprep.subr.mxu0 0.0
    %2241 = vmatpush2.msra.mxu0 0.0
    %2242 = vmatprep.subr.mxu0 0.0
    %2243 = vmatpush2.msra.mxu0 0.0
    %2244 = vmatprep.subr.mxu0 0.0
    %2245 = vmatpush2.msra.mxu0 0.0
    %2246 = vmatprep.mubr.f32.mxu0 0.0
    %2247 = vmatmul.mubr.f32.gmra.mxu0 %v2177
    %v2248 = vpop.f32.mrf.mxu0
    %v2249 = vadd.f32 0.0, %v2248
    %v2250 = vpop.f32.mrf.mxu0
    %2251 = vmatprep.mubr.f32.mxu0 0.0
    %2252 = vmatmul.mubr.f32.gmra.mxu0 %v2180
    %v2253 = vpop.f32.mrf.mxu0
    %v2254 = vadd.f32 0.0, %v2253
    %v2255 = vpop.f32.mrf.mxu0
    %2256 = vdwg.mxu0
    %v2257 = vadd.f32 %v2052, %v2249
    %v2258 = vadd.f32 %v2053, %v2254
    %v2259 = vlaneseq
    %v2260 = vshrl.u32 %v2259, 7
    %v2261 = vsub.s32 7, %v2260
    %v2262 = vrot.slane %v156, %v2261
    %2263 = vrot.lane.b32.xlu0 %v145, 32
    %v2264 = vpop.permute.xlu0 %2263
    %2265 = vrot.lane.b32.xlu0 %v148, 32
    %v2266 = vpop.permute.xlu0 %2265
    %2267 = vrot.lane.b32.xlu0 %v151, 32
    %v2268 = vpop.permute.xlu0 %2267
    %2269 = vrot.lane.b32.xlu0 %v154, 32
    %v2270 = vpop.permute.xlu0 %2269
    %v2276 = vsel %vm158, %v2257, 0
    %v2279 = vsel %vm158, %v2258, 0
    %2281 = vmatprep.subr.mxu0 0.0
    %2282 = vmatpush1.msra.mxu0 0.0
    %2283 = vmatprep.subr.mxu0 0.0
    %2284 = vmatpush1.msra.mxu0 0.0
    %2285 = vmatprep.subr.mxu0 0.0
    %2286 = vmatpush1.msra.mxu0 0.0
    %2287 = vmatprep.subr.mxu0 0.0
    %2288 = vmatpush1.msra.mxu0 0.0
    %2289 = vmatprep.subr.mxu0 0.0
    %2290 = vmatpush1.msra.mxu0 0.0
    %2291 = vmatprep.subr.mxu0 0.0
    %2292 = vmatpush1.msra.mxu0 0.0
    %2293 = vmatprep.subr.mxu0 0.0
    %2294 = vmatpush1.msra.mxu0 0.0
    %2295 = vmatprep.subr.mxu0 0.0
    %2296 = vmatpush1.msra.mxu0 0.0
    %2297 = vmatprep.subr.mxu0 0.0
    %2298 = vmatpush1.msra.mxu0 0.0
    %2299 = vmatprep.subr.mxu0 0.0
    %2300 = vmatpush1.msra.mxu0 0.0
    %2301 = vmatprep.subr.mxu0 0.0
    %2302 = vmatpush1.msra.mxu0 0.0
    %2303 = vmatprep.subr.mxu0 0.0
    %2304 = vmatpush1.msra.mxu0 0.0
    %2305 = vmatprep.subr.mxu0 0.0
    %2306 = vmatpush1.msra.mxu0 %v2270
    %2307 = vmatprep.subr.mxu0 0.0
    %2308 = vmatpush1.msra.mxu0 %v2268
    %2309 = vmatprep.subr.mxu0 0.0
    %2310 = vmatpush1.msra.mxu0 %v2266
    %2311 = vmatprep.subr.mxu0 0.0
    %2312 = vmatpush1.msra.mxu0 %v2264
    %2313 = vmatprep.subr.mxu0 0.0
    %2314 = vmatpush2.msra.mxu0 0.0
    %2315 = vmatprep.subr.mxu0 0.0
    %2316 = vmatpush2.msra.mxu0 0.0
    %2317 = vmatprep.subr.mxu0 0.0
    %2318 = vmatpush2.msra.mxu0 0.0
    %2319 = vmatprep.subr.mxu0 0.0
    %2320 = vmatpush2.msra.mxu0 0.0
    %2321 = vmatprep.subr.mxu0 0.0
    %2322 = vmatpush2.msra.mxu0 0.0
    %2323 = vmatprep.subr.mxu0 0.0
    %2324 = vmatpush2.msra.mxu0 0.0
    %2325 = vmatprep.subr.mxu0 0.0
    %2326 = vmatpush2.msra.mxu0 0.0
    %2327 = vmatprep.subr.mxu0 0.0
    %2328 = vmatpush2.msra.mxu0 0.0
    %2329 = vmatprep.subr.mxu0 0.0
    %2330 = vmatpush2.msra.mxu0 0.0
    %2331 = vmatprep.subr.mxu0 0.0
    %2332 = vmatpush2.msra.mxu0 0.0
    %2333 = vmatprep.subr.mxu0 0.0
    %2334 = vmatpush2.msra.mxu0 0.0
    %2335 = vmatprep.subr.mxu0 0.0
    %2336 = vmatpush2.msra.mxu0 0.0
    %2337 = vmatprep.subr.mxu0 0.0
    %2338 = vmatpush2.msra.mxu0 0.0
    %2339 = vmatprep.subr.mxu0 0.0
    %2340 = vmatpush2.msra.mxu0 0.0
    %2341 = vmatprep.subr.mxu0 0.0
    %2342 = vmatpush2.msra.mxu0 0.0
    %2343 = vmatprep.subr.mxu0 0.0
    %2344 = vmatpush2.msra.mxu0 0.0
    %2345 = vmatprep.mubr.f32.mxu0 0.0
    %2346 = vmatmul.mubr.f32.gmra.mxu0 %v2276
    %v2347 = vpop.f32.mrf.mxu0
    %v2348 = vadd.f32 %v2262, %v2347
    %v2349 = vpop.f32.mrf.mxu0
    %2350 = vmatprep.mubr.f32.mxu0 0.0
    %2351 = vmatmul.mubr.f32.gmra.mxu0 %v2279
    %v2352 = vpop.f32.mrf.mxu0
    %v2353 = vadd.f32 %v2262, %v2352
    %v2354 = vpop.f32.mrf.mxu0
    %2355 = vdwg.mxu0
    %v2356 = vadd.f32 %v1237, %v2348
    %v2357 = vadd.f32 %v1238, %v2353
    %v2358 = vsel %vm158, %v2356, 0.0
    %2359 = vadd.xlane.f32.xlu0 %v2358
    %v2360 = vpop.xlane.xlu0 %2359
    %v2361 = vsel %vm158, %v2357, 0.0
    %2362 = vadd.xlane.f32.xlu0 %v2361
    %v2363 = vpop.xlane.xlu0 %2362
    %v2364 = vmul.f32 %v2360, %v1206
    %v2365 = vmul.f32 %v2363, %v1206
    %v2366 = vsub.f32 %v2356, %v2364
    %v2367 = vsub.f32 %v2357, %v2365
    %v2368 = vmul.f32 %v2366, %v2366
    %v2369 = vmul.f32 %v2367, %v2367
    %v2370 = vsel %vm158, %v2368, 0.0
    %2371 = vadd.xlane.f32.xlu0 %v2370
    %v2372 = vpop.xlane.xlu0 %2371
    %v2373 = vsel %vm158, %v2369, 0.0
    %2374 = vadd.xlane.f32.xlu0 %v2373
    %v2375 = vpop.xlane.xlu0 %2374
    %v2376 = vmul.f32 %v2372, %v1206
    %v2377 = vmul.f32 %v2375, %v1206
    %v2378 = vadd.f32 %v2376, 1e-05
    %v2379 = vadd.f32 %v2377, 1e-05
    %v2380 = vrsqrt.pop %v2378
    %v2381 = vrsqrt.pop %v2379
    %v2382 = vmul.f32 %v2366, %v2380
    %v2383 = vmul.f32 %v2367, %v2381
    %v2384 = vlaneseq
    %v2385 = vshrl.u32 %v2384, 7
    %v2386 = vsub.s32 4, %v2385
    %v2387 = vrot.slane %v157, %v2386
    %v2388 = vmul.f32 %v2382, %v2387
    %v2389 = vmul.f32 %v2383, %v2387
    %v2390 = vlaneseq
    %v2391 = vshrl.u32 %v2390, 7
    %v2392 = vsub.s32 5, %v2391
    %v2393 = vrot.slane %v157, %v2392
    %v2394 = vadd.f32 %v2388, %v2393
    %v2395 = vadd.f32 %v2389, %v2393
    %v2396 = vlaneseq
    %v2397 = vshrl.u32 %v2396, 7
    %v2398 = vsub.s32 0, %v2397
    %v2399 = vrot.slane %v157, %v2398
    %v2401 = vsel %vm158, %v2394, 0
    %v2404 = vsel %vm158, %v2395, 0
    %2406 = vmatprep.subr.mxu0 0.0
    %2407 = vmatpush1.msra.mxu0 0.0
    %2408 = vmatprep.subr.mxu0 0.0
    %2409 = vmatpush1.msra.mxu0 0.0
    %2410 = vmatprep.subr.mxu0 0.0
    %2411 = vmatpush1.msra.mxu0 0.0
    %2412 = vmatprep.subr.mxu0 0.0
    %2413 = vmatpush1.msra.mxu0 0.0
    %2414 = vmatprep.subr.mxu0 0.0
    %2415 = vmatpush1.msra.mxu0 0.0
    %2416 = vmatprep.subr.mxu0 0.0
    %2417 = vmatpush1.msra.mxu0 0.0
    %2418 = vmatprep.subr.mxu0 0.0
    %2419 = vmatpush1.msra.mxu0 0.0
    %2420 = vmatprep.subr.mxu0 0.0
    %2421 = vmatpush1.msra.mxu0 0.0
    %2422 = vmatprep.subr.mxu0 0.0
    %2423 = vmatpush1.msra.mxu0 0.0
    %2424 = vmatprep.subr.mxu0 0.0
    %2425 = vmatpush1.msra.mxu0 0.0
    %2426 = vmatprep.subr.mxu0 0.0
    %2427 = vmatpush1.msra.mxu0 0.0
    %2428 = vmatprep.subr.mxu0 0.0
    %2429 = vmatpush1.msra.mxu0 0.0
    %2430 = vmatprep.subr.mxu0 0.0
    %2431 = vmatpush1.msra.mxu0 %v155
    %2432 = vmatprep.subr.mxu0 0.0
    %2433 = vmatpush1.msra.mxu0 %v152
    %2434 = vmatprep.subr.mxu0 0.0
    %2435 = vmatpush1.msra.mxu0 %v149
    %2436 = vmatprep.subr.mxu0 0.0
    %2437 = vmatpush1.msra.mxu0 %v146
    %2438 = vmatprep.subr.mxu0 0.0
    %2439 = vmatpush2.msra.mxu0 0.0
    %2440 = vmatprep.subr.mxu0 0.0
    %2441 = vmatpush2.msra.mxu0 0.0
    %2442 = vmatprep.subr.mxu0 0.0
    %2443 = vmatpush2.msra.mxu0 0.0
    %2444 = vmatprep.subr.mxu0 0.0
    %2445 = vmatpush2.msra.mxu0 0.0
    %2446 = vmatprep.subr.mxu0 0.0
    %2447 = vmatpush2.msra.mxu0 0.0
    %2448 = vmatprep.subr.mxu0 0.0
    %2449 = vmatpush2.msra.mxu0 0.0
    %2450 = vmatprep.subr.mxu0 0.0
    %2451 = vmatpush2.msra.mxu0 0.0
    %2452 = vmatprep.subr.mxu0 0.0
    %2453 = vmatpush2.msra.mxu0 0.0
    %2454 = vmatprep.subr.mxu0 0.0
    %2455 = vmatpush2.msra.mxu0 0.0
    %2456 = vmatprep.subr.mxu0 0.0
    %2457 = vmatpush2.msra.mxu0 0.0
    %2458 = vmatprep.subr.mxu0 0.0
    %2459 = vmatpush2.msra.mxu0 0.0
    %2460 = vmatprep.subr.mxu0 0.0
    %2461 = vmatpush2.msra.mxu0 0.0
    %2462 = vmatprep.subr.mxu0 0.0
    %2463 = vmatpush2.msra.mxu0 0.0
    %2464 = vmatprep.subr.mxu0 0.0
    %2465 = vmatpush2.msra.mxu0 0.0
    %2466 = vmatprep.subr.mxu0 0.0
    %2467 = vmatpush2.msra.mxu0 0.0
    %2468 = vmatprep.subr.mxu0 0.0
    %2469 = vmatpush2.msra.mxu0 0.0
    %2470 = vmatprep.mubr.f32.mxu0 0.0
    %2471 = vmatmul.mubr.f32.gmra.mxu0 %v2401
    %v2472 = vpop.f32.mrf.mxu0
    %v2473 = vadd.f32 %v2399, %v2472
    %v2474 = vpop.f32.mrf.mxu0
    %2475 = vmatprep.mubr.f32.mxu0 0.0
    %2476 = vmatmul.mubr.f32.gmra.mxu0 %v2404
    %v2477 = vpop.f32.mrf.mxu0
    %v2478 = vadd.f32 %v2399, %v2477
    %v2479 = vpop.f32.mrf.mxu0
    %2480 = vdwg.mxu0
    %v2481 = vmax.f32 %v2473, 0.0
    %v2482 = vmax.f32 %v2478, 0.0
    %v2483 = vlaneseq
    %v2484 = vshrl.u32 %v2483, 7
    %v2485 = vsub.s32 1, %v2484
    %v2486 = vrot.slane %v157, %v2485
    %2491 = vrot.lane.b32.xlu0 %v146, 64
    %v2492 = vpop.permute.xlu0 %2491
    %2493 = vrot.lane.b32.xlu0 %v149, 64
    %v2494 = vpop.permute.xlu0 %2493
    %2495 = vrot.lane.b32.xlu0 %v152, 64
    %v2496 = vpop.permute.xlu0 %2495
    %2497 = vrot.lane.b32.xlu0 %v155, 64
    %v2498 = vpop.permute.xlu0 %2497
    %vm2499 = vcmask 523264
    %v2501 = vsel %vm2499, %v2481, 0
    %v2504 = vsel %vm2499, %v2482, 0
    %v2506 = vsel %vm2499, %v2492, 0
    %v2508 = vsel %vm2499, %v2494, 0
    %v2510 = vsel %vm2499, %v2496, 0
    %v2512 = vsel %vm2499, %v2498, 0
    %2514 = vmatprep.subr.mxu0 0.0
    %2515 = vmatpush1.xpose.msra.mxu0 0.0
    %2516 = vmatprep.subr.mxu0 0.0
    %2517 = vmatpush1.xpose.msra.mxu0 0.0
    %2518 = vmatprep.subr.mxu0 0.0
    %2519 = vmatpush1.xpose.msra.mxu0 0.0
    %2520 = vmatprep.subr.mxu0 0.0
    %2521 = vmatpush1.xpose.msra.mxu0 0.0
    %2522 = vmatprep.subr.mxu0 0.0
    %2523 = vmatpush1.xpose.msra.mxu0 0.0
    %2524 = vmatprep.subr.mxu0 0.0
    %2525 = vmatpush1.xpose.msra.mxu0 0.0
    %2526 = vmatprep.subr.mxu0 0.0
    %2527 = vmatpush1.xpose.msra.mxu0 0.0
    %2528 = vmatprep.subr.mxu0 0.0
    %2529 = vmatpush1.xpose.msra.mxu0 0.0
    %2530 = vmatprep.subr.mxu0 0.0
    %2531 = vmatpush1.xpose.msra.mxu0 0.0
    %2532 = vmatprep.subr.mxu0 0.0
    %2533 = vmatpush1.xpose.msra.mxu0 0.0
    %2534 = vmatprep.subr.mxu0 0.0
    %2535 = vmatpush1.xpose.msra.mxu0 0.0
    %2536 = vmatprep.subr.mxu0 0.0
    %2537 = vmatpush1.xpose.msra.mxu0 0.0
    %2538 = vmatprep.subr.mxu0 0.0
    %2539 = vmatpush1.xpose.msra.mxu0 %v2512
    %2540 = vmatprep.subr.mxu0 0.0
    %2541 = vmatpush1.xpose.msra.mxu0 %v2510
    %2542 = vmatprep.subr.mxu0 0.0
    %2543 = vmatpush1.xpose.msra.mxu0 %v2508
    %2544 = vmatprep.subr.mxu0 0.0
    %2545 = vmatpush1.xpose.msra.mxu0 %v2506
    %2546 = vmatprep.subr.mxu0 0.0
    %2547 = vmatpush2.xpose.msra.mxu0 0.0
    %2548 = vmatprep.subr.mxu0 0.0
    %2549 = vmatpush2.xpose.msra.mxu0 0.0
    %2550 = vmatprep.subr.mxu0 0.0
    %2551 = vmatpush2.xpose.msra.mxu0 0.0
    %2552 = vmatprep.subr.mxu0 0.0
    %2553 = vmatpush2.xpose.msra.mxu0 0.0
    %2554 = vmatprep.subr.mxu0 0.0
    %2555 = vmatpush2.xpose.msra.mxu0 0.0
    %2556 = vmatprep.subr.mxu0 0.0
    %2557 = vmatpush2.xpose.msra.mxu0 0.0
    %2558 = vmatprep.subr.mxu0 0.0
    %2559 = vmatpush2.xpose.msra.mxu0 0.0
    %2560 = vmatprep.subr.mxu0 0.0
    %2561 = vmatpush2.xpose.msra.mxu0 0.0
    %2562 = vmatprep.subr.mxu0 0.0
    %2563 = vmatpush2.xpose.msra.mxu0 0.0
    %2564 = vmatprep.subr.mxu0 0.0
    %2565 = vmatpush2.xpose.msra.mxu0 0.0
    %2566 = vmatprep.subr.mxu0 0.0
    %2567 = vmatpush2.xpose.msra.mxu0 0.0
    %2568 = vmatprep.subr.mxu0 0.0
    %2569 = vmatpush2.xpose.msra.mxu0 0.0
    %2570 = vmatprep.subr.mxu0 0.0
    %2571 = vmatpush2.xpose.msra.mxu0 0.0
    %2572 = vmatprep.subr.mxu0 0.0
    %2573 = vmatpush2.xpose.msra.mxu0 0.0
    %2574 = vmatprep.subr.mxu0 0.0
    %2575 = vmatpush2.xpose.msra.mxu0 0.0
    %2576 = vmatprep.subr.mxu0 0.0
    %2577 = vmatpush2.xpose.msra.mxu0 0.0
    %2578 = vmatprep.mubr.f32.mxu0 0.0
    %2579 = vmatmul.mubr.f32.gmra.mxu0 %v2501
    %v2580 = vpop.f32.mrf.mxu0
    %v2581 = vadd.f32 %v2486, %v2580
    %v2582 = vpop.f32.mrf.mxu0
    %2583 = vmatprep.mubr.f32.mxu0 0.0
    %2584 = vmatmul.mubr.f32.gmra.mxu0 %v2504
    %v2585 = vpop.f32.mrf.mxu0
    %v2586 = vadd.f32 %v2486, %v2585
    %v2587 = vpop.f32.mrf.mxu0
    %2588 = vdwg.mxu0
    %v2589 = vadd.f32 %v2394, %v2581
    %v2590 = vadd.f32 %v2395, %v2586
    %v2591 = vsel %vm158, %v2589, 0.0
    %2592 = vadd.xlane.f32.xlu0 %v2591
    %v2593 = vpop.xlane.xlu0 %2592
    %v2594 = vsel %vm158, %v2590, 0.0
    %2595 = vadd.xlane.f32.xlu0 %v2594
    %v2596 = vpop.xlane.xlu0 %2595
    %v2597 = vmul.f32 %v2593, %v1206
    %v2598 = vmul.f32 %v2596, %v1206
    %v2599 = vsub.f32 %v2589, %v2597
    %v2600 = vsub.f32 %v2590, %v2598
    %v2601 = vmul.f32 %v2599, %v2599
    %v2602 = vmul.f32 %v2600, %v2600
    %v2603 = vsel %vm158, %v2601, 0.0
    %2604 = vadd.xlane.f32.xlu0 %v2603
    %v2605 = vpop.xlane.xlu0 %2604
    %v2606 = vsel %vm158, %v2602, 0.0
    %2607 = vadd.xlane.f32.xlu0 %v2606
    %v2608 = vpop.xlane.xlu0 %2607
    %v2609 = vmul.f32 %v2605, %v1206
    %v2610 = vmul.f32 %v2608, %v1206
    %v2611 = vadd.f32 %v2609, 1e-05
    %v2612 = vadd.f32 %v2610, 1e-05
    %v2613 = vrsqrt.pop %v2611
    %v2614 = vrsqrt.pop %v2612
    %v2615 = vmul.f32 %v2599, %v2613
    %v2616 = vmul.f32 %v2600, %v2614
    %v2617 = vlaneseq
    %v2618 = vshrl.u32 %v2617, 7
    %v2619 = vsub.s32 6, %v2618
    %v2620 = vrot.slane %v157, %v2619
    %v2621 = vmul.f32 %v2615, %v2620
    %v2622 = vmul.f32 %v2616, %v2620
    %v2623 = vlaneseq
    %v2624 = vshrl.u32 %v2623, 7
    %v2625 = vsub.s32 7, %v2624
    %v2626 = vrot.slane %v157, %v2625
    %v2627 = vadd.f32 %v2621, %v2626
    %v2628 = vadd.f32 %v2622, %v2626
    %s2629 = scalar_lea.vmem [#allocation6], 96
    %v2630 = vld [vmem:[%s2629] sm:$0xff]
    %v2631 = vld [vmem:[%s2629 + $0x8] sm:$0xff]
    %v2632 = vld [vmem:[%s2629 + $0x10] sm:$0xff]
    %v2633 = vld [vmem:[%s2629 + $0x18] sm:$0xff]
    %v2634 = vld [vmem:[%s2629 + $0x20] sm:$0xff]
    %v2635 = vld [vmem:[%s2629 + $0x28] sm:$0xff]
    %v2636 = vld [vmem:[%s2629 + $0x30] sm:$0xff]
    %v2637 = vld [vmem:[%s2629 + $0x38] sm:$0xff]
    %v2638 = vld [vmem:[%s2629 + $0x40] sm:$0xff]
    %v2639 = vld [vmem:[%s2629 + $0x48] sm:$0xff]
    %v2640 = vld [vmem:[%s2629 + $0x50] sm:$0xff]
    %v2641 = vld [vmem:[%s2629 + $0x58] sm:$0xff]
    %s2642 = scalar_lea.vmem [#allocation7], 16
    %v2643 = vld [vmem:[%s2642] sm:$0xff]
    %v2644 = vld [vmem:[%s2642 + $0x8] sm:$0xff]
    %v2646 = vsel %vm158, %v2627, 0
    %v2649 = vsel %vm158, %v2628, 0
    %2651 = vmatprep.subr.mxu0 0.0
    %2652 = vmatpush1.msra.mxu0 0.0
    %2653 = vmatprep.subr.mxu0 0.0
    %2654 = vmatpush1.msra.mxu0 0.0
    %2655 = vmatprep.subr.mxu0 0.0
    %2656 = vmatpush1.msra.mxu0 0.0
    %2657 = vmatprep.subr.mxu0 0.0
    %2658 = vmatpush1.msra.mxu0 0.0
    %2659 = vmatprep.subr.mxu0 0.0
    %2660 = vmatpush1.msra.mxu0 0.0
    %2661 = vmatprep.subr.mxu0 0.0
    %2662 = vmatpush1.msra.mxu0 0.0
    %2663 = vmatprep.subr.mxu0 0.0
    %2664 = vmatpush1.msra.mxu0 0.0
    %2665 = vmatprep.subr.mxu0 0.0
    %2666 = vmatpush1.msra.mxu0 0.0
    %2667 = vmatprep.subr.mxu0 0.0
    %2668 = vmatpush1.msra.mxu0 0.0
    %2669 = vmatprep.subr.mxu0 0.0
    %2670 = vmatpush1.msra.mxu0 0.0
    %2671 = vmatprep.subr.mxu0 0.0
    %2672 = vmatpush1.msra.mxu0 0.0
    %2673 = vmatprep.subr.mxu0 0.0
    %2674 = vmatpush1.msra.mxu0 0.0
    %2675 = vmatprep.subr.mxu0 0.0
    %2676 = vmatpush1.msra.mxu0 %v2639
    %2677 = vmatprep.subr.mxu0 0.0
    %2678 = vmatpush1.msra.mxu0 %v2636
    %2679 = vmatprep.subr.mxu0 0.0
    %2680 = vmatpush1.msra.mxu0 %v2633
    %2681 = vmatprep.subr.mxu0 0.0
    %2682 = vmatpush1.msra.mxu0 %v2630
    %2683 = vmatprep.subr.mxu0 0.0
    %2684 = vmatpush2.msra.mxu0 0.0
    %2685 = vmatprep.subr.mxu0 0.0
    %2686 = vmatpush2.msra.mxu0 0.0
    %2687 = vmatprep.subr.mxu0 0.0
    %2688 = vmatpush2.msra.mxu0 0.0
    %2689 = vmatprep.subr.mxu0 0.0
    %2690 = vmatpush2.msra.mxu0 0.0
    %2691 = vmatprep.subr.mxu0 0.0
    %2692 = vmatpush2.msra.mxu0 0.0
    %2693 = vmatprep.subr.mxu0 0.0
    %2694 = vmatpush2.msra.mxu0 0.0
    %2695 = vmatprep.subr.mxu0 0.0
    %2696 = vmatpush2.msra.mxu0 0.0
    %2697 = vmatprep.subr.mxu0 0.0
    %2698 = vmatpush2.msra.mxu0 0.0
    %2699 = vmatprep.subr.mxu0 0.0
    %2700 = vmatpush2.msra.mxu0 0.0
    %2701 = vmatprep.subr.mxu0 0.0
    %2702 = vmatpush2.msra.mxu0 0.0
    %2703 = vmatprep.subr.mxu0 0.0
    %2704 = vmatpush2.msra.mxu0 0.0
    %2705 = vmatprep.subr.mxu0 0.0
    %2706 = vmatpush2.msra.mxu0 0.0
    %2707 = vmatprep.subr.mxu0 0.0
    %2708 = vmatpush2.msra.mxu0 0.0
    %2709 = vmatprep.subr.mxu0 0.0
    %2710 = vmatpush2.msra.mxu0 0.0
    %2711 = vmatprep.subr.mxu0 0.0
    %2712 = vmatpush2.msra.mxu0 0.0
    %2713 = vmatprep.subr.mxu0 0.0
    %2714 = vmatpush2.msra.mxu0 0.0
    %2715 = vmatprep.mubr.f32.mxu0 0.0
    %2716 = vmatmul.mubr.f32.gmra.mxu0 %v2646
    %v2717 = vpop.f32.mrf.mxu0
    %v2718 = vadd.f32 0.0, %v2717
    %v2719 = vpop.f32.mrf.mxu0
    %2720 = vmatprep.mubr.f32.mxu0 0.0
    %2721 = vmatmul.mubr.f32.gmra.mxu0 %v2649
    %v2722 = vpop.f32.mrf.mxu0
    %v2723 = vadd.f32 0.0, %v2722
    %v2724 = vpop.f32.mrf.mxu0
    %2725 = vdwg.mxu0
    %v2726 = vlaneseq
    %v2727 = vshrl.u32 %v2726, 7
    %v2728 = vsub.s32 0, %v2727
    %v2729 = vrot.slane %v2643, %v2728
    %v2730 = vadd.f32 %v2718, %v2729
    %v2731 = vadd.f32 %v2723, %v2729
    %v2732 = vlaneseq
    %v2733 = vshrl.u32 %v2732, 7
    %v2734 = vsub.s32 1, %v2733
    %v2735 = vrot.slane %v2643, %v2734
    %2737 = vrot.lane.b32.xlu0 %v2735, 32
    %v2738 = vpop.permute.xlu0 %2737
    %v2740 = vadd.f32 %v2718, %v2738
    %v2741 = vadd.f32 %v2723, %v2738
    %v2742 = vlaneseq
    %v2743 = vshrl.u32 %v2742, 7
    %v2744 = vsub.s32 2, %v2743
    %v2745 = vrot.slane %v2643, %v2744
    %2747 = vrot.lane.b32.xlu0 %v2745, 64
    %v2748 = vpop.permute.xlu0 %2747
    %v2750 = vadd.f32 %v2718, %v2748
    %v2751 = vadd.f32 %v2723, %v2748
    %v2752 = vmul.f32 %v2730, %v85
    %v2753 = vmul.f32 %v2731, %v85
    %2756 = vrot.lane.b32.xlu0 %v2740, 96
    %v2757 = vpop.permute.xlu0 %2756
    %2758 = vrot.lane.b32.xlu0 %v2741, 96
    %v2759 = vpop.permute.xlu0 %2758
    %v2761 = vsel %vm158, %v2752, 0
    %v2764 = vsel %vm158, %v2753, 0
    %v2766 = vsel %vm158, %v2757, 0
    %v2768 = vsel %vm158, %v2759, 0
    %2770 = vmatprep.subr.mxu0 0.0
    %2771 = vmatpush1.xpose.msra.mxu0 0.0
    %2772 = vmatprep.subr.mxu0 0.0
    %2773 = vmatpush1.xpose.msra.mxu0 0.0
    %2774 = vmatprep.subr.mxu0 0.0
    %2775 = vmatpush1.xpose.msra.mxu0 0.0
    %2776 = vmatprep.subr.mxu0 0.0
    %2777 = vmatpush1.xpose.msra.mxu0 0.0
    %2778 = vmatprep.subr.mxu0 0.0
    %2779 = vmatpush1.xpose.msra.mxu0 0.0
    %2780 = vmatprep.subr.mxu0 0.0
    %2781 = vmatpush1.xpose.msra.mxu0 0.0
    %2782 = vmatprep.subr.mxu0 0.0
    %2783 = vmatpush1.xpose.msra.mxu0 0.0
    %2784 = vmatprep.subr.mxu0 0.0
    %2785 = vmatpush1.xpose.msra.mxu0 0.0
    %2786 = vmatprep.subr.mxu0 0.0
    %2787 = vmatpush1.xpose.msra.mxu0 0.0
    %2788 = vmatprep.subr.mxu0 0.0
    %2789 = vmatpush1.xpose.msra.mxu0 0.0
    %2790 = vmatprep.subr.mxu0 0.0
    %2791 = vmatpush1.xpose.msra.mxu0 0.0
    %2792 = vmatprep.subr.mxu0 0.0
    %2793 = vmatpush1.xpose.msra.mxu0 0.0
    %2794 = vmatprep.subr.mxu0 0.0
    %2795 = vmatpush1.xpose.msra.mxu0 0.0
    %2796 = vmatprep.subr.mxu0 0.0
    %2797 = vmatpush1.xpose.msra.mxu0 0.0
    %2798 = vmatprep.subr.mxu0 0.0
    %2799 = vmatpush1.xpose.msra.mxu0 %v2768
    %2800 = vmatprep.subr.mxu0 0.0
    %2801 = vmatpush1.xpose.msra.mxu0 %v2766
    %2802 = vmatprep.subr.mxu0 0.0
    %2803 = vmatpush2.xpose.msra.mxu0 0.0
    %2804 = vmatprep.subr.mxu0 0.0
    %2805 = vmatpush2.xpose.msra.mxu0 0.0
    %2806 = vmatprep.subr.mxu0 0.0
    %2807 = vmatpush2.xpose.msra.mxu0 0.0
    %2808 = vmatprep.subr.mxu0 0.0
    %2809 = vmatpush2.xpose.msra.mxu0 0.0
    %2810 = vmatprep.subr.mxu0 0.0
    %2811 = vmatpush2.xpose.msra.mxu0 0.0
    %2812 = vmatprep.subr.mxu0 0.0
    %2813 = vmatpush2.xpose.msra.mxu0 0.0
    %2814 = vmatprep.subr.mxu0 0.0
    %2815 = vmatpush2.xpose.msra.mxu0 0.0
    %2816 = vmatprep.subr.mxu0 0.0
    %2817 = vmatpush2.xpose.msra.mxu0 0.0
    %2818 = vmatprep.subr.mxu0 0.0
    %2819 = vmatpush2.xpose.msra.mxu0 0.0
    %2820 = vmatprep.subr.mxu0 0.0
    %2821 = vmatpush2.xpose.msra.mxu0 0.0
    %2822 = vmatprep.subr.mxu0 0.0
    %2823 = vmatpush2.xpose.msra.mxu0 0.0
    %2824 = vmatprep.subr.mxu0 0.0
    %2825 = vmatpush2.xpose.msra.mxu0 0.0
    %2826 = vmatprep.subr.mxu0 0.0
    %2827 = vmatpush2.xpose.msra.mxu0 0.0
    %2828 = vmatprep.subr.mxu0 0.0
    %2829 = vmatpush2.xpose.msra.mxu0 0.0
    %2830 = vmatprep.subr.mxu0 0.0
    %2831 = vmatpush2.xpose.msra.mxu0 0.0
    %2832 = vmatprep.subr.mxu0 0.0
    %2833 = vmatpush2.xpose.msra.mxu0 0.0
    %2834 = vmatprep.mubr.f32.mxu0 0.0
    %2835 = vmatmul.mubr.f32.gmra.mxu0 %v2761
    %v2836 = vpop.f32.mrf.mxu0
    %v2837 = vadd.f32 0.0, %v2836
    %v2838 = vpop.f32.mrf.mxu0
    %2839 = vmatprep.mubr.f32.mxu0 0.0
    %2840 = vmatmul.mubr.f32.gmra.mxu0 %v2764
    %v2841 = vpop.f32.mrf.mxu0
    %v2842 = vadd.f32 0.0, %v2841
    %v2843 = vpop.f32.mrf.mxu0
    %2844 = vdwg.mxu0
    %v2845 = vmul.f32 %v2837, 0.35355338
    %v2846 = vmul.f32 %v2842, 0.35355338
    %v2847 = vadd.f32 %v2845, %v142
    %v2848 = vadd.f32 %v2846, %v143
    %v2849 = vsel %vm363, %v2847, -inf
    %2850 = vmax.xlane.f32.xlu0 %v2849
    %v2851 = vpop.xlane.xlu0 %2850
    %v2852 = vsel %vm363, %v2848, -inf
    %2853 = vmax.xlane.f32.xlu0 %v2852
    %v2854 = vpop.xlane.xlu0 %2853
    %v2855 = vsub.f32 %v2847, %v2851
    %v2856 = vsub.f32 %v2848, %v2854
    %v2857 = vmul.f32 %v2855, 1.442695
    %v2858 = vpow.pop %v2857
    %v2859 = vmul.f32 %v2856, 1.442695
    %v2860 = vpow.pop %v2859
    %v2861 = vsel %vm363, %v2858, 0.0
    %2862 = vadd.xlane.f32.xlu0 %v2861
    %v2863 = vpop.xlane.xlu0 %2862
    %v2864 = vsel %vm363, %v2860, 0.0
    %2865 = vadd.xlane.f32.xlu0 %v2864
    %v2866 = vpop.xlane.xlu0 %2865
    %v2867 = vrcp.pop %v2863
    %v2868 = vrcp.pop %v2866
    %v2869 = vmul.f32 %v2858, %v2867
    %v2870 = vmul.f32 %v2860, %v2868
    %v2871 = vmul.f32 %v2750, %v388
    %v2872 = vmul.f32 %v2751, %v388
    %v2873 = vmul.f32 %v2730, %v90
    %v2874 = vmul.f32 %v2731, %v90
    %v2876 = vsel %vm158, %v2873, 0
    %v2879 = vsel %vm158, %v2874, 0
    %2881 = vmatprep.subr.mxu0 0.0
    %2882 = vmatpush1.xpose.msra.mxu0 0.0
    %2883 = vmatprep.subr.mxu0 0.0
    %2884 = vmatpush1.xpose.msra.mxu0 0.0
    %2885 = vmatprep.subr.mxu0 0.0
    %2886 = vmatpush1.xpose.msra.mxu0 0.0
    %2887 = vmatprep.subr.mxu0 0.0
    %2888 = vmatpush1.xpose.msra.mxu0 0.0
    %2889 = vmatprep.subr.mxu0 0.0
    %2890 = vmatpush1.xpose.msra.mxu0 0.0
    %2891 = vmatprep.subr.mxu0 0.0
    %2892 = vmatpush1.xpose.msra.mxu0 0.0
    %2893 = vmatprep.subr.mxu0 0.0
    %2894 = vmatpush1.xpose.msra.mxu0 0.0
    %2895 = vmatprep.subr.mxu0 0.0
    %2896 = vmatpush1.xpose.msra.mxu0 0.0
    %2897 = vmatprep.subr.mxu0 0.0
    %2898 = vmatpush1.xpose.msra.mxu0 0.0
    %2899 = vmatprep.subr.mxu0 0.0
    %2900 = vmatpush1.xpose.msra.mxu0 0.0
    %2901 = vmatprep.subr.mxu0 0.0
    %2902 = vmatpush1.xpose.msra.mxu0 0.0
    %2903 = vmatprep.subr.mxu0 0.0
    %2904 = vmatpush1.xpose.msra.mxu0 0.0
    %2905 = vmatprep.subr.mxu0 0.0
    %2906 = vmatpush1.xpose.msra.mxu0 0.0
    %2907 = vmatprep.subr.mxu0 0.0
    %2908 = vmatpush1.xpose.msra.mxu0 0.0
    %2909 = vmatprep.subr.mxu0 0.0
    %2910 = vmatpush1.xpose.msra.mxu0 %v2768
    %2911 = vmatprep.subr.mxu0 0.0
    %2912 = vmatpush1.xpose.msra.mxu0 %v2766
    %2913 = vmatprep.subr.mxu0 0.0
    %2914 = vmatpush2.xpose.msra.mxu0 0.0
    %2915 = vmatprep.subr.mxu0 0.0
    %2916 = vmatpush2.xpose.msra.mxu0 0.0
    %2917 = vmatprep.subr.mxu0 0.0
    %2918 = vmatpush2.xpose.msra.mxu0 0.0
    %2919 = vmatprep.subr.mxu0 0.0
    %2920 = vmatpush2.xpose.msra.mxu0 0.0
    %2921 = vmatprep.subr.mxu0 0.0
    %2922 = vmatpush2.xpose.msra.mxu0 0.0
    %2923 = vmatprep.subr.mxu0 0.0
    %2924 = vmatpush2.xpose.msra.mxu0 0.0
    %2925 = vmatprep.subr.mxu0 0.0
    %2926 = vmatpush2.xpose.msra.mxu0 0.0
    %2927 = vmatprep.subr.mxu0 0.0
    %2928 = vmatpush2.xpose.msra.mxu0 0.0
    %2929 = vmatprep.subr.mxu0 0.0
    %2930 = vmatpush2.xpose.msra.mxu0 0.0
    %2931 = vmatprep.subr.mxu0 0.0
    %2932 = vmatpush2.xpose.msra.mxu0 0.0
    %2933 = vmatprep.subr.mxu0 0.0
    %2934 = vmatpush2.xpose.msra.mxu0 0.0
    %2935 = vmatprep.subr.mxu0 0.0
    %2936 = vmatpush2.xpose.msra.mxu0 0.0
    %2937 = vmatprep.subr.mxu0 0.0
    %2938 = vmatpush2.xpose.msra.mxu0 0.0
    %2939 = vmatprep.subr.mxu0 0.0
    %2940 = vmatpush2.xpose.msra.mxu0 0.0
    %2941 = vmatprep.subr.mxu0 0.0
    %2942 = vmatpush2.xpose.msra.mxu0 0.0
    %2943 = vmatprep.subr.mxu0 0.0
    %2944 = vmatpush2.xpose.msra.mxu0 0.0
    %2945 = vmatprep.mubr.f32.mxu0 0.0
    %2946 = vmatmul.mubr.f32.gmra.mxu0 %v2876
    %v2947 = vpop.f32.mrf.mxu0
    %v2948 = vadd.f32 0.0, %v2947
    %v2949 = vpop.f32.mrf.mxu0
    %2950 = vmatprep.mubr.f32.mxu0 0.0
    %2951 = vmatmul.mubr.f32.gmra.mxu0 %v2879
    %v2952 = vpop.f32.mrf.mxu0
    %v2953 = vadd.f32 0.0, %v2952
    %v2954 = vpop.f32.mrf.mxu0
    %2955 = vdwg.mxu0
    %v2956 = vmul.f32 %v2948, 0.35355338
    %v2957 = vmul.f32 %v2953, 0.35355338
    %v2958 = vadd.f32 %v2956, %v142
    %v2959 = vadd.f32 %v2957, %v143
    %v2960 = vsel %vm363, %v2958, -inf
    %2961 = vmax.xlane.f32.xlu0 %v2960
    %v2962 = vpop.xlane.xlu0 %2961
    %v2963 = vsel %vm363, %v2959, -inf
    %2964 = vmax.xlane.f32.xlu0 %v2963
    %v2965 = vpop.xlane.xlu0 %2964
    %v2966 = vsub.f32 %v2958, %v2962
    %v2967 = vsub.f32 %v2959, %v2965
    %v2968 = vmul.f32 %v2966, 1.442695
    %v2969 = vpow.pop %v2968
    %v2970 = vmul.f32 %v2967, 1.442695
    %v2971 = vpow.pop %v2970
    %v2972 = vsel %vm363, %v2969, 0.0
    %2973 = vadd.xlane.f32.xlu0 %v2972
    %v2974 = vpop.xlane.xlu0 %2973
    %v2975 = vsel %vm363, %v2971, 0.0
    %2976 = vadd.xlane.f32.xlu0 %v2975
    %v2977 = vpop.xlane.xlu0 %2976
    %v2978 = vrcp.pop %v2974
    %v2979 = vrcp.pop %v2977
    %v2980 = vmul.f32 %v2969, %v2978
    %v2981 = vmul.f32 %v2971, %v2979
    %v2982 = vmul.f32 %v2750, %v503
    %v2983 = vmul.f32 %v2751, %v503
    %2986 = vrot.lane.b32.xlu0 %v2982, 64
    %v2987 = vpop.permute.xlu0 %2986
    %2988 = vrot.lane.b32.xlu0 %v2983, 64
    %v2989 = vpop.permute.xlu0 %2988
    %v2993 = vsel %vm363, %v2980, 0
    %v2996 = vsel %vm363, %v2981, 0
    %2998 = vmatprep.subr.mxu0 0.0
    %2999 = vmatpush1.msra.mxu0 0.0
    %3000 = vmatprep.subr.mxu0 0.0
    %3001 = vmatpush1.msra.mxu0 0.0
    %3002 = vmatprep.subr.mxu0 0.0
    %3003 = vmatpush1.msra.mxu0 0.0
    %3004 = vmatprep.subr.mxu0 0.0
    %3005 = vmatpush1.msra.mxu0 0.0
    %3006 = vmatprep.subr.mxu0 0.0
    %3007 = vmatpush1.msra.mxu0 0.0
    %3008 = vmatprep.subr.mxu0 0.0
    %3009 = vmatpush1.msra.mxu0 0.0
    %3010 = vmatprep.subr.mxu0 0.0
    %3011 = vmatpush1.msra.mxu0 0.0
    %3012 = vmatprep.subr.mxu0 0.0
    %3013 = vmatpush1.msra.mxu0 0.0
    %3014 = vmatprep.subr.mxu0 0.0
    %3015 = vmatpush1.msra.mxu0 0.0
    %3016 = vmatprep.subr.mxu0 0.0
    %3017 = vmatpush1.msra.mxu0 0.0
    %3018 = vmatprep.subr.mxu0 0.0
    %3019 = vmatpush1.msra.mxu0 0.0
    %3020 = vmatprep.subr.mxu0 0.0
    %3021 = vmatpush1.msra.mxu0 0.0
    %3022 = vmatprep.subr.mxu0 0.0
    %3023 = vmatpush1.msra.mxu0 0.0
    %3024 = vmatprep.subr.mxu0 0.0
    %3025 = vmatpush1.msra.mxu0 0.0
    %3026 = vmatprep.subr.mxu0 0.0
    %3027 = vmatpush1.msra.mxu0 %v2989
    %3028 = vmatprep.subr.mxu0 0.0
    %3029 = vmatpush1.msra.mxu0 %v2987
    %3030 = vmatprep.subr.mxu0 0.0
    %3031 = vmatpush2.msra.mxu0 0.0
    %3032 = vmatprep.subr.mxu0 0.0
    %3033 = vmatpush2.msra.mxu0 0.0
    %3034 = vmatprep.subr.mxu0 0.0
    %3035 = vmatpush2.msra.mxu0 0.0
    %3036 = vmatprep.subr.mxu0 0.0
    %3037 = vmatpush2.msra.mxu0 0.0
    %3038 = vmatprep.subr.mxu0 0.0
    %3039 = vmatpush2.msra.mxu0 0.0
    %3040 = vmatprep.subr.mxu0 0.0
    %3041 = vmatpush2.msra.mxu0 0.0
    %3042 = vmatprep.subr.mxu0 0.0
    %3043 = vmatpush2.msra.mxu0 0.0
    %3044 = vmatprep.subr.mxu0 0.0
    %3045 = vmatpush2.msra.mxu0 0.0
    %3046 = vmatprep.subr.mxu0 0.0
    %3047 = vmatpush2.msra.mxu0 0.0
    %3048 = vmatprep.subr.mxu0 0.0
    %3049 = vmatpush2.msra.mxu0 0.0
    %3050 = vmatprep.subr.mxu0 0.0
    %3051 = vmatpush2.msra.mxu0 0.0
    %3052 = vmatprep.subr.mxu0 0.0
    %3053 = vmatpush2.msra.mxu0 0.0
    %3054 = vmatprep.subr.mxu0 0.0
    %3055 = vmatpush2.msra.mxu0 0.0
    %3056 = vmatprep.subr.mxu0 0.0
    %3057 = vmatpush2.msra.mxu0 0.0
    %3058 = vmatprep.subr.mxu0 0.0
    %3059 = vmatpush2.msra.mxu0 0.0
    %3060 = vmatprep.subr.mxu0 0.0
    %3061 = vmatpush2.msra.mxu0 0.0
    %3062 = vmatprep.mubr.f32.mxu0 0.0
    %3063 = vmatmul.mubr.f32.gmra.mxu0 %v2993
    %v3064 = vpop.f32.mrf.mxu0
    %v3065 = vadd.f32 0.0, %v3064
    %v3066 = vpop.f32.mrf.mxu0
    %3067 = vmatprep.mubr.f32.mxu0 0.0
    %3068 = vmatmul.mubr.f32.gmra.mxu0 %v2996
    %v3069 = vpop.f32.mrf.mxu0
    %v3070 = vadd.f32 0.0, %v3069
    %v3071 = vpop.f32.mrf.mxu0
    %3072 = vdwg.mxu0
    %3075 = vrot.lane.b32.xlu0 %v2871, 64
    %v3076 = vpop.permute.xlu0 %3075
    %3077 = vrot.lane.b32.xlu0 %v2872, 64
    %v3078 = vpop.permute.xlu0 %3077
    %v3082 = vsel %vm363, %v2869, 0
    %v3085 = vsel %vm363, %v2870, 0
    %3087 = vmatprep.subr.mxu0 0.0
    %3088 = vmatpush1.msra.mxu0 0.0
    %3089 = vmatprep.subr.mxu0 0.0
    %3090 = vmatpush1.msra.mxu0 0.0
    %3091 = vmatprep.subr.mxu0 0.0
    %3092 = vmatpush1.msra.mxu0 0.0
    %3093 = vmatprep.subr.mxu0 0.0
    %3094 = vmatpush1.msra.mxu0 0.0
    %3095 = vmatprep.subr.mxu0 0.0
    %3096 = vmatpush1.msra.mxu0 0.0
    %3097 = vmatprep.subr.mxu0 0.0
    %3098 = vmatpush1.msra.mxu0 0.0
    %3099 = vmatprep.subr.mxu0 0.0
    %3100 = vmatpush1.msra.mxu0 0.0
    %3101 = vmatprep.subr.mxu0 0.0
    %3102 = vmatpush1.msra.mxu0 0.0
    %3103 = vmatprep.subr.mxu0 0.0
    %3104 = vmatpush1.msra.mxu0 0.0
    %3105 = vmatprep.subr.mxu0 0.0
    %3106 = vmatpush1.msra.mxu0 0.0
    %3107 = vmatprep.subr.mxu0 0.0
    %3108 = vmatpush1.msra.mxu0 0.0
    %3109 = vmatprep.subr.mxu0 0.0
    %3110 = vmatpush1.msra.mxu0 0.0
    %3111 = vmatprep.subr.mxu0 0.0
    %3112 = vmatpush1.msra.mxu0 0.0
    %3113 = vmatprep.subr.mxu0 0.0
    %3114 = vmatpush1.msra.mxu0 0.0
    %3115 = vmatprep.subr.mxu0 0.0
    %3116 = vmatpush1.msra.mxu0 %v3078
    %3117 = vmatprep.subr.mxu0 0.0
    %3118 = vmatpush1.msra.mxu0 %v3076
    %3119 = vmatprep.subr.mxu0 0.0
    %3120 = vmatpush2.msra.mxu0 0.0
    %3121 = vmatprep.subr.mxu0 0.0
    %3122 = vmatpush2.msra.mxu0 0.0
    %3123 = vmatprep.subr.mxu0 0.0
    %3124 = vmatpush2.msra.mxu0 0.0
    %3125 = vmatprep.subr.mxu0 0.0
    %3126 = vmatpush2.msra.mxu0 0.0
    %3127 = vmatprep.subr.mxu0 0.0
    %3128 = vmatpush2.msra.mxu0 0.0
    %3129 = vmatprep.subr.mxu0 0.0
    %3130 = vmatpush2.msra.mxu0 0.0
    %3131 = vmatprep.subr.mxu0 0.0
    %3132 = vmatpush2.msra.mxu0 0.0
    %3133 = vmatprep.subr.mxu0 0.0
    %3134 = vmatpush2.msra.mxu0 0.0
    %3135 = vmatprep.subr.mxu0 0.0
    %3136 = vmatpush2.msra.mxu0 0.0
    %3137 = vmatprep.subr.mxu0 0.0
    %3138 = vmatpush2.msra.mxu0 0.0
    %3139 = vmatprep.subr.mxu0 0.0
    %3140 = vmatpush2.msra.mxu0 0.0
    %3141 = vmatprep.subr.mxu0 0.0
    %3142 = vmatpush2.msra.mxu0 0.0
    %3143 = vmatprep.subr.mxu0 0.0
    %3144 = vmatpush2.msra.mxu0 0.0
    %3145 = vmatprep.subr.mxu0 0.0
    %3146 = vmatpush2.msra.mxu0 0.0
    %3147 = vmatprep.subr.mxu0 0.0
    %3148 = vmatpush2.msra.mxu0 0.0
    %3149 = vmatprep.subr.mxu0 0.0
    %3150 = vmatpush2.msra.mxu0 0.0
    %3151 = vmatprep.mubr.f32.mxu0 0.0
    %3152 = vmatmul.mubr.f32.gmra.mxu0 %v3082
    %v3153 = vpop.f32.mrf.mxu0
    %v3154 = vadd.f32 %v3065, %v3153
    %v3155 = vpop.f32.mrf.mxu0
    %3156 = vmatprep.mubr.f32.mxu0 0.0
    %3157 = vmatmul.mubr.f32.gmra.mxu0 %v3085
    %v3158 = vpop.f32.mrf.mxu0
    %v3159 = vadd.f32 %v3070, %v3158
    %v3160 = vpop.f32.mrf.mxu0
    %3161 = vdwg.mxu0
    %v3162 = vmul.f32 %v2730, %v95
    %v3163 = vmul.f32 %v2731, %v95
    %v3165 = vsel %vm158, %v3162, 0
    %v3168 = vsel %vm158, %v3163, 0
    %3170 = vmatprep.subr.mxu0 0.0
    %3171 = vmatpush1.xpose.msra.mxu0 0.0
    %3172 = vmatprep.subr.mxu0 0.0
    %3173 = vmatpush1.xpose.msra.mxu0 0.0
    %3174 = vmatprep.subr.mxu0 0.0
    %3175 = vmatpush1.xpose.msra.mxu0 0.0
    %3176 = vmatprep.subr.mxu0 0.0
    %3177 = vmatpush1.xpose.msra.mxu0 0.0
    %3178 = vmatprep.subr.mxu0 0.0
    %3179 = vmatpush1.xpose.msra.mxu0 0.0
    %3180 = vmatprep.subr.mxu0 0.0
    %3181 = vmatpush1.xpose.msra.mxu0 0.0
    %3182 = vmatprep.subr.mxu0 0.0
    %3183 = vmatpush1.xpose.msra.mxu0 0.0
    %3184 = vmatprep.subr.mxu0 0.0
    %3185 = vmatpush1.xpose.msra.mxu0 0.0
    %3186 = vmatprep.subr.mxu0 0.0
    %3187 = vmatpush1.xpose.msra.mxu0 0.0
    %3188 = vmatprep.subr.mxu0 0.0
    %3189 = vmatpush1.xpose.msra.mxu0 0.0
    %3190 = vmatprep.subr.mxu0 0.0
    %3191 = vmatpush1.xpose.msra.mxu0 0.0
    %3192 = vmatprep.subr.mxu0 0.0
    %3193 = vmatpush1.xpose.msra.mxu0 0.0
    %3194 = vmatprep.subr.mxu0 0.0
    %3195 = vmatpush1.xpose.msra.mxu0 0.0
    %3196 = vmatprep.subr.mxu0 0.0
    %3197 = vmatpush1.xpose.msra.mxu0 0.0
    %3198 = vmatprep.subr.mxu0 0.0
    %3199 = vmatpush1.xpose.msra.mxu0 %v2768
    %3200 = vmatprep.subr.mxu0 0.0
    %3201 = vmatpush1.xpose.msra.mxu0 %v2766
    %3202 = vmatprep.subr.mxu0 0.0
    %3203 = vmatpush2.xpose.msra.mxu0 0.0
    %3204 = vmatprep.subr.mxu0 0.0
    %3205 = vmatpush2.xpose.msra.mxu0 0.0
    %3206 = vmatprep.subr.mxu0 0.0
    %3207 = vmatpush2.xpose.msra.mxu0 0.0
    %3208 = vmatprep.subr.mxu0 0.0
    %3209 = vmatpush2.xpose.msra.mxu0 0.0
    %3210 = vmatprep.subr.mxu0 0.0
    %3211 = vmatpush2.xpose.msra.mxu0 0.0
    %3212 = vmatprep.subr.mxu0 0.0
    %3213 = vmatpush2.xpose.msra.mxu0 0.0
    %3214 = vmatprep.subr.mxu0 0.0
    %3215 = vmatpush2.xpose.msra.mxu0 0.0
    %3216 = vmatprep.subr.mxu0 0.0
    %3217 = vmatpush2.xpose.msra.mxu0 0.0
    %3218 = vmatprep.subr.mxu0 0.0
    %3219 = vmatpush2.xpose.msra.mxu0 0.0
    %3220 = vmatprep.subr.mxu0 0.0
    %3221 = vmatpush2.xpose.msra.mxu0 0.0
    %3222 = vmatprep.subr.mxu0 0.0
    %3223 = vmatpush2.xpose.msra.mxu0 0.0
    %3224 = vmatprep.subr.mxu0 0.0
    %3225 = vmatpush2.xpose.msra.mxu0 0.0
    %3226 = vmatprep.subr.mxu0 0.0
    %3227 = vmatpush2.xpose.msra.mxu0 0.0
    %3228 = vmatprep.subr.mxu0 0.0
    %3229 = vmatpush2.xpose.msra.mxu0 0.0
    %3230 = vmatprep.subr.mxu0 0.0
    %3231 = vmatpush2.xpose.msra.mxu0 0.0
    %3232 = vmatprep.subr.mxu0 0.0
    %3233 = vmatpush2.xpose.msra.mxu0 0.0
    %3234 = vmatprep.mubr.f32.mxu0 0.0
    %3235 = vmatmul.mubr.f32.gmra.mxu0 %v3165
    %v3236 = vpop.f32.mrf.mxu0
    %v3237 = vadd.f32 0.0, %v3236
    %v3238 = vpop.f32.mrf.mxu0
    %3239 = vmatprep.mubr.f32.mxu0 0.0
    %3240 = vmatmul.mubr.f32.gmra.mxu0 %v3168
    %v3241 = vpop.f32.mrf.mxu0
    %v3242 = vadd.f32 0.0, %v3241
    %v3243 = vpop.f32.mrf.mxu0
    %3244 = vdwg.mxu0
    %v3245 = vmul.f32 %v3237, 0.35355338
    %v3246 = vmul.f32 %v3242, 0.35355338
    %v3247 = vadd.f32 %v3245, %v142
    %v3248 = vadd.f32 %v3246, %v143
    %v3249 = vsel %vm363, %v3247, -inf
    %3250 = vmax.xlane.f32.xlu0 %v3249
    %v3251 = vpop.xlane.xlu0 %3250
    %v3252 = vsel %vm363, %v3248, -inf
    %3253 = vmax.xlane.f32.xlu0 %v3252
    %v3254 = vpop.xlane.xlu0 %3253
    %v3255 = vsub.f32 %v3247, %v3251
    %v3256 = vsub.f32 %v3248, %v3254
    %v3257 = vmul.f32 %v3255, 1.442695
    %v3258 = vpow.pop %v3257
    %v3259 = vmul.f32 %v3256, 1.442695
    %v3260 = vpow.pop %v3259
    %v3261 = vsel %vm363, %v3258, 0.0
    %3262 = vadd.xlane.f32.xlu0 %v3261
    %v3263 = vpop.xlane.xlu0 %3262
    %v3264 = vsel %vm363, %v3260, 0.0
    %3265 = vadd.xlane.f32.xlu0 %v3264
    %v3266 = vpop.xlane.xlu0 %3265
    %v3267 = vrcp.pop %v3263
    %v3268 = vrcp.pop %v3266
    %v3269 = vmul.f32 %v3258, %v3267
    %v3270 = vmul.f32 %v3260, %v3268
    %v3271 = vmul.f32 %v2750, %v796
    %v3272 = vmul.f32 %v2751, %v796
    %3275 = vrot.lane.b32.xlu0 %v3271, 64
    %v3276 = vpop.permute.xlu0 %3275
    %3277 = vrot.lane.b32.xlu0 %v3272, 64
    %v3278 = vpop.permute.xlu0 %3277
    %v3282 = vsel %vm363, %v3269, 0
    %v3285 = vsel %vm363, %v3270, 0
    %3287 = vmatprep.subr.mxu0 0.0
    %3288 = vmatpush1.msra.mxu0 0.0
    %3289 = vmatprep.subr.mxu0 0.0
    %3290 = vmatpush1.msra.mxu0 0.0
    %3291 = vmatprep.subr.mxu0 0.0
    %3292 = vmatpush1.msra.mxu0 0.0
    %3293 = vmatprep.subr.mxu0 0.0
    %3294 = vmatpush1.msra.mxu0 0.0
    %3295 = vmatprep.subr.mxu0 0.0
    %3296 = vmatpush1.msra.mxu0 0.0
    %3297 = vmatprep.subr.mxu0 0.0
    %3298 = vmatpush1.msra.mxu0 0.0
    %3299 = vmatprep.subr.mxu0 0.0
    %3300 = vmatpush1.msra.mxu0 0.0
    %3301 = vmatprep.subr.mxu0 0.0
    %3302 = vmatpush1.msra.mxu0 0.0
    %3303 = vmatprep.subr.mxu0 0.0
    %3304 = vmatpush1.msra.mxu0 0.0
    %3305 = vmatprep.subr.mxu0 0.0
    %3306 = vmatpush1.msra.mxu0 0.0
    %3307 = vmatprep.subr.mxu0 0.0
    %3308 = vmatpush1.msra.mxu0 0.0
    %3309 = vmatprep.subr.mxu0 0.0
    %3310 = vmatpush1.msra.mxu0 0.0
    %3311 = vmatprep.subr.mxu0 0.0
    %3312 = vmatpush1.msra.mxu0 0.0
    %3313 = vmatprep.subr.mxu0 0.0
    %3314 = vmatpush1.msra.mxu0 0.0
    %3315 = vmatprep.subr.mxu0 0.0
    %3316 = vmatpush1.msra.mxu0 %v3278
    %3317 = vmatprep.subr.mxu0 0.0
    %3318 = vmatpush1.msra.mxu0 %v3276
    %3319 = vmatprep.subr.mxu0 0.0
    %3320 = vmatpush2.msra.mxu0 0.0
    %3321 = vmatprep.subr.mxu0 0.0
    %3322 = vmatpush2.msra.mxu0 0.0
    %3323 = vmatprep.subr.mxu0 0.0
    %3324 = vmatpush2.msra.mxu0 0.0
    %3325 = vmatprep.subr.mxu0 0.0
    %3326 = vmatpush2.msra.mxu0 0.0
    %3327 = vmatprep.subr.mxu0 0.0
    %3328 = vmatpush2.msra.mxu0 0.0
    %3329 = vmatprep.subr.mxu0 0.0
    %3330 = vmatpush2.msra.mxu0 0.0
    %3331 = vmatprep.subr.mxu0 0.0
    %3332 = vmatpush2.msra.mxu0 0.0
    %3333 = vmatprep.subr.mxu0 0.0
    %3334 = vmatpush2.msra.mxu0 0.0
    %3335 = vmatprep.subr.mxu0 0.0
    %3336 = vmatpush2.msra.mxu0 0.0
    %3337 = vmatprep.subr.mxu0 0.0
    %3338 = vmatpush2.msra.mxu0 0.0
    %3339 = vmatprep.subr.mxu0 0.0
    %3340 = vmatpush2.msra.mxu0 0.0
    %3341 = vmatprep.subr.mxu0 0.0
    %3342 = vmatpush2.msra.mxu0 0.0
    %3343 = vmatprep.subr.mxu0 0.0
    %3344 = vmatpush2.msra.mxu0 0.0
    %3345 = vmatprep.subr.mxu0 0.0
    %3346 = vmatpush2.msra.mxu0 0.0
    %3347 = vmatprep.subr.mxu0 0.0
    %3348 = vmatpush2.msra.mxu0 0.0
    %3349 = vmatprep.subr.mxu0 0.0
    %3350 = vmatpush2.msra.mxu0 0.0
    %3351 = vmatprep.mubr.f32.mxu0 0.0
    %3352 = vmatmul.mubr.f32.gmra.mxu0 %v3282
    %v3353 = vpop.f32.mrf.mxu0
    %v3354 = vadd.f32 0.0, %v3353
    %v3355 = vpop.f32.mrf.mxu0
    %3356 = vmatprep.mubr.f32.mxu0 0.0
    %3357 = vmatmul.mubr.f32.gmra.mxu0 %v3285
    %v3358 = vpop.f32.mrf.mxu0
    %v3359 = vadd.f32 0.0, %v3358
    %v3360 = vpop.f32.mrf.mxu0
    %3361 = vdwg.mxu0
    %v3362 = vadd.f32 %v3154, %v3354
    %v3363 = vadd.f32 %v3159, %v3359
    %v3364 = vmul.f32 %v2730, %v100
    %v3365 = vmul.f32 %v2731, %v100
    %v3367 = vsel %vm158, %v3364, 0
    %v3370 = vsel %vm158, %v3365, 0
    %3372 = vmatprep.subr.mxu0 0.0
    %3373 = vmatpush1.xpose.msra.mxu0 0.0
    %3374 = vmatprep.subr.mxu0 0.0
    %3375 = vmatpush1.xpose.msra.mxu0 0.0
    %3376 = vmatprep.subr.mxu0 0.0
    %3377 = vmatpush1.xpose.msra.mxu0 0.0
    %3378 = vmatprep.subr.mxu0 0.0
    %3379 = vmatpush1.xpose.msra.mxu0 0.0
    %3380 = vmatprep.subr.mxu0 0.0
    %3381 = vmatpush1.xpose.msra.mxu0 0.0
    %3382 = vmatprep.subr.mxu0 0.0
    %3383 = vmatpush1.xpose.msra.mxu0 0.0
    %3384 = vmatprep.subr.mxu0 0.0
    %3385 = vmatpush1.xpose.msra.mxu0 0.0
    %3386 = vmatprep.subr.mxu0 0.0
    %3387 = vmatpush1.xpose.msra.mxu0 0.0
    %3388 = vmatprep.subr.mxu0 0.0
    %3389 = vmatpush1.xpose.msra.mxu0 0.0
    %3390 = vmatprep.subr.mxu0 0.0
    %3391 = vmatpush1.xpose.msra.mxu0 0.0
    %3392 = vmatprep.subr.mxu0 0.0
    %3393 = vmatpush1.xpose.msra.mxu0 0.0
    %3394 = vmatprep.subr.mxu0 0.0
    %3395 = vmatpush1.xpose.msra.mxu0 0.0
    %3396 = vmatprep.subr.mxu0 0.0
    %3397 = vmatpush1.xpose.msra.mxu0 0.0
    %3398 = vmatprep.subr.mxu0 0.0
    %3399 = vmatpush1.xpose.msra.mxu0 0.0
    %3400 = vmatprep.subr.mxu0 0.0
    %3401 = vmatpush1.xpose.msra.mxu0 %v2768
    %3402 = vmatprep.subr.mxu0 0.0
    %3403 = vmatpush1.xpose.msra.mxu0 %v2766
    %3404 = vmatprep.subr.mxu0 0.0
    %3405 = vmatpush2.xpose.msra.mxu0 0.0
    %3406 = vmatprep.subr.mxu0 0.0
    %3407 = vmatpush2.xpose.msra.mxu0 0.0
    %3408 = vmatprep.subr.mxu0 0.0
    %3409 = vmatpush2.xpose.msra.mxu0 0.0
    %3410 = vmatprep.subr.mxu0 0.0
    %3411 = vmatpush2.xpose.msra.mxu0 0.0
    %3412 = vmatprep.subr.mxu0 0.0
    %3413 = vmatpush2.xpose.msra.mxu0 0.0
    %3414 = vmatprep.subr.mxu0 0.0
    %3415 = vmatpush2.xpose.msra.mxu0 0.0
    %3416 = vmatprep.subr.mxu0 0.0
    %3417 = vmatpush2.xpose.msra.mxu0 0.0
    %3418 = vmatprep.subr.mxu0 0.0
    %3419 = vmatpush2.xpose.msra.mxu0 0.0
    %3420 = vmatprep.subr.mxu0 0.0
    %3421 = vmatpush2.xpose.msra.mxu0 0.0
    %3422 = vmatprep.subr.mxu0 0.0
    %3423 = vmatpush2.xpose.msra.mxu0 0.0
    %3424 = vmatprep.subr.mxu0 0.0
    %3425 = vmatpush2.xpose.msra.mxu0 0.0
    %3426 = vmatprep.subr.mxu0 0.0
    %3427 = vmatpush2.xpose.msra.mxu0 0.0
    %3428 = vmatprep.subr.mxu0 0.0
    %3429 = vmatpush2.xpose.msra.mxu0 0.0
    %3430 = vmatprep.subr.mxu0 0.0
    %3431 = vmatpush2.xpose.msra.mxu0 0.0
    %3432 = vmatprep.subr.mxu0 0.0
    %3433 = vmatpush2.xpose.msra.mxu0 0.0
    %3434 = vmatprep.subr.mxu0 0.0
    %3435 = vmatpush2.xpose.msra.mxu0 0.0
    %3436 = vmatprep.mubr.f32.mxu0 0.0
    %3437 = vmatmul.mubr.f32.gmra.mxu0 %v3367
    %v3438 = vpop.f32.mrf.mxu0
    %v3439 = vadd.f32 0.0, %v3438
    %v3440 = vpop.f32.mrf.mxu0
    %3441 = vmatprep.mubr.f32.mxu0 0.0
    %3442 = vmatmul.mubr.f32.gmra.mxu0 %v3370
    %v3443 = vpop.f32.mrf.mxu0
    %v3444 = vadd.f32 0.0, %v3443
    %v3445 = vpop.f32.mrf.mxu0
    %3446 = vdwg.mxu0
    %v3447 = vmul.f32 %v3439, 0.35355338
    %v3448 = vmul.f32 %v3444, 0.35355338
    %v3449 = vadd.f32 %v3447, %v142
    %v3450 = vadd.f32 %v3448, %v143
    %v3451 = vsel %vm363, %v3449, -inf
    %3452 = vmax.xlane.f32.xlu0 %v3451
    %v3453 = vpop.xlane.xlu0 %3452
    %v3454 = vsel %vm363, %v3450, -inf
    %3455 = vmax.xlane.f32.xlu0 %v3454
    %v3456 = vpop.xlane.xlu0 %3455
    %v3457 = vsub.f32 %v3449, %v3453
    %v3458 = vsub.f32 %v3450, %v3456
    %v3459 = vmul.f32 %v3457, 1.442695
    %v3460 = vpow.pop %v3459
    %v3461 = vmul.f32 %v3458, 1.442695
    %v3462 = vpow.pop %v3461
    %v3463 = vsel %vm363, %v3460, 0.0
    %3464 = vadd.xlane.f32.xlu0 %v3463
    %v3465 = vpop.xlane.xlu0 %3464
    %v3466 = vsel %vm363, %v3462, 0.0
    %3467 = vadd.xlane.f32.xlu0 %v3466
    %v3468 = vpop.xlane.xlu0 %3467
    %v3469 = vrcp.pop %v3465
    %v3470 = vrcp.pop %v3468
    %v3471 = vmul.f32 %v3460, %v3469
    %v3472 = vmul.f32 %v3462, %v3470
    %v3473 = vmul.f32 %v2750, %v1002
    %v3474 = vmul.f32 %v2751, %v1002
    %3477 = vrot.lane.b32.xlu0 %v3473, 64
    %v3478 = vpop.permute.xlu0 %3477
    %3479 = vrot.lane.b32.xlu0 %v3474, 64
    %v3480 = vpop.permute.xlu0 %3479
    %v3484 = vsel %vm363, %v3471, 0
    %v3487 = vsel %vm363, %v3472, 0
    %3489 = vmatprep.subr.mxu0 0.0
    %3490 = vmatpush1.msra.mxu0 0.0
    %3491 = vmatprep.subr.mxu0 0.0
    %3492 = vmatpush1.msra.mxu0 0.0
    %3493 = vmatprep.subr.mxu0 0.0
    %3494 = vmatpush1.msra.mxu0 0.0
    %3495 = vmatprep.subr.mxu0 0.0
    %3496 = vmatpush1.msra.mxu0 0.0
    %3497 = vmatprep.subr.mxu0 0.0
    %3498 = vmatpush1.msra.mxu0 0.0
    %3499 = vmatprep.subr.mxu0 0.0
    %3500 = vmatpush1.msra.mxu0 0.0
    %3501 = vmatprep.subr.mxu0 0.0
    %3502 = vmatpush1.msra.mxu0 0.0
    %3503 = vmatprep.subr.mxu0 0.0
    %3504 = vmatpush1.msra.mxu0 0.0
    %3505 = vmatprep.subr.mxu0 0.0
    %3506 = vmatpush1.msra.mxu0 0.0
    %3507 = vmatprep.subr.mxu0 0.0
    %3508 = vmatpush1.msra.mxu0 0.0
    %3509 = vmatprep.subr.mxu0 0.0
    %3510 = vmatpush1.msra.mxu0 0.0
    %3511 = vmatprep.subr.mxu0 0.0
    %3512 = vmatpush1.msra.mxu0 0.0
    %3513 = vmatprep.subr.mxu0 0.0
    %3514 = vmatpush1.msra.mxu0 0.0
    %3515 = vmatprep.subr.mxu0 0.0
    %3516 = vmatpush1.msra.mxu0 0.0
    %3517 = vmatprep.subr.mxu0 0.0
    %3518 = vmatpush1.msra.mxu0 %v3480
    %3519 = vmatprep.subr.mxu0 0.0
    %3520 = vmatpush1.msra.mxu0 %v3478
    %3521 = vmatprep.subr.mxu0 0.0
    %3522 = vmatpush2.msra.mxu0 0.0
    %3523 = vmatprep.subr.mxu0 0.0
    %3524 = vmatpush2.msra.mxu0 0.0
    %3525 = vmatprep.subr.mxu0 0.0
    %3526 = vmatpush2.msra.mxu0 0.0
    %3527 = vmatprep.subr.mxu0 0.0
    %3528 = vmatpush2.msra.mxu0 0.0
    %3529 = vmatprep.subr.mxu0 0.0
    %3530 = vmatpush2.msra.mxu0 0.0
    %3531 = vmatprep.subr.mxu0 0.0
    %3532 = vmatpush2.msra.mxu0 0.0
    %3533 = vmatprep.subr.mxu0 0.0
    %3534 = vmatpush2.msra.mxu0 0.0
    %3535 = vmatprep.subr.mxu0 0.0
    %3536 = vmatpush2.msra.mxu0 0.0
    %3537 = vmatprep.subr.mxu0 0.0
    %3538 = vmatpush2.msra.mxu0 0.0
    %3539 = vmatprep.subr.mxu0 0.0
    %3540 = vmatpush2.msra.mxu0 0.0
    %3541 = vmatprep.subr.mxu0 0.0
    %3542 = vmatpush2.msra.mxu0 0.0
    %3543 = vmatprep.subr.mxu0 0.0
    %3544 = vmatpush2.msra.mxu0 0.0
    %3545 = vmatprep.subr.mxu0 0.0
    %3546 = vmatpush2.msra.mxu0 0.0
    %3547 = vmatprep.subr.mxu0 0.0
    %3548 = vmatpush2.msra.mxu0 0.0
    %3549 = vmatprep.subr.mxu0 0.0
    %3550 = vmatpush2.msra.mxu0 0.0
    %3551 = vmatprep.subr.mxu0 0.0
    %3552 = vmatpush2.msra.mxu0 0.0
    %3553 = vmatprep.mubr.f32.mxu0 0.0
    %3554 = vmatmul.mubr.f32.gmra.mxu0 %v3484
    %v3555 = vpop.f32.mrf.mxu0
    %v3556 = vadd.f32 0.0, %v3555
    %v3557 = vpop.f32.mrf.mxu0
    %3558 = vmatprep.mubr.f32.mxu0 0.0
    %3559 = vmatmul.mubr.f32.gmra.mxu0 %v3487
    %v3560 = vpop.f32.mrf.mxu0
    %v3561 = vadd.f32 0.0, %v3560
    %v3562 = vpop.f32.mrf.mxu0
    %3563 = vdwg.mxu0
    %v3564 = vadd.f32 %v3362, %v3556
    %v3565 = vadd.f32 %v3363, %v3561
    %v3566 = vlaneseq
    %v3567 = vshrl.u32 %v3566, 7
    %v3568 = vsub.s32 3, %v3567
    %v3569 = vrot.slane %v2643, %v3568
    %3574 = vrot.lane.b32.xlu0 %v2630, 32
    %v3575 = vpop.permute.xlu0 %3574
    %3576 = vrot.lane.b32.xlu0 %v2633, 32
    %v3577 = vpop.permute.xlu0 %3576
    %3578 = vrot.lane.b32.xlu0 %v2636, 32
    %v3579 = vpop.permute.xlu0 %3578
    %3580 = vrot.lane.b32.xlu0 %v2639, 32
    %v3581 = vpop.permute.xlu0 %3580
    %v3587 = vsel %vm158, %v3564, 0
    %v3590 = vsel %vm158, %v3565, 0
    %3592 = vmatprep.subr.mxu0 0.0
    %3593 = vmatpush1.msra.mxu0 0.0
    %3594 = vmatprep.subr.mxu0 0.0
    %3595 = vmatpush1.msra.mxu0 0.0
    %3596 = vmatprep.subr.mxu0 0.0
    %3597 = vmatpush1.msra.mxu0 0.0
    %3598 = vmatprep.subr.mxu0 0.0
    %3599 = vmatpush1.msra.mxu0 0.0
    %3600 = vmatprep.subr.mxu0 0.0
    %3601 = vmatpush1.msra.mxu0 0.0
    %3602 = vmatprep.subr.mxu0 0.0
    %3603 = vmatpush1.msra.mxu0 0.0
    %3604 = vmatprep.subr.mxu0 0.0
    %3605 = vmatpush1.msra.mxu0 0.0
    %3606 = vmatprep.subr.mxu0 0.0
    %3607 = vmatpush1.msra.mxu0 0.0
    %3608 = vmatprep.subr.mxu0 0.0
    %3609 = vmatpush1.msra.mxu0 0.0
    %3610 = vmatprep.subr.mxu0 0.0
    %3611 = vmatpush1.msra.mxu0 0.0
    %3612 = vmatprep.subr.mxu0 0.0
    %3613 = vmatpush1.msra.mxu0 0.0
    %3614 = vmatprep.subr.mxu0 0.0
    %3615 = vmatpush1.msra.mxu0 0.0
    %3616 = vmatprep.subr.mxu0 0.0
    %3617 = vmatpush1.msra.mxu0 %v3581
    %3618 = vmatprep.subr.mxu0 0.0
    %3619 = vmatpush1.msra.mxu0 %v3579
    %3620 = vmatprep.subr.mxu0 0.0
    %3621 = vmatpush1.msra.mxu0 %v3577
    %3622 = vmatprep.subr.mxu0 0.0
    %3623 = vmatpush1.msra.mxu0 %v3575
    %3624 = vmatprep.subr.mxu0 0.0
    %3625 = vmatpush2.msra.mxu0 0.0
    %3626 = vmatprep.subr.mxu0 0.0
    %3627 = vmatpush2.msra.mxu0 0.0
    %3628 = vmatprep.subr.mxu0 0.0
    %3629 = vmatpush2.msra.mxu0 0.0
    %3630 = vmatprep.subr.mxu0 0.0
    %3631 = vmatpush2.msra.mxu0 0.0
    %3632 = vmatprep.subr.mxu0 0.0
    %3633 = vmatpush2.msra.mxu0 0.0
    %3634 = vmatprep.subr.mxu0 0.0
    %3635 = vmatpush2.msra.mxu0 0.0
    %3636 = vmatprep.subr.mxu0 0.0
    %3637 = vmatpush2.msra.mxu0 0.0
    %3638 = vmatprep.subr.mxu0 0.0
    %3639 = vmatpush2.msra.mxu0 0.0
    %3640 = vmatprep.subr.mxu0 0.0
    %3641 = vmatpush2.msra.mxu0 0.0
    %3642 = vmatprep.subr.mxu0 0.0
    %3643 = vmatpush2.msra.mxu0 0.0
    %3644 = vmatprep.subr.mxu0 0.0
    %3645 = vmatpush2.msra.mxu0 0.0
    %3646 = vmatprep.subr.mxu0 0.0
    %3647 = vmatpush2.msra.mxu0 0.0
    %3648 = vmatprep.subr.mxu0 0.0
    %3649 = vmatpush2.msra.mxu0 0.0
    %3650 = vmatprep.subr.mxu0 0.0
    %3651 = vmatpush2.msra.mxu0 0.0
    %3652 = vmatprep.subr.mxu0 0.0
    %3653 = vmatpush2.msra.mxu0 0.0
    %3654 = vmatprep.subr.mxu0 0.0
    %3655 = vmatpush2.msra.mxu0 0.0
    %3656 = vmatprep.mubr.f32.mxu0 0.0
    %3657 = vmatmul.mubr.f32.gmra.mxu0 %v3587
    %v3658 = vpop.f32.mrf.mxu0
    %v3659 = vadd.f32 %v3569, %v3658
    %v3660 = vpop.f32.mrf.mxu0
    %3661 = vmatprep.mubr.f32.mxu0 0.0
    %3662 = vmatmul.mubr.f32.gmra.mxu0 %v3590
    %v3663 = vpop.f32.mrf.mxu0
    %v3664 = vadd.f32 %v3569, %v3663
    %v3665 = vpop.f32.mrf.mxu0
    %3666 = vdwg.mxu0
    %v3667 = vadd.f32 %v2627, %v3659
    %v3668 = vadd.f32 %v2628, %v3664
    %v3669 = vsel %vm158, %v3667, 0.0
    %3670 = vadd.xlane.f32.xlu0 %v3669
    %v3671 = vpop.xlane.xlu0 %3670
    %v3672 = vsel %vm158, %v3668, 0.0
    %3673 = vadd.xlane.f32.xlu0 %v3672
    %v3674 = vpop.xlane.xlu0 %3673
    %v3675 = vmul.f32 %v3671, %v1206
    %v3676 = vmul.f32 %v3674, %v1206
    %v3677 = vsub.f32 %v3667, %v3675
    %v3678 = vsub.f32 %v3668, %v3676
    %v3679 = vmul.f32 %v3677, %v3677
    %v3680 = vmul.f32 %v3678, %v3678
    %v3681 = vsel %vm158, %v3679, 0.0
    %3682 = vadd.xlane.f32.xlu0 %v3681
    %v3683 = vpop.xlane.xlu0 %3682
    %v3684 = vsel %vm158, %v3680, 0.0
    %3685 = vadd.xlane.f32.xlu0 %v3684
    %v3686 = vpop.xlane.xlu0 %3685
    %v3687 = vmul.f32 %v3683, %v1206
    %v3688 = vmul.f32 %v3686, %v1206
    %v3689 = vadd.f32 %v3687, 1e-05
    %v3690 = vadd.f32 %v3688, 1e-05
    %v3691 = vrsqrt.pop %v3689
    %v3692 = vrsqrt.pop %v3690
    %v3693 = vmul.f32 %v3677, %v3691
    %v3694 = vmul.f32 %v3678, %v3692
    %v3695 = vlaneseq
    %v3696 = vshrl.u32 %v3695, 7
    %v3697 = vsub.s32 2, %v3696
    %v3698 = vrot.slane %v2644, %v3697
    %v3699 = vmul.f32 %v3693, %v3698
    %v3700 = vmul.f32 %v3694, %v3698
    %v3701 = vlaneseq
    %v3702 = vshrl.u32 %v3701, 7
    %v3703 = vsub.s32 3, %v3702
    %v3704 = vrot.slane %v2644, %v3703
    %v3705 = vadd.f32 %v3699, %v3704
    %v3706 = vadd.f32 %v3700, %v3704
    %v3707 = vlaneseq
    %v3708 = vshrl.u32 %v3707, 7
    %v3709 = vsub.s32 4, %v3708
    %v3710 = vrot.slane %v2643, %v3709
    %v3712 = vsel %vm158, %v3705, 0
    %v3715 = vsel %vm158, %v3706, 0
    %3717 = vmatprep.subr.mxu0 0.0
    %3718 = vmatpush1.msra.mxu0 0.0
    %3719 = vmatprep.subr.mxu0 0.0
    %3720 = vmatpush1.msra.mxu0 0.0
    %3721 = vmatprep.subr.mxu0 0.0
    %3722 = vmatpush1.msra.mxu0 0.0
    %3723 = vmatprep.subr.mxu0 0.0
    %3724 = vmatpush1.msra.mxu0 0.0
    %3725 = vmatprep.subr.mxu0 0.0
    %3726 = vmatpush1.msra.mxu0 0.0
    %3727 = vmatprep.subr.mxu0 0.0
    %3728 = vmatpush1.msra.mxu0 0.0
    %3729 = vmatprep.subr.mxu0 0.0
    %3730 = vmatpush1.msra.mxu0 0.0
    %3731 = vmatprep.subr.mxu0 0.0
    %3732 = vmatpush1.msra.mxu0 0.0
    %3733 = vmatprep.subr.mxu0 0.0
    %3734 = vmatpush1.msra.mxu0 0.0
    %3735 = vmatprep.subr.mxu0 0.0
    %3736 = vmatpush1.msra.mxu0 0.0
    %3737 = vmatprep.subr.mxu0 0.0
    %3738 = vmatpush1.msra.mxu0 0.0
    %3739 = vmatprep.subr.mxu0 0.0
    %3740 = vmatpush1.msra.mxu0 0.0
    %3741 = vmatprep.subr.mxu0 0.0
    %3742 = vmatpush1.msra.mxu0 %v2640
    %3743 = vmatprep.subr.mxu0 0.0
    %3744 = vmatpush1.msra.mxu0 %v2637
    %3745 = vmatprep.subr.mxu0 0.0
    %3746 = vmatpush1.msra.mxu0 %v2634
    %3747 = vmatprep.subr.mxu0 0.0
    %3748 = vmatpush1.msra.mxu0 %v2631
    %3749 = vmatprep.subr.mxu0 0.0
    %3750 = vmatpush2.msra.mxu0 0.0
    %3751 = vmatprep.subr.mxu0 0.0
    %3752 = vmatpush2.msra.mxu0 0.0
    %3753 = vmatprep.subr.mxu0 0.0
    %3754 = vmatpush2.msra.mxu0 0.0
    %3755 = vmatprep.subr.mxu0 0.0
    %3756 = vmatpush2.msra.mxu0 0.0
    %3757 = vmatprep.subr.mxu0 0.0
    %3758 = vmatpush2.msra.mxu0 0.0
    %3759 = vmatprep.subr.mxu0 0.0
    %3760 = vmatpush2.msra.mxu0 0.0
    %3761 = vmatprep.subr.mxu0 0.0
    %3762 = vmatpush2.msra.mxu0 0.0
    %3763 = vmatprep.subr.mxu0 0.0
    %3764 = vmatpush2.msra.mxu0 0.0
    %3765 = vmatprep.subr.mxu0 0.0
    %3766 = vmatpush2.msra.mxu0 0.0
    %3767 = vmatprep.subr.mxu0 0.0
    %3768 = vmatpush2.msra.mxu0 0.0
    %3769 = vmatprep.subr.mxu0 0.0
    %3770 = vmatpush2.msra.mxu0 0.0
    %3771 = vmatprep.subr.mxu0 0.0
    %3772 = vmatpush2.msra.mxu0 0.0
    %3773 = vmatprep.subr.mxu0 0.0
    %3774 = vmatpush2.msra.mxu0 0.0
    %3775 = vmatprep.subr.mxu0 0.0
    %3776 = vmatpush2.msra.mxu0 0.0
    %3777 = vmatprep.subr.mxu0 0.0
    %3778 = vmatpush2.msra.mxu0 0.0
    %3779 = vmatprep.subr.mxu0 0.0
    %3780 = vmatpush2.msra.mxu0 0.0
    %3781 = vmatprep.mubr.f32.mxu0 0.0
    %3782 = vmatmul.mubr.f32.gmra.mxu0 %v3712
    %v3783 = vpop.f32.mrf.mxu0
    %v3784 = vadd.f32 %v3710, %v3783
    %v3785 = vpop.f32.mrf.mxu0
    %3786 = vmatprep.mubr.f32.mxu0 0.0
    %3787 = vmatmul.mubr.f32.gmra.mxu0 %v3715
    %v3788 = vpop.f32.mrf.mxu0
    %v3789 = vadd.f32 %v3710, %v3788
    %v3790 = vpop.f32.mrf.mxu0
    %3791 = vdwg.mxu0
    %3796 = vrot.lane.b32.xlu0 %v2631, 96
    %v3797 = vpop.permute.xlu0 %3796
    %3798 = vrot.lane.b32.xlu0 %v2634, 96
    %v3799 = vpop.permute.xlu0 %3798
    %3800 = vrot.lane.b32.xlu0 %v2637, 96
    %v3801 = vpop.permute.xlu0 %3800
    %3802 = vrot.lane.b32.xlu0 %v2640, 96
    %v3803 = vpop.permute.xlu0 %3802
    %3808 = vmatprep.subr.mxu0 0.0
    %3809 = vmatpush1.msra.mxu0 0.0
    %3810 = vmatprep.subr.mxu0 0.0
    %3811 = vmatpush1.msra.mxu0 0.0
    %3812 = vmatprep.subr.mxu0 0.0
    %3813 = vmatpush1.msra.mxu0 0.0
    %3814 = vmatprep.subr.mxu0 0.0
    %3815 = vmatpush1.msra.mxu0 0.0
    %3816 = vmatprep.subr.mxu0 0.0
    %3817 = vmatpush1.msra.mxu0 0.0
    %3818 = vmatprep.subr.mxu0 0.0
    %3819 = vmatpush1.msra.mxu0 0.0
    %3820 = vmatprep.subr.mxu0 0.0
    %3821 = vmatpush1.msra.mxu0 0.0
    %3822 = vmatprep.subr.mxu0 0.0
    %3823 = vmatpush1.msra.mxu0 0.0
    %3824 = vmatprep.subr.mxu0 0.0
    %3825 = vmatpush1.msra.mxu0 0.0
    %3826 = vmatprep.subr.mxu0 0.0
    %3827 = vmatpush1.msra.mxu0 0.0
    %3828 = vmatprep.subr.mxu0 0.0
    %3829 = vmatpush1.msra.mxu0 0.0
    %3830 = vmatprep.subr.mxu0 0.0
    %3831 = vmatpush1.msra.mxu0 0.0
    %3832 = vmatprep.subr.mxu0 0.0
    %3833 = vmatpush1.msra.mxu0 %v3803
    %3834 = vmatprep.subr.mxu0 0.0
    %3835 = vmatpush1.msra.mxu0 %v3801
    %3836 = vmatprep.subr.mxu0 0.0
    %3837 = vmatpush1.msra.mxu0 %v3799
    %3838 = vmatprep.subr.mxu0 0.0
    %3839 = vmatpush1.msra.mxu0 %v3797
    %3840 = vmatprep.subr.mxu0 0.0
    %3841 = vmatpush2.msra.mxu0 0.0
    %3842 = vmatprep.subr.mxu0 0.0
    %3843 = vmatpush2.msra.mxu0 0.0
    %3844 = vmatprep.subr.mxu0 0.0
    %3845 = vmatpush2.msra.mxu0 0.0
    %3846 = vmatprep.subr.mxu0 0.0
    %3847 = vmatpush2.msra.mxu0 0.0
    %3848 = vmatprep.subr.mxu0 0.0
    %3849 = vmatpush2.msra.mxu0 0.0
    %3850 = vmatprep.subr.mxu0 0.0
    %3851 = vmatpush2.msra.mxu0 0.0
    %3852 = vmatprep.subr.mxu0 0.0
    %3853 = vmatpush2.msra.mxu0 0.0
    %3854 = vmatprep.subr.mxu0 0.0
    %3855 = vmatpush2.msra.mxu0 0.0
    %3856 = vmatprep.subr.mxu0 0.0
    %3857 = vmatpush2.msra.mxu0 0.0
    %3858 = vmatprep.subr.mxu0 0.0
    %3859 = vmatpush2.msra.mxu0 0.0
    %3860 = vmatprep.subr.mxu0 0.0
    %3861 = vmatpush2.msra.mxu0 0.0
    %3862 = vmatprep.subr.mxu0 0.0
    %3863 = vmatpush2.msra.mxu0 0.0
    %3864 = vmatprep.subr.mxu0 0.0
    %3865 = vmatpush2.msra.mxu0 0.0
    %3866 = vmatprep.subr.mxu0 0.0
    %3867 = vmatpush2.msra.mxu0 0.0
    %3868 = vmatprep.subr.mxu0 0.0
    %3869 = vmatpush2.msra.mxu0 0.0
    %3870 = vmatprep.subr.mxu0 0.0
    %3871 = vmatpush2.msra.mxu0 0.0
    %3872 = vmatprep.mubr.f32.mxu0 0.0
    %3873 = vmatmul.mubr.f32.gmra.mxu0 %v1341
    %v3874 = vpop.f32.mrf.mxu0
    %v3875 = vadd.f32 0.0, %v3874
    %v3876 = vpop.f32.mrf.mxu0
    %3877 = vmatprep.mubr.f32.mxu0 0.0
    %3878 = vmatmul.mubr.f32.gmra.mxu0 %v1344
    %v3879 = vpop.f32.mrf.mxu0
    %v3880 = vadd.f32 0.0, %v3879
    %v3881 = vpop.f32.mrf.mxu0
    %3882 = vdwg.mxu0
    %v3883 = vlaneseq
    %v3884 = vshrl.u32 %v3883, 7
    %v3885 = vsub.s32 5, %v3884
    %v3886 = vrot.slane %v2643, %v3885
    %v3887 = vadd.f32 %v3875, %v3886
    %v3888 = vadd.f32 %v3880, %v3886
    %v3889 = vlaneseq
    %v3890 = vshrl.u32 %v3889, 7
    %v3891 = vsub.s32 6, %v3890
    %v3892 = vrot.slane %v2643, %v3891
    %3894 = vrot.lane.b32.xlu0 %v3892, 32
    %v3895 = vpop.permute.xlu0 %3894
    %v3897 = vadd.f32 %v3875, %v3895
    %v3898 = vadd.f32 %v3880, %v3895
    %v3899 = vmul.f32 %v3784, %v85
    %v3900 = vmul.f32 %v3789, %v85
    %v3902 = vsel %vm158, %v3899, 0
    %v3905 = vsel %vm158, %v3900, 0
    %v3908 = vsel %vm158, %v3887, 0
    %v3911 = vsel %vm158, %v3888, 0
    %3913 = vmatprep.subr.mxu0 0.0
    %3914 = vmatpush1.xpose.msra.mxu0 0.0
    %3915 = vmatprep.subr.mxu0 0.0
    %3916 = vmatpush1.xpose.msra.mxu0 0.0
    %3917 = vmatprep.subr.mxu0 0.0
    %3918 = vmatpush1.xpose.msra.mxu0 0.0
    %3919 = vmatprep.subr.mxu0 0.0
    %3920 = vmatpush1.xpose.msra.mxu0 0.0
    %3921 = vmatprep.subr.mxu0 0.0
    %3922 = vmatpush1.xpose.msra.mxu0 0.0
    %3923 = vmatprep.subr.mxu0 0.0
    %3924 = vmatpush1.xpose.msra.mxu0 0.0
    %3925 = vmatprep.subr.mxu0 0.0
    %3926 = vmatpush1.xpose.msra.mxu0 0.0
    %3927 = vmatprep.subr.mxu0 0.0
    %3928 = vmatpush1.xpose.msra.mxu0 0.0
    %3929 = vmatprep.subr.mxu0 0.0
    %3930 = vmatpush1.xpose.msra.mxu0 0.0
    %3931 = vmatprep.subr.mxu0 0.0
    %3932 = vmatpush1.xpose.msra.mxu0 0.0
    %3933 = vmatprep.subr.mxu0 0.0
    %3934 = vmatpush1.xpose.msra.mxu0 0.0
    %3935 = vmatprep.subr.mxu0 0.0
    %3936 = vmatpush1.xpose.msra.mxu0 0.0
    %3937 = vmatprep.subr.mxu0 0.0
    %3938 = vmatpush1.xpose.msra.mxu0 0.0
    %3939 = vmatprep.subr.mxu0 0.0
    %3940 = vmatpush1.xpose.msra.mxu0 0.0
    %3941 = vmatprep.subr.mxu0 0.0
    %3942 = vmatpush1.xpose.msra.mxu0 %v3911
    %3943 = vmatprep.subr.mxu0 0.0
    %3944 = vmatpush1.xpose.msra.mxu0 %v3908
    %3945 = vmatprep.subr.mxu0 0.0
    %3946 = vmatpush2.xpose.msra.mxu0 0.0
    %3947 = vmatprep.subr.mxu0 0.0
    %3948 = vmatpush2.xpose.msra.mxu0 0.0
    %3949 = vmatprep.subr.mxu0 0.0
    %3950 = vmatpush2.xpose.msra.mxu0 0.0
    %3951 = vmatprep.subr.mxu0 0.0
    %3952 = vmatpush2.xpose.msra.mxu0 0.0
    %3953 = vmatprep.subr.mxu0 0.0
    %3954 = vmatpush2.xpose.msra.mxu0 0.0
    %3955 = vmatprep.subr.mxu0 0.0
    %3956 = vmatpush2.xpose.msra.mxu0 0.0
    %3957 = vmatprep.subr.mxu0 0.0
    %3958 = vmatpush2.xpose.msra.mxu0 0.0
    %3959 = vmatprep.subr.mxu0 0.0
    %3960 = vmatpush2.xpose.msra.mxu0 0.0
    %3961 = vmatprep.subr.mxu0 0.0
    %3962 = vmatpush2.xpose.msra.mxu0 0.0
    %3963 = vmatprep.subr.mxu0 0.0
    %3964 = vmatpush2.xpose.msra.mxu0 0.0
    %3965 = vmatprep.subr.mxu0 0.0
    %3966 = vmatpush2.xpose.msra.mxu0 0.0
    %3967 = vmatprep.subr.mxu0 0.0
    %3968 = vmatpush2.xpose.msra.mxu0 0.0
    %3969 = vmatprep.subr.mxu0 0.0
    %3970 = vmatpush2.xpose.msra.mxu0 0.0
    %3971 = vmatprep.subr.mxu0 0.0
    %3972 = vmatpush2.xpose.msra.mxu0 0.0
    %3973 = vmatprep.subr.mxu0 0.0
    %3974 = vmatpush2.xpose.msra.mxu0 0.0
    %3975 = vmatprep.subr.mxu0 0.0
    %3976 = vmatpush2.xpose.msra.mxu0 0.0
    %3977 = vmatprep.mubr.f32.mxu0 0.0
    %3978 = vmatmul.mubr.f32.gmra.mxu0 %v3902
    %v3979 = vpop.f32.mrf.mxu0
    %v3980 = vadd.f32 0.0, %v3979
    %v3981 = vpop.f32.mrf.mxu0
    %3982 = vmatprep.mubr.f32.mxu0 0.0
    %3983 = vmatmul.mubr.f32.gmra.mxu0 %v3905
    %v3984 = vpop.f32.mrf.mxu0
    %v3985 = vadd.f32 0.0, %v3984
    %v3986 = vpop.f32.mrf.mxu0
    %3987 = vdwg.mxu0
    %v3988 = vmul.f32 %v3980, 0.35355338
    %v3989 = vmul.f32 %v3985, 0.35355338
    %v3990 = vadd.f32 %v3988, %v142
    %v3991 = vadd.f32 %v3989, %v143
    %v3992 = vsel %vm363, %v3990, -inf
    %3993 = vmax.xlane.f32.xlu0 %v3992
    %v3994 = vpop.xlane.xlu0 %3993
    %v3995 = vsel %vm363, %v3991, -inf
    %3996 = vmax.xlane.f32.xlu0 %v3995
    %v3997 = vpop.xlane.xlu0 %3996
    %v3998 = vsub.f32 %v3990, %v3994
    %v3999 = vsub.f32 %v3991, %v3997
    %v4000 = vmul.f32 %v3998, 1.442695
    %v4001 = vpow.pop %v4000
    %v4002 = vmul.f32 %v3999, 1.442695
    %v4003 = vpow.pop %v4002
    %v4004 = vsel %vm363, %v4001, 0.0
    %4005 = vadd.xlane.f32.xlu0 %v4004
    %v4006 = vpop.xlane.xlu0 %4005
    %v4007 = vsel %vm363, %v4003, 0.0
    %4008 = vadd.xlane.f32.xlu0 %v4007
    %v4009 = vpop.xlane.xlu0 %4008
    %v4010 = vrcp.pop %v4006
    %v4011 = vrcp.pop %v4009
    %v4012 = vmul.f32 %v4001, %v4010
    %v4013 = vmul.f32 %v4003, %v4011
    %v4014 = vmul.f32 %v3897, %v1553
    %v4015 = vmul.f32 %v3898, %v1553
    %v4016 = vmul.f32 %v3784, %v90
    %v4017 = vmul.f32 %v3789, %v90
    %v4019 = vsel %vm158, %v4016, 0
    %v4022 = vsel %vm158, %v4017, 0
    %4024 = vmatprep.subr.mxu0 0.0
    %4025 = vmatpush1.xpose.msra.mxu0 0.0
    %4026 = vmatprep.subr.mxu0 0.0
    %4027 = vmatpush1.xpose.msra.mxu0 0.0
    %4028 = vmatprep.subr.mxu0 0.0
    %4029 = vmatpush1.xpose.msra.mxu0 0.0
    %4030 = vmatprep.subr.mxu0 0.0
    %4031 = vmatpush1.xpose.msra.mxu0 0.0
    %4032 = vmatprep.subr.mxu0 0.0
    %4033 = vmatpush1.xpose.msra.mxu0 0.0
    %4034 = vmatprep.subr.mxu0 0.0
    %4035 = vmatpush1.xpose.msra.mxu0 0.0
    %4036 = vmatprep.subr.mxu0 0.0
    %4037 = vmatpush1.xpose.msra.mxu0 0.0
    %4038 = vmatprep.subr.mxu0 0.0
    %4039 = vmatpush1.xpose.msra.mxu0 0.0
    %4040 = vmatprep.subr.mxu0 0.0
    %4041 = vmatpush1.xpose.msra.mxu0 0.0
    %4042 = vmatprep.subr.mxu0 0.0
    %4043 = vmatpush1.xpose.msra.mxu0 0.0
    %4044 = vmatprep.subr.mxu0 0.0
    %4045 = vmatpush1.xpose.msra.mxu0 0.0
    %4046 = vmatprep.subr.mxu0 0.0
    %4047 = vmatpush1.xpose.msra.mxu0 0.0
    %4048 = vmatprep.subr.mxu0 0.0
    %4049 = vmatpush1.xpose.msra.mxu0 0.0
    %4050 = vmatprep.subr.mxu0 0.0
    %4051 = vmatpush1.xpose.msra.mxu0 0.0
    %4052 = vmatprep.subr.mxu0 0.0
    %4053 = vmatpush1.xpose.msra.mxu0 %v3911
    %4054 = vmatprep.subr.mxu0 0.0
    %4055 = vmatpush1.xpose.msra.mxu0 %v3908
    %4056 = vmatprep.subr.mxu0 0.0
    %4057 = vmatpush2.xpose.msra.mxu0 0.0
    %4058 = vmatprep.subr.mxu0 0.0
    %4059 = vmatpush2.xpose.msra.mxu0 0.0
    %4060 = vmatprep.subr.mxu0 0.0
    %4061 = vmatpush2.xpose.msra.mxu0 0.0
    %4062 = vmatprep.subr.mxu0 0.0
    %4063 = vmatpush2.xpose.msra.mxu0 0.0
    %4064 = vmatprep.subr.mxu0 0.0
    %4065 = vmatpush2.xpose.msra.mxu0 0.0
    %4066 = vmatprep.subr.mxu0 0.0
    %4067 = vmatpush2.xpose.msra.mxu0 0.0
    %4068 = vmatprep.subr.mxu0 0.0
    %4069 = vmatpush2.xpose.msra.mxu0 0.0
    %4070 = vmatprep.subr.mxu0 0.0
    %4071 = vmatpush2.xpose.msra.mxu0 0.0
    %4072 = vmatprep.subr.mxu0 0.0
    %4073 = vmatpush2.xpose.msra.mxu0 0.0
    %4074 = vmatprep.subr.mxu0 0.0
    %4075 = vmatpush2.xpose.msra.mxu0 0.0
    %4076 = vmatprep.subr.mxu0 0.0
    %4077 = vmatpush2.xpose.msra.mxu0 0.0
    %4078 = vmatprep.subr.mxu0 0.0
    %4079 = vmatpush2.xpose.msra.mxu0 0.0
    %4080 = vmatprep.subr.mxu0 0.0
    %4081 = vmatpush2.xpose.msra.mxu0 0.0
    %4082 = vmatprep.subr.mxu0 0.0
    %4083 = vmatpush2.xpose.msra.mxu0 0.0
    %4084 = vmatprep.subr.mxu0 0.0
    %4085 = vmatpush2.xpose.msra.mxu0 0.0
    %4086 = vmatprep.subr.mxu0 0.0
    %4087 = vmatpush2.xpose.msra.mxu0 0.0
    %4088 = vmatprep.mubr.f32.mxu0 0.0
    %4089 = vmatmul.mubr.f32.gmra.mxu0 %v4019
    %v4090 = vpop.f32.mrf.mxu0
    %v4091 = vadd.f32 0.0, %v4090
    %v4092 = vpop.f32.mrf.mxu0
    %4093 = vmatprep.mubr.f32.mxu0 0.0
    %4094 = vmatmul.mubr.f32.gmra.mxu0 %v4022
    %v4095 = vpop.f32.mrf.mxu0
    %v4096 = vadd.f32 0.0, %v4095
    %v4097 = vpop.f32.mrf.mxu0
    %4098 = vdwg.mxu0
    %v4099 = vmul.f32 %v4091, 0.35355338
    %v4100 = vmul.f32 %v4096, 0.35355338
    %v4101 = vadd.f32 %v4099, %v142
    %v4102 = vadd.f32 %v4100, %v143
    %v4103 = vsel %vm363, %v4101, -inf
    %4104 = vmax.xlane.f32.xlu0 %v4103
    %v4105 = vpop.xlane.xlu0 %4104
    %v4106 = vsel %vm363, %v4102, -inf
    %4107 = vmax.xlane.f32.xlu0 %v4106
    %v4108 = vpop.xlane.xlu0 %4107
    %v4109 = vsub.f32 %v4101, %v4105
    %v4110 = vsub.f32 %v4102, %v4108
    %v4111 = vmul.f32 %v4109, 1.442695
    %v4112 = vpow.pop %v4111
    %v4113 = vmul.f32 %v4110, 1.442695
    %v4114 = vpow.pop %v4113
    %v4115 = vsel %vm363, %v4112, 0.0
    %4116 = vadd.xlane.f32.xlu0 %v4115
    %v4117 = vpop.xlane.xlu0 %4116
    %v4118 = vsel %vm363, %v4114, 0.0
    %4119 = vadd.xlane.f32.xlu0 %v4118
    %v4120 = vpop.xlane.xlu0 %4119
    %v4121 = vrcp.pop %v4117
    %v4122 = vrcp.pop %v4120
    %v4123 = vmul.f32 %v4112, %v4121
    %v4124 = vmul.f32 %v4114, %v4122
    %v4125 = vmul.f32 %v3897, %v1667
    %v4126 = vmul.f32 %v3898, %v1667
    %4129 = vrot.lane.b32.xlu0 %v4125, 96
    %v4130 = vpop.permute.xlu0 %4129
    %4131 = vrot.lane.b32.xlu0 %v4126, 96
    %v4132 = vpop.permute.xlu0 %4131
    %v4136 = vsel %vm363, %v4123, 0
    %v4139 = vsel %vm363, %v4124, 0
    %4141 = vmatprep.subr.mxu0 0.0
    %4142 = vmatpush1.msra.mxu0 0.0
    %4143 = vmatprep.subr.mxu0 0.0
    %4144 = vmatpush1.msra.mxu0 0.0
    %4145 = vmatprep.subr.mxu0 0.0
    %4146 = vmatpush1.msra.mxu0 0.0
    %4147 = vmatprep.subr.mxu0 0.0
    %4148 = vmatpush1.msra.mxu0 0.0
    %4149 = vmatprep.subr.mxu0 0.0
    %4150 = vmatpush1.msra.mxu0 0.0
    %4151 = vmatprep.subr.mxu0 0.0
    %4152 = vmatpush1.msra.mxu0 0.0
    %4153 = vmatprep.subr.mxu0 0.0
    %4154 = vmatpush1.msra.mxu0 0.0
    %4155 = vmatprep.subr.mxu0 0.0
    %4156 = vmatpush1.msra.mxu0 0.0
    %4157 = vmatprep.subr.mxu0 0.0
    %4158 = vmatpush1.msra.mxu0 0.0
    %4159 = vmatprep.subr.mxu0 0.0
    %4160 = vmatpush1.msra.mxu0 0.0
    %4161 = vmatprep.subr.mxu0 0.0
    %4162 = vmatpush1.msra.mxu0 0.0
    %4163 = vmatprep.subr.mxu0 0.0
    %4164 = vmatpush1.msra.mxu0 0.0
    %4165 = vmatprep.subr.mxu0 0.0
    %4166 = vmatpush1.msra.mxu0 0.0
    %4167 = vmatprep.subr.mxu0 0.0
    %4168 = vmatpush1.msra.mxu0 0.0
    %4169 = vmatprep.subr.mxu0 0.0
    %4170 = vmatpush1.msra.mxu0 %v4132
    %4171 = vmatprep.subr.mxu0 0.0
    %4172 = vmatpush1.msra.mxu0 %v4130
    %4173 = vmatprep.subr.mxu0 0.0
    %4174 = vmatpush2.msra.mxu0 0.0
    %4175 = vmatprep.subr.mxu0 0.0
    %4176 = vmatpush2.msra.mxu0 0.0
    %4177 = vmatprep.subr.mxu0 0.0
    %4178 = vmatpush2.msra.mxu0 0.0
    %4179 = vmatprep.subr.mxu0 0.0
    %4180 = vmatpush2.msra.mxu0 0.0
    %4181 = vmatprep.subr.mxu0 0.0
    %4182 = vmatpush2.msra.mxu0 0.0
    %4183 = vmatprep.subr.mxu0 0.0
    %4184 = vmatpush2.msra.mxu0 0.0
    %4185 = vmatprep.subr.mxu0 0.0
    %4186 = vmatpush2.msra.mxu0 0.0
    %4187 = vmatprep.subr.mxu0 0.0
    %4188 = vmatpush2.msra.mxu0 0.0
    %4189 = vmatprep.subr.mxu0 0.0
    %4190 = vmatpush2.msra.mxu0 0.0
    %4191 = vmatprep.subr.mxu0 0.0
    %4192 = vmatpush2.msra.mxu0 0.0
    %4193 = vmatprep.subr.mxu0 0.0
    %4194 = vmatpush2.msra.mxu0 0.0
    %4195 = vmatprep.subr.mxu0 0.0
    %4196 = vmatpush2.msra.mxu0 0.0
    %4197 = vmatprep.subr.mxu0 0.0
    %4198 = vmatpush2.msra.mxu0 0.0
    %4199 = vmatprep.subr.mxu0 0.0
    %4200 = vmatpush2.msra.mxu0 0.0
    %4201 = vmatprep.subr.mxu0 0.0
    %4202 = vmatpush2.msra.mxu0 0.0
    %4203 = vmatprep.subr.mxu0 0.0
    %4204 = vmatpush2.msra.mxu0 0.0
    %4205 = vmatprep.mubr.f32.mxu0 0.0
    %4206 = vmatmul.mubr.f32.gmra.mxu0 %v4136
    %v4207 = vpop.f32.mrf.mxu0
    %v4208 = vadd.f32 0.0, %v4207
    %v4209 = vpop.f32.mrf.mxu0
    %4210 = vmatprep.mubr.f32.mxu0 0.0
    %4211 = vmatmul.mubr.f32.gmra.mxu0 %v4139
    %v4212 = vpop.f32.mrf.mxu0
    %v4213 = vadd.f32 0.0, %v4212
    %v4214 = vpop.f32.mrf.mxu0
    %4215 = vdwg.mxu0
    %4218 = vrot.lane.b32.xlu0 %v4014, 96
    %v4219 = vpop.permute.xlu0 %4218
    %4220 = vrot.lane.b32.xlu0 %v4015, 96
    %v4221 = vpop.permute.xlu0 %4220
    %v4225 = vsel %vm363, %v4012, 0
    %v4228 = vsel %vm363, %v4013, 0
    %4230 = vmatprep.subr.mxu0 0.0
    %4231 = vmatpush1.msra.mxu0 0.0
    %4232 = vmatprep.subr.mxu0 0.0
    %4233 = vmatpush1.msra.mxu0 0.0
    %4234 = vmatprep.subr.mxu0 0.0
    %4235 = vmatpush1.msra.mxu0 0.0
    %4236 = vmatprep.subr.mxu0 0.0
    %4237 = vmatpush1.msra.mxu0 0.0
    %4238 = vmatprep.subr.mxu0 0.0
    %4239 = vmatpush1.msra.mxu0 0.0
    %4240 = vmatprep.subr.mxu0 0.0
    %4241 = vmatpush1.msra.mxu0 0.0
    %4242 = vmatprep.subr.mxu0 0.0
    %4243 = vmatpush1.msra.mxu0 0.0
    %4244 = vmatprep.subr.mxu0 0.0
    %4245 = vmatpush1.msra.mxu0 0.0
    %4246 = vmatprep.subr.mxu0 0.0
    %4247 = vmatpush1.msra.mxu0 0.0
    %4248 = vmatprep.subr.mxu0 0.0
    %4249 = vmatpush1.msra.mxu0 0.0
    %4250 = vmatprep.subr.mxu0 0.0
    %4251 = vmatpush1.msra.mxu0 0.0
    %4252 = vmatprep.subr.mxu0 0.0
    %4253 = vmatpush1.msra.mxu0 0.0
    %4254 = vmatprep.subr.mxu0 0.0
    %4255 = vmatpush1.msra.mxu0 0.0
    %4256 = vmatprep.subr.mxu0 0.0
    %4257 = vmatpush1.msra.mxu0 0.0
    %4258 = vmatprep.subr.mxu0 0.0
    %4259 = vmatpush1.msra.mxu0 %v4221
    %4260 = vmatprep.subr.mxu0 0.0
    %4261 = vmatpush1.msra.mxu0 %v4219
    %4262 = vmatprep.subr.mxu0 0.0
    %4263 = vmatpush2.msra.mxu0 0.0
    %4264 = vmatprep.subr.mxu0 0.0
    %4265 = vmatpush2.msra.mxu0 0.0
    %4266 = vmatprep.subr.mxu0 0.0
    %4267 = vmatpush2.msra.mxu0 0.0
    %4268 = vmatprep.subr.mxu0 0.0
    %4269 = vmatpush2.msra.mxu0 0.0
    %4270 = vmatprep.subr.mxu0 0.0
    %4271 = vmatpush2.msra.mxu0 0.0
    %4272 = vmatprep.subr.mxu0 0.0
    %4273 = vmatpush2.msra.mxu0 0.0
    %4274 = vmatprep.subr.mxu0 0.0
    %4275 = vmatpush2.msra.mxu0 0.0
    %4276 = vmatprep.subr.mxu0 0.0
    %4277 = vmatpush2.msra.mxu0 0.0
    %4278 = vmatprep.subr.mxu0 0.0
    %4279 = vmatpush2.msra.mxu0 0.0
    %4280 = vmatprep.subr.mxu0 0.0
    %4281 = vmatpush2.msra.mxu0 0.0
    %4282 = vmatprep.subr.mxu0 0.0
    %4283 = vmatpush2.msra.mxu0 0.0
    %4284 = vmatprep.subr.mxu0 0.0
    %4285 = vmatpush2.msra.mxu0 0.0
    %4286 = vmatprep.subr.mxu0 0.0
    %4287 = vmatpush2.msra.mxu0 0.0
    %4288 = vmatprep.subr.mxu0 0.0
    %4289 = vmatpush2.msra.mxu0 0.0
    %4290 = vmatprep.subr.mxu0 0.0
    %4291 = vmatpush2.msra.mxu0 0.0
    %4292 = vmatprep.subr.mxu0 0.0
    %4293 = vmatpush2.msra.mxu0 0.0
    %4294 = vmatprep.mubr.f32.mxu0 0.0
    %4295 = vmatmul.mubr.f32.gmra.mxu0 %v4225
    %v4296 = vpop.f32.mrf.mxu0
    %v4297 = vadd.f32 %v4208, %v4296
    %v4298 = vpop.f32.mrf.mxu0
    %4299 = vmatprep.mubr.f32.mxu0 0.0
    %4300 = vmatmul.mubr.f32.gmra.mxu0 %v4228
    %v4301 = vpop.f32.mrf.mxu0
    %v4302 = vadd.f32 %v4213, %v4301
    %v4303 = vpop.f32.mrf.mxu0
    %4304 = vdwg.mxu0
    %v4305 = vmul.f32 %v3784, %v95
    %v4306 = vmul.f32 %v3789, %v95
    %v4308 = vsel %vm158, %v4305, 0
    %v4311 = vsel %vm158, %v4306, 0
    %4313 = vmatprep.subr.mxu0 0.0
    %4314 = vmatpush1.xpose.msra.mxu0 0.0
    %4315 = vmatprep.subr.mxu0 0.0
    %4316 = vmatpush1.xpose.msra.mxu0 0.0
    %4317 = vmatprep.subr.mxu0 0.0
    %4318 = vmatpush1.xpose.msra.mxu0 0.0
    %4319 = vmatprep.subr.mxu0 0.0
    %4320 = vmatpush1.xpose.msra.mxu0 0.0
    %4321 = vmatprep.subr.mxu0 0.0
    %4322 = vmatpush1.xpose.msra.mxu0 0.0
    %4323 = vmatprep.subr.mxu0 0.0
    %4324 = vmatpush1.xpose.msra.mxu0 0.0
    %4325 = vmatprep.subr.mxu0 0.0
    %4326 = vmatpush1.xpose.msra.mxu0 0.0
    %4327 = vmatprep.subr.mxu0 0.0
    %4328 = vmatpush1.xpose.msra.mxu0 0.0
    %4329 = vmatprep.subr.mxu0 0.0
    %4330 = vmatpush1.xpose.msra.mxu0 0.0
    %4331 = vmatprep.subr.mxu0 0.0
    %4332 = vmatpush1.xpose.msra.mxu0 0.0
    %4333 = vmatprep.subr.mxu0 0.0
    %4334 = vmatpush1.xpose.msra.mxu0 0.0
    %4335 = vmatprep.subr.mxu0 0.0
    %4336 = vmatpush1.xpose.msra.mxu0 0.0
    %4337 = vmatprep.subr.mxu0 0.0
    %4338 = vmatpush1.xpose.msra.mxu0 0.0
    %4339 = vmatprep.subr.mxu0 0.0
    %4340 = vmatpush1.xpose.msra.mxu0 0.0
    %4341 = vmatprep.subr.mxu0 0.0
    %4342 = vmatpush1.xpose.msra.mxu0 %v3911
    %4343 = vmatprep.subr.mxu0 0.0
    %4344 = vmatpush1.xpose.msra.mxu0 %v3908
    %4345 = vmatprep.subr.mxu0 0.0
    %4346 = vmatpush2.xpose.msra.mxu0 0.0
    %4347 = vmatprep.subr.mxu0 0.0
    %4348 = vmatpush2.xpose.msra.mxu0 0.0
    %4349 = vmatprep.subr.mxu0 0.0
    %4350 = vmatpush2.xpose.msra.mxu0 0.0
    %4351 = vmatprep.subr.mxu0 0.0
    %4352 = vmatpush2.xpose.msra.mxu0 0.0
    %4353 = vmatprep.subr.mxu0 0.0
    %4354 = vmatpush2.xpose.msra.mxu0 0.0
    %4355 = vmatprep.subr.mxu0 0.0
    %4356 = vmatpush2.xpose.msra.mxu0 0.0
    %4357 = vmatprep.subr.mxu0 0.0
    %4358 = vmatpush2.xpose.msra.mxu0 0.0
    %4359 = vmatprep.subr.mxu0 0.0
    %4360 = vmatpush2.xpose.msra.mxu0 0.0
    %4361 = vmatprep.subr.mxu0 0.0
    %4362 = vmatpush2.xpose.msra.mxu0 0.0
    %4363 = vmatprep.subr.mxu0 0.0
    %4364 = vmatpush2.xpose.msra.mxu0 0.0
    %4365 = vmatprep.subr.mxu0 0.0
    %4366 = vmatpush2.xpose.msra.mxu0 0.0
    %4367 = vmatprep.subr.mxu0 0.0
    %4368 = vmatpush2.xpose.msra.mxu0 0.0
    %4369 = vmatprep.subr.mxu0 0.0
    %4370 = vmatpush2.xpose.msra.mxu0 0.0
    %4371 = vmatprep.subr.mxu0 0.0
    %4372 = vmatpush2.xpose.msra.mxu0 0.0
    %4373 = vmatprep.subr.mxu0 0.0
    %4374 = vmatpush2.xpose.msra.mxu0 0.0
    %4375 = vmatprep.subr.mxu0 0.0
    %4376 = vmatpush2.xpose.msra.mxu0 0.0
    %4377 = vmatprep.mubr.f32.mxu0 0.0
    %4378 = vmatmul.mubr.f32.gmra.mxu0 %v4308
    %v4379 = vpop.f32.mrf.mxu0
    %v4380 = vadd.f32 0.0, %v4379
    %v4381 = vpop.f32.mrf.mxu0
    %4382 = vmatprep.mubr.f32.mxu0 0.0
    %4383 = vmatmul.mubr.f32.gmra.mxu0 %v4311
    %v4384 = vpop.f32.mrf.mxu0
    %v4385 = vadd.f32 0.0, %v4384
    %v4386 = vpop.f32.mrf.mxu0
    %4387 = vdwg.mxu0
    %v4388 = vmul.f32 %v4380, 0.35355338
    %v4389 = vmul.f32 %v4385, 0.35355338
    %v4390 = vadd.f32 %v4388, %v142
    %v4391 = vadd.f32 %v4389, %v143
    %v4392 = vsel %vm363, %v4390, -inf
    %4393 = vmax.xlane.f32.xlu0 %v4392
    %v4394 = vpop.xlane.xlu0 %4393
    %v4395 = vsel %vm363, %v4391, -inf
    %4396 = vmax.xlane.f32.xlu0 %v4395
    %v4397 = vpop.xlane.xlu0 %4396
    %v4398 = vsub.f32 %v4390, %v4394
    %v4399 = vsub.f32 %v4391, %v4397
    %v4400 = vmul.f32 %v4398, 1.442695
    %v4401 = vpow.pop %v4400
    %v4402 = vmul.f32 %v4399, 1.442695
    %v4403 = vpow.pop %v4402
    %v4404 = vsel %vm363, %v4401, 0.0
    %4405 = vadd.xlane.f32.xlu0 %v4404
    %v4406 = vpop.xlane.xlu0 %4405
    %v4407 = vsel %vm363, %v4403, 0.0
    %4408 = vadd.xlane.f32.xlu0 %v4407
    %v4409 = vpop.xlane.xlu0 %4408
    %v4410 = vrcp.pop %v4406
    %v4411 = vrcp.pop %v4409
    %v4412 = vmul.f32 %v4401, %v4410
    %v4413 = vmul.f32 %v4403, %v4411
    %v4414 = vmul.f32 %v3897, %v1959
    %v4415 = vmul.f32 %v3898, %v1959
    %4418 = vrot.lane.b32.xlu0 %v4414, 96
    %v4419 = vpop.permute.xlu0 %4418
    %4420 = vrot.lane.b32.xlu0 %v4415, 96
    %v4421 = vpop.permute.xlu0 %4420
    %v4425 = vsel %vm363, %v4412, 0
    %v4428 = vsel %vm363, %v4413, 0
    %4430 = vmatprep.subr.mxu0 0.0
    %4431 = vmatpush1.msra.mxu0 0.0
    %4432 = vmatprep.subr.mxu0 0.0
    %4433 = vmatpush1.msra.mxu0 0.0
    %4434 = vmatprep.subr.mxu0 0.0
    %4435 = vmatpush1.msra.mxu0 0.0
    %4436 = vmatprep.subr.mxu0 0.0
    %4437 = vmatpush1.msra.mxu0 0.0
    %4438 = vmatprep.subr.mxu0 0.0
    %4439 = vmatpush1.msra.mxu0 0.0
    %4440 = vmatprep.subr.mxu0 0.0
    %4441 = vmatpush1.msra.mxu0 0.0
    %4442 = vmatprep.subr.mxu0 0.0
    %4443 = vmatpush1.msra.mxu0 0.0
    %4444 = vmatprep.subr.mxu0 0.0
    %4445 = vmatpush1.msra.mxu0 0.0
    %4446 = vmatprep.subr.mxu0 0.0
    %4447 = vmatpush1.msra.mxu0 0.0
    %4448 = vmatprep.subr.mxu0 0.0
    %4449 = vmatpush1.msra.mxu0 0.0
    %4450 = vmatprep.subr.mxu0 0.0
    %4451 = vmatpush1.msra.mxu0 0.0
    %4452 = vmatprep.subr.mxu0 0.0
    %4453 = vmatpush1.msra.mxu0 0.0
    %4454 = vmatprep.subr.mxu0 0.0
    %4455 = vmatpush1.msra.mxu0 0.0
    %4456 = vmatprep.subr.mxu0 0.0
    %4457 = vmatpush1.msra.mxu0 0.0
    %4458 = vmatprep.subr.mxu0 0.0
    %4459 = vmatpush1.msra.mxu0 %v4421
    %4460 = vmatprep.subr.mxu0 0.0
    %4461 = vmatpush1.msra.mxu0 %v4419
    %4462 = vmatprep.subr.mxu0 0.0
    %4463 = vmatpush2.msra.mxu0 0.0
    %4464 = vmatprep.subr.mxu0 0.0
    %4465 = vmatpush2.msra.mxu0 0.0
    %4466 = vmatprep.subr.mxu0 0.0
    %4467 = vmatpush2.msra.mxu0 0.0
    %4468 = vmatprep.subr.mxu0 0.0
    %4469 = vmatpush2.msra.mxu0 0.0
    %4470 = vmatprep.subr.mxu0 0.0
    %4471 = vmatpush2.msra.mxu0 0.0
    %4472 = vmatprep.subr.mxu0 0.0
    %4473 = vmatpush2.msra.mxu0 0.0
    %4474 = vmatprep.subr.mxu0 0.0
    %4475 = vmatpush2.msra.mxu0 0.0
    %4476 = vmatprep.subr.mxu0 0.0
    %4477 = vmatpush2.msra.mxu0 0.0
    %4478 = vmatprep.subr.mxu0 0.0
    %4479 = vmatpush2.msra.mxu0 0.0
    %4480 = vmatprep.subr.mxu0 0.0
    %4481 = vmatpush2.msra.mxu0 0.0
    %4482 = vmatprep.subr.mxu0 0.0
    %4483 = vmatpush2.msra.mxu0 0.0
    %4484 = vmatprep.subr.mxu0 0.0
    %4485 = vmatpush2.msra.mxu0 0.0
    %4486 = vmatprep.subr.mxu0 0.0
    %4487 = vmatpush2.msra.mxu0 0.0
    %4488 = vmatprep.subr.mxu0 0.0
    %4489 = vmatpush2.msra.mxu0 0.0
    %4490 = vmatprep.subr.mxu0 0.0
    %4491 = vmatpush2.msra.mxu0 0.0
    %4492 = vmatprep.subr.mxu0 0.0
    %4493 = vmatpush2.msra.mxu0 0.0
    %4494 = vmatprep.mubr.f32.mxu0 0.0
    %4495 = vmatmul.mubr.f32.gmra.mxu0 %v4425
    %v4496 = vpop.f32.mrf.mxu0
    %v4497 = vadd.f32 0.0, %v4496
    %v4498 = vpop.f32.mrf.mxu0
    %4499 = vmatprep.mubr.f32.mxu0 0.0
    %4500 = vmatmul.mubr.f32.gmra.mxu0 %v4428
    %v4501 = vpop.f32.mrf.mxu0
    %v4502 = vadd.f32 0.0, %v4501
    %v4503 = vpop.f32.mrf.mxu0
    %4504 = vdwg.mxu0
    %v4505 = vadd.f32 %v4297, %v4497
    %v4506 = vadd.f32 %v4302, %v4502
    %v4507 = vmul.f32 %v3784, %v100
    %v4508 = vmul.f32 %v3789, %v100
    %v4510 = vsel %vm158, %v4507, 0
    %v4513 = vsel %vm158, %v4508, 0
    %4515 = vmatprep.subr.mxu0 0.0
    %4516 = vmatpush1.xpose.msra.mxu0 0.0
    %4517 = vmatprep.subr.mxu0 0.0
    %4518 = vmatpush1.xpose.msra.mxu0 0.0
    %4519 = vmatprep.subr.mxu0 0.0
    %4520 = vmatpush1.xpose.msra.mxu0 0.0
    %4521 = vmatprep.subr.mxu0 0.0
    %4522 = vmatpush1.xpose.msra.mxu0 0.0
    %4523 = vmatprep.subr.mxu0 0.0
    %4524 = vmatpush1.xpose.msra.mxu0 0.0
    %4525 = vmatprep.subr.mxu0 0.0
    %4526 = vmatpush1.xpose.msra.mxu0 0.0
    %4527 = vmatprep.subr.mxu0 0.0
    %4528 = vmatpush1.xpose.msra.mxu0 0.0
    %4529 = vmatprep.subr.mxu0 0.0
    %4530 = vmatpush1.xpose.msra.mxu0 0.0
    %4531 = vmatprep.subr.mxu0 0.0
    %4532 = vmatpush1.xpose.msra.mxu0 0.0
    %4533 = vmatprep.subr.mxu0 0.0
    %4534 = vmatpush1.xpose.msra.mxu0 0.0
    %4535 = vmatprep.subr.mxu0 0.0
    %4536 = vmatpush1.xpose.msra.mxu0 0.0
    %4537 = vmatprep.subr.mxu0 0.0
    %4538 = vmatpush1.xpose.msra.mxu0 0.0
    %4539 = vmatprep.subr.mxu0 0.0
    %4540 = vmatpush1.xpose.msra.mxu0 0.0
    %4541 = vmatprep.subr.mxu0 0.0
    %4542 = vmatpush1.xpose.msra.mxu0 0.0
    %4543 = vmatprep.subr.mxu0 0.0
    %4544 = vmatpush1.xpose.msra.mxu0 %v3911
    %4545 = vmatprep.subr.mxu0 0.0
    %4546 = vmatpush1.xpose.msra.mxu0 %v3908
    %4547 = vmatprep.subr.mxu0 0.0
    %4548 = vmatpush2.xpose.msra.mxu0 0.0
    %4549 = vmatprep.subr.mxu0 0.0
    %4550 = vmatpush2.xpose.msra.mxu0 0.0
    %4551 = vmatprep.subr.mxu0 0.0
    %4552 = vmatpush2.xpose.msra.mxu0 0.0
    %4553 = vmatprep.subr.mxu0 0.0
    %4554 = vmatpush2.xpose.msra.mxu0 0.0
    %4555 = vmatprep.subr.mxu0 0.0
    %4556 = vmatpush2.xpose.msra.mxu0 0.0
    %4557 = vmatprep.subr.mxu0 0.0
    %4558 = vmatpush2.xpose.msra.mxu0 0.0
    %4559 = vmatprep.subr.mxu0 0.0
    %4560 = vmatpush2.xpose.msra.mxu0 0.0
    %4561 = vmatprep.subr.mxu0 0.0
    %4562 = vmatpush2.xpose.msra.mxu0 0.0
    %4563 = vmatprep.subr.mxu0 0.0
    %4564 = vmatpush2.xpose.msra.mxu0 0.0
    %4565 = vmatprep.subr.mxu0 0.0
    %4566 = vmatpush2.xpose.msra.mxu0 0.0
    %4567 = vmatprep.subr.mxu0 0.0
    %4568 = vmatpush2.xpose.msra.mxu0 0.0
    %4569 = vmatprep.subr.mxu0 0.0
    %4570 = vmatpush2.xpose.msra.mxu0 0.0
    %4571 = vmatprep.subr.mxu0 0.0
    %4572 = vmatpush2.xpose.msra.mxu0 0.0
    %4573 = vmatprep.subr.mxu0 0.0
    %4574 = vmatpush2.xpose.msra.mxu0 0.0
    %4575 = vmatprep.subr.mxu0 0.0
    %4576 = vmatpush2.xpose.msra.mxu0 0.0
    %4577 = vmatprep.subr.mxu0 0.0
    %4578 = vmatpush2.xpose.msra.mxu0 0.0
    %4579 = vmatprep.mubr.f32.mxu0 0.0
    %4580 = vmatmul.mubr.f32.gmra.mxu0 %v4510
    %v4581 = vpop.f32.mrf.mxu0
    %v4582 = vadd.f32 0.0, %v4581
    %v4583 = vpop.f32.mrf.mxu0
    %4584 = vmatprep.mubr.f32.mxu0 0.0
    %4585 = vmatmul.mubr.f32.gmra.mxu0 %v4513
    %v4586 = vpop.f32.mrf.mxu0
    %v4587 = vadd.f32 0.0, %v4586
    %v4588 = vpop.f32.mrf.mxu0
    %4589 = vdwg.mxu0
    %v4590 = vmul.f32 %v4582, 0.35355338
    %v4591 = vmul.f32 %v4587, 0.35355338
    %v4592 = vadd.f32 %v4590, %v142
    %v4593 = vadd.f32 %v4591, %v143
    %v4594 = vsel %vm363, %v4592, -inf
    %4595 = vmax.xlane.f32.xlu0 %v4594
    %v4596 = vpop.xlane.xlu0 %4595
    %v4597 = vsel %vm363, %v4593, -inf
    %4598 = vmax.xlane.f32.xlu0 %v4597
    %v4599 = vpop.xlane.xlu0 %4598
    %v4600 = vsub.f32 %v4592, %v4596
    %v4601 = vsub.f32 %v4593, %v4599
    %v4602 = vmul.f32 %v4600, 1.442695
    %v4603 = vpow.pop %v4602
    %v4604 = vmul.f32 %v4601, 1.442695
    %v4605 = vpow.pop %v4604
    %v4606 = vsel %vm363, %v4603, 0.0
    %4607 = vadd.xlane.f32.xlu0 %v4606
    %v4608 = vpop.xlane.xlu0 %4607
    %v4609 = vsel %vm363, %v4605, 0.0
    %4610 = vadd.xlane.f32.xlu0 %v4609
    %v4611 = vpop.xlane.xlu0 %4610
    %v4612 = vrcp.pop %v4608
    %v4613 = vrcp.pop %v4611
    %v4614 = vmul.f32 %v4603, %v4612
    %v4615 = vmul.f32 %v4605, %v4613
    %v4616 = vmul.f32 %v3897, %v2164
    %v4617 = vmul.f32 %v3898, %v2164
    %4620 = vrot.lane.b32.xlu0 %v4616, 96
    %v4621 = vpop.permute.xlu0 %4620
    %4622 = vrot.lane.b32.xlu0 %v4617, 96
    %v4623 = vpop.permute.xlu0 %4622
    %v4627 = vsel %vm363, %v4614, 0
    %v4630 = vsel %vm363, %v4615, 0
    %4632 = vmatprep.subr.mxu0 0.0
    %4633 = vmatpush1.msra.mxu0 0.0
    %4634 = vmatprep.subr.mxu0 0.0
    %4635 = vmatpush1.msra.mxu0 0.0
    %4636 = vmatprep.subr.mxu0 0.0
    %4637 = vmatpush1.msra.mxu0 0.0
    %4638 = vmatprep.subr.mxu0 0.0
    %4639 = vmatpush1.msra.mxu0 0.0
    %4640 = vmatprep.subr.mxu0 0.0
    %4641 = vmatpush1.msra.mxu0 0.0
    %4642 = vmatprep.subr.mxu0 0.0
    %4643 = vmatpush1.msra.mxu0 0.0
    %4644 = vmatprep.subr.mxu0 0.0
    %4645 = vmatpush1.msra.mxu0 0.0
    %4646 = vmatprep.subr.mxu0 0.0
    %4647 = vmatpush1.msra.mxu0 0.0
    %4648 = vmatprep.subr.mxu0 0.0
    %4649 = vmatpush1.msra.mxu0 0.0
    %4650 = vmatprep.subr.mxu0 0.0
    %4651 = vmatpush1.msra.mxu0 0.0
    %4652 = vmatprep.subr.mxu0 0.0
    %4653 = vmatpush1.msra.mxu0 0.0
    %4654 = vmatprep.subr.mxu0 0.0
    %4655 = vmatpush1.msra.mxu0 0.0
    %4656 = vmatprep.subr.mxu0 0.0
    %4657 = vmatpush1.msra.mxu0 0.0
    %4658 = vmatprep.subr.mxu0 0.0
    %4659 = vmatpush1.msra.mxu0 0.0
    %4660 = vmatprep.subr.mxu0 0.0
    %4661 = vmatpush1.msra.mxu0 %v4623
    %4662 = vmatprep.subr.mxu0 0.0
    %4663 = vmatpush1.msra.mxu0 %v4621
    %4664 = vmatprep.subr.mxu0 0.0
    %4665 = vmatpush2.msra.mxu0 0.0
    %4666 = vmatprep.subr.mxu0 0.0
    %4667 = vmatpush2.msra.mxu0 0.0
    %4668 = vmatprep.subr.mxu0 0.0
    %4669 = vmatpush2.msra.mxu0 0.0
    %4670 = vmatprep.subr.mxu0 0.0
    %4671 = vmatpush2.msra.mxu0 0.0
    %4672 = vmatprep.subr.mxu0 0.0
    %4673 = vmatpush2.msra.mxu0 0.0
    %4674 = vmatprep.subr.mxu0 0.0
    %4675 = vmatpush2.msra.mxu0 0.0
    %4676 = vmatprep.subr.mxu0 0.0
    %4677 = vmatpush2.msra.mxu0 0.0
    %4678 = vmatprep.subr.mxu0 0.0
    %4679 = vmatpush2.msra.mxu0 0.0
    %4680 = vmatprep.subr.mxu0 0.0
    %4681 = vmatpush2.msra.mxu0 0.0
    %4682 = vmatprep.subr.mxu0 0.0
    %4683 = vmatpush2.msra.mxu0 0.0
    %4684 = vmatprep.subr.mxu0 0.0
    %4685 = vmatpush2.msra.mxu0 0.0
    %4686 = vmatprep.subr.mxu0 0.0
    %4687 = vmatpush2.msra.mxu0 0.0
    %4688 = vmatprep.subr.mxu0 0.0
    %4689 = vmatpush2.msra.mxu0 0.0
    %4690 = vmatprep.subr.mxu0 0.0
    %4691 = vmatpush2.msra.mxu0 0.0
    %4692 = vmatprep.subr.mxu0 0.0
    %4693 = vmatpush2.msra.mxu0 0.0
    %4694 = vmatprep.subr.mxu0 0.0
    %4695 = vmatpush2.msra.mxu0 0.0
    %4696 = vmatprep.mubr.f32.mxu0 0.0
    %4697 = vmatmul.mubr.f32.gmra.mxu0 %v4627
    %v4698 = vpop.f32.mrf.mxu0
    %v4699 = vadd.f32 0.0, %v4698
    %v4700 = vpop.f32.mrf.mxu0
    %4701 = vmatprep.mubr.f32.mxu0 0.0
    %4702 = vmatmul.mubr.f32.gmra.mxu0 %v4630
    %v4703 = vpop.f32.mrf.mxu0
    %v4704 = vadd.f32 0.0, %v4703
    %v4705 = vpop.f32.mrf.mxu0
    %4706 = vdwg.mxu0
    %v4707 = vadd.f32 %v4505, %v4699
    %v4708 = vadd.f32 %v4506, %v4704
    %v4709 = vlaneseq
    %v4710 = vshrl.u32 %v4709, 7
    %v4711 = vsub.s32 7, %v4710
    %v4712 = vrot.slane %v2643, %v4711
    %4713 = vrot.lane.b32.xlu0 %v2631, 32
    %v4714 = vpop.permute.xlu0 %4713
    %4715 = vrot.lane.b32.xlu0 %v2634, 32
    %v4716 = vpop.permute.xlu0 %4715
    %4717 = vrot.lane.b32.xlu0 %v2637, 32
    %v4718 = vpop.permute.xlu0 %4717
    %4719 = vrot.lane.b32.xlu0 %v2640, 32
    %v4720 = vpop.permute.xlu0 %4719
    %v4726 = vsel %vm158, %v4707, 0
    %v4729 = vsel %vm158, %v4708, 0
    %4731 = vmatprep.subr.mxu0 0.0
    %4732 = vmatpush1.msra.mxu0 0.0
    %4733 = vmatprep.subr.mxu0 0.0
    %4734 = vmatpush1.msra.mxu0 0.0
    %4735 = vmatprep.subr.mxu0 0.0
    %4736 = vmatpush1.msra.mxu0 0.0
    %4737 = vmatprep.subr.mxu0 0.0
    %4738 = vmatpush1.msra.mxu0 0.0
    %4739 = vmatprep.subr.mxu0 0.0
    %4740 = vmatpush1.msra.mxu0 0.0
    %4741 = vmatprep.subr.mxu0 0.0
    %4742 = vmatpush1.msra.mxu0 0.0
    %4743 = vmatprep.subr.mxu0 0.0
    %4744 = vmatpush1.msra.mxu0 0.0
    %4745 = vmatprep.subr.mxu0 0.0
    %4746 = vmatpush1.msra.mxu0 0.0
    %4747 = vmatprep.subr.mxu0 0.0
    %4748 = vmatpush1.msra.mxu0 0.0
    %4749 = vmatprep.subr.mxu0 0.0
    %4750 = vmatpush1.msra.mxu0 0.0
    %4751 = vmatprep.subr.mxu0 0.0
    %4752 = vmatpush1.msra.mxu0 0.0
    %4753 = vmatprep.subr.mxu0 0.0
    %4754 = vmatpush1.msra.mxu0 0.0
    %4755 = vmatprep.subr.mxu0 0.0
    %4756 = vmatpush1.msra.mxu0 %v4720
    %4757 = vmatprep.subr.mxu0 0.0
    %4758 = vmatpush1.msra.mxu0 %v4718
    %4759 = vmatprep.subr.mxu0 0.0
    %4760 = vmatpush1.msra.mxu0 %v4716
    %4761 = vmatprep.subr.mxu0 0.0
    %4762 = vmatpush1.msra.mxu0 %v4714
    %4763 = vmatprep.subr.mxu0 0.0
    %4764 = vmatpush2.msra.mxu0 0.0
    %4765 = vmatprep.subr.mxu0 0.0
    %4766 = vmatpush2.msra.mxu0 0.0
    %4767 = vmatprep.subr.mxu0 0.0
    %4768 = vmatpush2.msra.mxu0 0.0
    %4769 = vmatprep.subr.mxu0 0.0
    %4770 = vmatpush2.msra.mxu0 0.0
    %4771 = vmatprep.subr.mxu0 0.0
    %4772 = vmatpush2.msra.mxu0 0.0
    %4773 = vmatprep.subr.mxu0 0.0
    %4774 = vmatpush2.msra.mxu0 0.0
    %4775 = vmatprep.subr.mxu0 0.0
    %4776 = vmatpush2.msra.mxu0 0.0
    %4777 = vmatprep.subr.mxu0 0.0
    %4778 = vmatpush2.msra.mxu0 0.0
    %4779 = vmatprep.subr.mxu0 0.0
    %4780 = vmatpush2.msra.mxu0 0.0
    %4781 = vmatprep.subr.mxu0 0.0
    %4782 = vmatpush2.msra.mxu0 0.0
    %4783 = vmatprep.subr.mxu0 0.0
    %4784 = vmatpush2.msra.mxu0 0.0
    %4785 = vmatprep.subr.mxu0 0.0
    %4786 = vmatpush2.msra.mxu0 0.0
    %4787 = vmatprep.subr.mxu0 0.0
    %4788 = vmatpush2.msra.mxu0 0.0
    %4789 = vmatprep.subr.mxu0 0.0
    %4790 = vmatpush2.msra.mxu0 0.0
    %4791 = vmatprep.subr.mxu0 0.0
    %4792 = vmatpush2.msra.mxu0 0.0
    %4793 = vmatprep.subr.mxu0 0.0
    %4794 = vmatpush2.msra.mxu0 0.0
    %4795 = vmatprep.mubr.f32.mxu0 0.0
    %4796 = vmatmul.mubr.f32.gmra.mxu0 %v4726
    %v4797 = vpop.f32.mrf.mxu0
    %v4798 = vadd.f32 %v4712, %v4797
    %v4799 = vpop.f32.mrf.mxu0
    %4800 = vmatprep.mubr.f32.mxu0 0.0
    %4801 = vmatmul.mubr.f32.gmra.mxu0 %v4729
    %v4802 = vpop.f32.mrf.mxu0
    %v4803 = vadd.f32 %v4712, %v4802
    %v4804 = vpop.f32.mrf.mxu0
    %4805 = vdwg.mxu0
    %v4806 = vadd.f32 %v3705, %v4798
    %v4807 = vadd.f32 %v3706, %v4803
    %v4808 = vsel %vm158, %v4806, 0.0
    %4809 = vadd.xlane.f32.xlu0 %v4808
    %v4810 = vpop.xlane.xlu0 %4809
    %v4811 = vsel %vm158, %v4807, 0.0
    %4812 = vadd.xlane.f32.xlu0 %v4811
    %v4813 = vpop.xlane.xlu0 %4812
    %v4814 = vmul.f32 %v4810, %v1206
    %v4815 = vmul.f32 %v4813, %v1206
    %v4816 = vsub.f32 %v4806, %v4814
    %v4817 = vsub.f32 %v4807, %v4815
    %v4818 = vmul.f32 %v4816, %v4816
    %v4819 = vmul.f32 %v4817, %v4817
    %v4820 = vsel %vm158, %v4818, 0.0
    %4821 = vadd.xlane.f32.xlu0 %v4820
    %v4822 = vpop.xlane.xlu0 %4821
    %v4823 = vsel %vm158, %v4819, 0.0
    %4824 = vadd.xlane.f32.xlu0 %v4823
    %v4825 = vpop.xlane.xlu0 %4824
    %v4826 = vmul.f32 %v4822, %v1206
    %v4827 = vmul.f32 %v4825, %v1206
    %v4828 = vadd.f32 %v4826, 1e-05
    %v4829 = vadd.f32 %v4827, 1e-05
    %v4830 = vrsqrt.pop %v4828
    %v4831 = vrsqrt.pop %v4829
    %v4832 = vmul.f32 %v4816, %v4830
    %v4833 = vmul.f32 %v4817, %v4831
    %v4834 = vlaneseq
    %v4835 = vshrl.u32 %v4834, 7
    %v4836 = vsub.s32 4, %v4835
    %v4837 = vrot.slane %v2644, %v4836
    %v4838 = vmul.f32 %v4832, %v4837
    %v4839 = vmul.f32 %v4833, %v4837
    %v4840 = vlaneseq
    %v4841 = vshrl.u32 %v4840, 7
    %v4842 = vsub.s32 5, %v4841
    %v4843 = vrot.slane %v2644, %v4842
    %v4844 = vadd.f32 %v4838, %v4843
    %v4845 = vadd.f32 %v4839, %v4843
    %v4846 = vlaneseq
    %v4847 = vshrl.u32 %v4846, 7
    %v4848 = vsub.s32 0, %v4847
    %v4849 = vrot.slane %v2644, %v4848
    %v4851 = vsel %vm158, %v4844, 0
    %v4854 = vsel %vm158, %v4845, 0
    %4856 = vmatprep.subr.mxu0 0.0
    %4857 = vmatpush1.msra.mxu0 0.0
    %4858 = vmatprep.subr.mxu0 0.0
    %4859 = vmatpush1.msra.mxu0 0.0
    %4860 = vmatprep.subr.mxu0 0.0
    %4861 = vmatpush1.msra.mxu0 0.0
    %4862 = vmatprep.subr.mxu0 0.0
    %4863 = vmatpush1.msra.mxu0 0.0
    %4864 = vmatprep.subr.mxu0 0.0
    %4865 = vmatpush1.msra.mxu0 0.0
    %4866 = vmatprep.subr.mxu0 0.0
    %4867 = vmatpush1.msra.mxu0 0.0
    %4868 = vmatprep.subr.mxu0 0.0
    %4869 = vmatpush1.msra.mxu0 0.0
    %4870 = vmatprep.subr.mxu0 0.0
    %4871 = vmatpush1.msra.mxu0 0.0
    %4872 = vmatprep.subr.mxu0 0.0
    %4873 = vmatpush1.msra.mxu0 0.0
    %4874 = vmatprep.subr.mxu0 0.0
    %4875 = vmatpush1.msra.mxu0 0.0
    %4876 = vmatprep.subr.mxu0 0.0
    %4877 = vmatpush1.msra.mxu0 0.0
    %4878 = vmatprep.subr.mxu0 0.0
    %4879 = vmatpush1.msra.mxu0 0.0
    %4880 = vmatprep.subr.mxu0 0.0
    %4881 = vmatpush1.msra.mxu0 %v2641
    %4882 = vmatprep.subr.mxu0 0.0
    %4883 = vmatpush1.msra.mxu0 %v2638
    %4884 = vmatprep.subr.mxu0 0.0
    %4885 = vmatpush1.msra.mxu0 %v2635
    %4886 = vmatprep.subr.mxu0 0.0
    %4887 = vmatpush1.msra.mxu0 %v2632
    %4888 = vmatprep.subr.mxu0 0.0
    %4889 = vmatpush2.msra.mxu0 0.0
    %4890 = vmatprep.subr.mxu0 0.0
    %4891 = vmatpush2.msra.mxu0 0.0
    %4892 = vmatprep.subr.mxu0 0.0
    %4893 = vmatpush2.msra.mxu0 0.0
    %4894 = vmatprep.subr.mxu0 0.0
    %4895 = vmatpush2.msra.mxu0 0.0
    %4896 = vmatprep.subr.mxu0 0.0
    %4897 = vmatpush2.msra.mxu0 0.0
    %4898 = vmatprep.subr.mxu0 0.0
    %4899 = vmatpush2.msra.mxu0 0.0
    %4900 = vmatprep.subr.mxu0 0.0
    %4901 = vmatpush2.msra.mxu0 0.0
    %4902 = vmatprep.subr.mxu0 0.0
    %4903 = vmatpush2.msra.mxu0 0.0
    %4904 = vmatprep.subr.mxu0 0.0
    %4905 = vmatpush2.msra.mxu0 0.0
    %4906 = vmatprep.subr.mxu0 0.0
    %4907 = vmatpush2.msra.mxu0 0.0
    %4908 = vmatprep.subr.mxu0 0.0
    %4909 = vmatpush2.msra.mxu0 0.0
    %4910 = vmatprep.subr.mxu0 0.0
    %4911 = vmatpush2.msra.mxu0 0.0
    %4912 = vmatprep.subr.mxu0 0.0
    %4913 = vmatpush2.msra.mxu0 0.0
    %4914 = vmatprep.subr.mxu0 0.0
    %4915 = vmatpush2.msra.mxu0 0.0
    %4916 = vmatprep.subr.mxu0 0.0
    %4917 = vmatpush2.msra.mxu0 0.0
    %4918 = vmatprep.subr.mxu0 0.0
    %4919 = vmatpush2.msra.mxu0 0.0
    %4920 = vmatprep.mubr.f32.mxu0 0.0
    %4921 = vmatmul.mubr.f32.gmra.mxu0 %v4851
    %v4922 = vpop.f32.mrf.mxu0
    %v4923 = vadd.f32 %v4849, %v4922
    %v4924 = vpop.f32.mrf.mxu0
    %4925 = vmatprep.mubr.f32.mxu0 0.0
    %4926 = vmatmul.mubr.f32.gmra.mxu0 %v4854
    %v4927 = vpop.f32.mrf.mxu0
    %v4928 = vadd.f32 %v4849, %v4927
    %v4929 = vpop.f32.mrf.mxu0
    %4930 = vdwg.mxu0
    %v4931 = vmax.f32 %v4923, 0.0
    %v4932 = vmax.f32 %v4928, 0.0
    %v4933 = vlaneseq
    %v4934 = vshrl.u32 %v4933, 7
    %v4935 = vsub.s32 1, %v4934
    %v4936 = vrot.slane %v2644, %v4935
    %4941 = vrot.lane.b32.xlu0 %v2632, 64
    %v4942 = vpop.permute.xlu0 %4941
    %4943 = vrot.lane.b32.xlu0 %v2635, 64
    %v4944 = vpop.permute.xlu0 %4943
    %4945 = vrot.lane.b32.xlu0 %v2638, 64
    %v4946 = vpop.permute.xlu0 %4945
    %4947 = vrot.lane.b32.xlu0 %v2641, 64
    %v4948 = vpop.permute.xlu0 %4947
    %v4950 = vsel %vm2499, %v4931, 0
    %v4953 = vsel %vm2499, %v4932, 0
    %v4955 = vsel %vm2499, %v4942, 0
    %v4957 = vsel %vm2499, %v4944, 0
    %v4959 = vsel %vm2499, %v4946, 0
    %v4961 = vsel %vm2499, %v4948, 0
    %4963 = vmatprep.subr.mxu0 0.0
    %4964 = vmatpush1.xpose.msra.mxu0 0.0
    %4965 = vmatprep.subr.mxu0 0.0
    %4966 = vmatpush1.xpose.msra.mxu0 0.0
    %4967 = vmatprep.subr.mxu0 0.0
    %4968 = vmatpush1.xpose.msra.mxu0 0.0
    %4969 = vmatprep.subr.mxu0 0.0
    %4970 = vmatpush1.xpose.msra.mxu0 0.0
    %4971 = vmatprep.subr.mxu0 0.0
    %4972 = vmatpush1.xpose.msra.mxu0 0.0
    %4973 = vmatprep.subr.mxu0 0.0
    %4974 = vmatpush1.xpose.msra.mxu0 0.0
    %4975 = vmatprep.subr.mxu0 0.0
    %4976 = vmatpush1.xpose.msra.mxu0 0.0
    %4977 = vmatprep.subr.mxu0 0.0
    %4978 = vmatpush1.xpose.msra.mxu0 0.0
    %4979 = vmatprep.subr.mxu0 0.0
    %4980 = vmatpush1.xpose.msra.mxu0 0.0
    %4981 = vmatprep.subr.mxu0 0.0
    %4982 = vmatpush1.xpose.msra.mxu0 0.0
    %4983 = vmatprep.subr.mxu0 0.0
    %4984 = vmatpush1.xpose.msra.mxu0 0.0
    %4985 = vmatprep.subr.mxu0 0.0
    %4986 = vmatpush1.xpose.msra.mxu0 0.0
    %4987 = vmatprep.subr.mxu0 0.0
    %4988 = vmatpush1.xpose.msra.mxu0 %v4961
    %4989 = vmatprep.subr.mxu0 0.0
    %4990 = vmatpush1.xpose.msra.mxu0 %v4959
    %4991 = vmatprep.subr.mxu0 0.0
    %4992 = vmatpush1.xpose.msra.mxu0 %v4957
    %4993 = vmatprep.subr.mxu0 0.0
    %4994 = vmatpush1.xpose.msra.mxu0 %v4955
    %4995 = vmatprep.subr.mxu0 0.0
    %4996 = vmatpush2.xpose.msra.mxu0 0.0
    %4997 = vmatprep.subr.mxu0 0.0
    %4998 = vmatpush2.xpose.msra.mxu0 0.0
    %4999 = vmatprep.subr.mxu0 0.0
    %5000 = vmatpush2.xpose.msra.mxu0 0.0
    %5001 = vmatprep.subr.mxu0 0.0
    %5002 = vmatpush2.xpose.msra.mxu0 0.0
    %5003 = vmatprep.subr.mxu0 0.0
    %5004 = vmatpush2.xpose.msra.mxu0 0.0
    %5005 = vmatprep.subr.mxu0 0.0
    %5006 = vmatpush2.xpose.msra.mxu0 0.0
    %5007 = vmatprep.subr.mxu0 0.0
    %5008 = vmatpush2.xpose.msra.mxu0 0.0
    %5009 = vmatprep.subr.mxu0 0.0
    %5010 = vmatpush2.xpose.msra.mxu0 0.0
    %5011 = vmatprep.subr.mxu0 0.0
    %5012 = vmatpush2.xpose.msra.mxu0 0.0
    %5013 = vmatprep.subr.mxu0 0.0
    %5014 = vmatpush2.xpose.msra.mxu0 0.0
    %5015 = vmatprep.subr.mxu0 0.0
    %5016 = vmatpush2.xpose.msra.mxu0 0.0
    %5017 = vmatprep.subr.mxu0 0.0
    %5018 = vmatpush2.xpose.msra.mxu0 0.0
    %5019 = vmatprep.subr.mxu0 0.0
    %5020 = vmatpush2.xpose.msra.mxu0 0.0
    %5021 = vmatprep.subr.mxu0 0.0
    %5022 = vmatpush2.xpose.msra.mxu0 0.0
    %5023 = vmatprep.subr.mxu0 0.0
    %5024 = vmatpush2.xpose.msra.mxu0 0.0
    %5025 = vmatprep.subr.mxu0 0.0
    %5026 = vmatpush2.xpose.msra.mxu0 0.0
    %5027 = vmatprep.mubr.f32.mxu0 0.0
    %5028 = vmatmul.mubr.f32.gmra.mxu0 %v4950
    %v5029 = vpop.f32.mrf.mxu0
    %v5030 = vadd.f32 %v4936, %v5029
    %v5031 = vpop.f32.mrf.mxu0
    %5032 = vmatprep.mubr.f32.mxu0 0.0
    %5033 = vmatmul.mubr.f32.gmra.mxu0 %v4953
    %v5034 = vpop.f32.mrf.mxu0
    %v5035 = vadd.f32 %v4936, %v5034
    %v5036 = vpop.f32.mrf.mxu0
    %5037 = vdwg.mxu0
    %v5038 = vadd.f32 %v4844, %v5030
    %v5039 = vadd.f32 %v4845, %v5035
    %v5040 = vsel %vm158, %v5038, 0.0
    %5041 = vadd.xlane.f32.xlu0 %v5040
    %v5042 = vpop.xlane.xlu0 %5041
    %v5043 = vsel %vm158, %v5039, 0.0
    %5044 = vadd.xlane.f32.xlu0 %v5043
    %v5045 = vpop.xlane.xlu0 %5044
    %v5046 = vmul.f32 %v5042, %v1206
    %v5047 = vmul.f32 %v5045, %v1206
    %v5048 = vsub.f32 %v5038, %v5046
    %v5049 = vsub.f32 %v5039, %v5047
    %v5050 = vmul.f32 %v5048, %v5048
    %v5051 = vmul.f32 %v5049, %v5049
    %v5052 = vsel %vm158, %v5050, 0.0
    %5053 = vadd.xlane.f32.xlu0 %v5052
    %v5054 = vpop.xlane.xlu0 %5053
    %v5055 = vsel %vm158, %v5051, 0.0
    %5056 = vadd.xlane.f32.xlu0 %v5055
    %v5057 = vpop.xlane.xlu0 %5056
    %v5058 = vmul.f32 %v5054, %v1206
    %v5059 = vmul.f32 %v5057, %v1206
    %v5060 = vadd.f32 %v5058, 1e-05
    %v5061 = vadd.f32 %v5059, 1e-05
    %v5062 = vrsqrt.pop %v5060
    %v5063 = vrsqrt.pop %v5061
    %v5064 = vmul.f32 %v5048, %v5062
    %v5065 = vmul.f32 %v5049, %v5063
    %v5066 = vlaneseq
    %v5067 = vshrl.u32 %v5066, 7
    %v5068 = vsub.s32 6, %v5067
    %v5069 = vrot.slane %v2644, %v5068
    %v5070 = vmul.f32 %v5064, %v5069
    %v5071 = vmul.f32 %v5065, %v5069
    %v5072 = vlaneseq
    %v5073 = vshrl.u32 %v5072, 7
    %v5074 = vsub.s32 7, %v5073
    %v5075 = vrot.slane %v2644, %v5074
    %v5076 = vadd.f32 %v5070, %v5075
    %v5077 = vadd.f32 %v5071, %v5075
    %v5078 = vld [vmem:[%s4] sm:$0x1]
    %v5080 = vlaneseq
    %v5081 = vshrl.u32 %v5080, 7
    %v5082 = vsub.s32 0, %v5081
    %v5083 = vrot.slane %v5078, %v5082
    %v5085 = vmul.f32 %v5076, %v5083
    %v5086 = vmul.f32 %v5077, %v5083
    %v5087 = vsel %vm158, %v5085, 0.0
    %5088 = vadd.xlane.f32.xlu0 %v5087
    %v5089 = vpop.xlane.xlu0 %5088
    %v5090 = vsel %vm158, %v5086, 0.0
    %5091 = vadd.xlane.f32.xlu0 %v5090
    %v5092 = vpop.xlane.xlu0 %5091
    %vm5093 = vcmask 7168
    %5094 = vst.msk [vmem:[%s5] sm:$0xff] %vm5093, %v5089
    %5095 = vst.msk [vmem:[%s5 + $0x8] sm:$0xff] %vm5093, %v5092
    // Predicated region
    $region38: #{decoder_forward.1} parent=1 // pred_check
      _
    $region39: #{decoder_forward.1} parent=1 // pred_check_branch
      %5097 = sbr.rel (0) target = $region41
    $region40: #{decoder_forward.1} parent=1 // pred_region
      _
    $region41: #{decoder_forward.1} parent=1 // pred_fallthru
      _
    // Predicated region
    $region42: #{decoder_forward.1} parent=1 // pred_check
      _
    $region43: #{decoder_forward.1} parent=1 // pred_check_branch
      %5099 = sbr.rel (0) target = $region45
    $region44: #{decoder_forward.1} parent=1 // pred_region
      _
    $region45: #{decoder_forward.1} parent=1 // pred_fallthru
      _
    %5100 = vsyncpa [#allocation3], 1
    %5101 = vsyncpa [#allocation5], 1
    %5102 = vsyncpa [#allocation8], 1

</llo_original>
